<compile_context>
chip_gen: v7x
topology: tpu7x:2x2x1
jax: 0.10.0
libtpu: 0.0.40
codegen_flags: <defaults>
</compile_context>

<pallas_src>
import math
import functools

import jax
import jax.numpy as jnp
import numpy as np
from jax.experimental import pallas as pl
from jax.experimental.pallas import tpu as pltpu


# ----------------------------- Pallas kernel ---------------------------------

def _cafg_kernel(t_ref, im_ref,
                 wq_ref, wk_ref, wv_ref, woh_ref,
                 bq_ref, bk_ref, bv_ref, bo_ref,
                 g1_ref, be1_ref,
                 w1_ref, b1_ref, w2_ref, b2_ref,
                 g2_ref, be2_ref,
                 o_ref,
                 *, lq, lk, num_heads, eps):
    rq, D = t_ref.shape            # rq = b_tile * lq
    bt = rq // lq
    H = num_heads
    hd = D // H
    f32 = jnp.float32
    bf16 = jnp.bfloat16

    x = t_ref[...].astype(bf16)      # (rq, D)   queries ("target")
    img = im_ref[...].astype(bf16)   # (rk, D)   keys/values ("image")

    # --- fused, lane-dense in-projections (bf16 x bf16 -> f32 accumulation);
    #     the 1/sqrt(hd) attention scale is folded into wq / bq on the host. ----
    q = jnp.dot(x, wq_ref[...], preferred_element_type=f32) + bq_ref[...]
    k = jnp.dot(img, wk_ref[...], preferred_element_type=f32) + bk_ref[...]
    v = jnp.dot(img, wv_ref[...], preferred_element_type=f32) + bv_ref[...]

    # --- split into heads only for the attention einsums (batched over b_tile) --
    q3 = q.astype(bf16).reshape(bt, lq, D)
    k3 = k.astype(bf16).reshape(bt, lk, D)
    v3 = v.astype(bf16).reshape(bt, lk, D)

    attn = None
    for h in range(H):                           # static head loop (H is small)
        sl = slice(h * hd, (h + 1) * hd)
        qh = q3[:, :, sl]                        # (bt, lq, hd)
        kh = k3[:, :, sl]                        # (bt, lk, hd)
        vh = v3[:, :, sl]                        # (bt, lk, hd)

        s = jnp.einsum('bqd,bkd->bqk', qh, kh,
                       preferred_element_type=f32)         # (bt, lq, lk)
        s = s - jnp.max(s, axis=-1, keepdims=True)
        p = jnp.exp(s)
        p = p * pl.reciprocal(jnp.sum(p, axis=-1, keepdims=True), approx=True)

        oh = jnp.einsum('bqk,bkd->bqd', p.astype(bf16), vh,
                        preferred_element_type=f32)        # (bt, lq, hd)

        # Per-head output projection accumulated in f32: sum_h oh_h @ Wo_h is
        # mathematically identical to concat(heads) @ Wo^T, but every matmul is
        # lane-dense (N = D) and no (H, lq, D) intermediate / lane concat is
        # materialised.
        term = jnp.dot(oh.reshape(rq, hd).astype(bf16), woh_ref[h],
                       preferred_element_type=f32)         # (rq, D)
        attn = term if attn is None else attn + term
    attn = attn + bo_ref[...]

    # --- norm1(dropout1(attn))   (dropout = identity; no residual, per module) --
    mu = jnp.mean(attn, axis=-1, keepdims=True)
    var = jnp.mean((attn - mu) ** 2, axis=-1, keepdims=True)
    y = (attn - mu) * jax.lax.rsqrt(var + eps) * g1_ref[...] + be1_ref[...]

    # --- MLP: Linear(D, 4D) -> GELU(erf) -> Linear(4D, D) -----------------------
    h1 = jnp.dot(y.astype(bf16), w1_ref[...], preferred_element_type=f32) + b1_ref[...]
    h1 = 0.5 * h1 * (1.0 + jax.lax.erf(h1 * (1.0 / math.sqrt(2.0))))
    m = jnp.dot(h1.astype(bf16), w2_ref[...], preferred_element_type=f32) + b2_ref[...]

    # --- norm2(y + dropout2(mlp(y))) --------------------------------------------
    z = y + m
    mu2 = jnp.mean(z, axis=-1, keepdims=True)
    var2 = jnp.mean((z - mu2) ** 2, axis=-1, keepdims=True)
    out = (z - mu2) * jax.lax.rsqrt(var2 + eps) * g2_ref[...] + be2_ref[...]

    o_ref[...] = out.astype(o_ref.dtype)


# ------------------------------- wrapper --------------------------------------

def _largest_divisor_leq(n, cap):
    cap = max(1, min(n, cap))
    for d in range(cap, 0, -1):
        if n % d == 0:
            return d
    return 1


def category_aware_fg(target, image, params, *, num_heads=8, eps=1e-5, b_tile=None):
    """target: (B, Lq, D), image: (B, Lk, D). Returns (B, Lq, D) float32."""
    B, Lq, D = target.shape
    Lk = image.shape[1]
    H = num_heads
    assert D % H == 0, "in_dim must be divisible by head_count"
    hd = D // H
    scale = 1.0 / math.sqrt(hd)

    if b_tile is None:
        # Target ~512 activation rows per grid step (fills the 256-wide MXU on
        # v6e/v7x and amortizes per-step pipeline overhead), but keep >= 2 grid
        # steps when B > 1 so the "parallel" axis can split across v7x's two TCs.
        b_tile = _largest_divisor_leq(B, max(1, 512 // max(Lq, 1)))
        if B > 1 and B // b_tile < 2:
            b_tile = _largest_divisor_leq(B, B // 2)
    assert B % b_tile == 0
    # TODO(synk): for prime / awkward B this degrades toward b_tile == 1; pad B
    # on the host (and mask) instead of underfilling the MXU at production sizes.

    rows_q, rows_k = b_tile * Lq, b_tile * Lk
    assert rows_q % 8 == 0 or rows_q == B * Lq, "query-row block must be 8-aligned"
    assert rows_k % 8 == 0 or rows_k == B * Lk, "key-row block must be 8-aligned"

    bf16, f32 = jnp.bfloat16, jnp.float32

    # ---- one-time host-side parameter transforms (free at runtime) --------------
    weight_list = [
        (params["wq_t"] * scale).astype(bf16),            # fold 1/sqrt(hd) into Wq
        params["wk_t"].astype(bf16),
        params["wv_t"].astype(bf16),
        params["wo_t"].reshape(H, hd, D).astype(bf16),     # head-major rows of Wo^T
        (params["bq"] * scale).astype(f32),                # fold 1/sqrt(hd) into bq
        params["bk"].astype(f32),
        params["bv"].astype(f32),
        params["bo"].astype(f32),
        params["g1"].astype(f32), params["be1"].astype(f32),
        params["w1_t"].astype(bf16), params["b1"].astype(f32),
        params["w2_t"].astype(bf16), params["b2"].astype(f32),
        params["g2"].astype(f32), params["be2"].astype(f32),
    ]

    # 2-D (rows, D) slabs in and out: lane-dense output stores, no in-kernel batch
    # fold/unfold for the dense layers (host reshape is free).
    target2 = target.reshape(B * Lq, D)
    image2 = image.reshape(B * Lk, D)

    def _full_spec(w):
        nd = w.ndim
        # TODO(synk): at production D on v7x (64 MiB VMEM) mark these
        # constant-index weight BlockSpecs pipeline_mode=pl.Buffered(1)
        # (single-buffered) and stream Lk with an online-softmax accumulator.
        return pl.BlockSpec(w.shape, lambda i, _nd=nd: (0,) * _nd)

    in_specs = [
        pl.BlockSpec((rows_q, D), lambda i: (i, 0)),
        pl.BlockSpec((rows_k, D), lambda i: (i, 0)),
    ] + [_full_spec(w) for w in weight_list]
    out_specs = pl.BlockSpec((rows_q, D), lambda i: (i, 0))

    # VMEM budget estimate: double-buffered input/output blocks + weights +
    # resident activations, with headroom; floor 32 MiB, cap at v7x physical.
    w_bytes = sum(int(np.prod(w.shape)) * jnp.dtype(w.dtype).itemsize
                  for w in weight_list)
    blk_bytes = 4 * (rows_q * D + rows_k * D + rows_q * D)
    act_bytes = 4 * b_tile * (3 * (Lq + 2 * Lk) * D + Lq * Lk + 6 * Lq * D + Lq * 4 * D)
    est = 2 * (blk_bytes + w_bytes) + act_bytes
    vmem_limit = int(min(64 << 20, max(32 << 20, 2 * est)))

    kernel = functools.partial(_cafg_kernel, lq=Lq, lk=Lk,
                               num_heads=num_heads, eps=eps)

    out2 = pl.pallas_call(
        kernel,
        out_shape=jax.ShapeDtypeStruct((B * Lq, D), jnp.float32),
        grid_spec=pltpu.PrefetchScalarGridSpec(
            num_scalar_prefetch=0,
            grid=(B // b_tile,),
            in_specs=in_specs,
            out_specs=out_specs,
        ),
        compiler_params=pltpu.CompilerParams(
            dimension_semantics=("parallel",),
            vmem_limit_bytes=vmem_limit),
    )(target2, image2, *weight_list)

    return out2.reshape(B, Lq, D)


# --------------------------- pure-JAX reference --------------------------------

def _reference(target, image, params, *, num_heads=8, eps=1e-5):
    def ln(x, g, b):
        mu = jnp.mean(x, axis=-1, keepdims=True)
        var = jnp.mean((x - mu) ** 2, axis=-1, keepdims=True)
        return (x - mu) / jnp.sqrt(var + eps) * g + b

    B, Lq, D = target.shape
    Lk = image.shape[1]
    hd = D // num_heads

    Q = target @ params["wq_t"] + params["bq"]
    K = image @ params["wk_t"] + params["bk"]
    V = image @ params["wv_t"] + params["bv"]
    Qh = Q.reshape(B, Lq, num_heads, hd).transpose(0, 2, 1, 3)
    Kh = K.reshape(B, Lk, num_heads, hd).transpose(0, 2, 1, 3)
    Vh = V.reshape(B, Lk, num_heads, hd).transpose(0, 2, 1, 3)
    s = jnp.einsum("bhqd,bhkd->bhqk", Qh, Kh) / math.sqrt(hd)
    p = jax.nn.softmax(s, axis=-1)
    attn = jnp.einsum("bhqk,bhkd->bhqd", p, Vh).transpose(0, 2, 1, 3).reshape(B, Lq, D)
    attn = attn @ params["wo_t"] + params["bo"]

    y = ln(attn, params["g1"], params["be1"])
    h1 = y @ params["w1_t"] + params["b1"]
    h1 = 0.5 * h1 * (1.0 + jax.lax.erf(h1 / math.sqrt(2.0)))
    m = h1 @ params["w2_t"] + params["b2"]
    return ln(y + m, params["g2"], params["be2"])


# ----------------------------------- main --------------------------------------

if __name__ == "__main__":
    # small shapes consistent with the module
    B, Lq, Lk, D = 2, 8, 16, 32
    HEADS = 8
    HID = D * 4  # ffn_ratio = 4

    key = jax.random.PRNGKey(0)
    ks = jax.random.split(key, 16)

    def rnd(k, shape, s=0.05):
        return jax.random.normal(k, shape, dtype=jnp.float32) * s

    def bf16_exact(x):
        # make values bf16-representable so the bf16-compute kernel and the f32
        # reference agree tightly (only activation rounding inside the kernel).
        return x.astype(jnp.bfloat16).astype(jnp.float32)

    params = {
        # attention projections, pre-transposed so math is x @ W_T + b
        "wq_t": rnd(ks[0], (D, D)), "wk_t": rnd(ks[1], (D, D)),
        "wv_t": rnd(ks[2], (D, D)), "wo_t": rnd(ks[3], (D, D)),
        "bq": rnd(ks[4], (1, D)), "bk": rnd(ks[5], (1, D)),
        "bv": rnd(ks[6], (1, D)), "bo": rnd(ks[7], (1, D)),
        # LayerNorm 1 / 2
        "g1": jnp.ones((1, D), jnp.float32), "be1": jnp.zeros((1, D), jnp.float32),
        "g2": jnp.ones((1, D), jnp.float32), "be2": jnp.zeros((1, D), jnp.float32),
        # MLP (Linear(D, 4D) -> GELU -> Linear(4D, D)), pre-transposed
        "w1_t": rnd(ks[8], (D, HID)), "b1": rnd(ks[9], (1, HID)),
        "w2_t": rnd(ks[10], (HID, D)), "b2": rnd(ks[11], (1, D)),
    }
    params = {k: bf16_exact(v) for k, v in params.items()}

    target = bf16_exact(jax.random.normal(ks[12], (B, Lq, D), dtype=jnp.float32))
    image = bf16_exact(jax.random.normal(ks[13], (B, Lk, D), dtype=jnp.float32))

    out = category_aware_fg(target, image, params, num_heads=HEADS)
    out = jax.block_until_ready(out)

    ref = _reference(target, image, params, num_heads=HEADS)
    # bf16 matmul operands in the kernel vs f32 reference -> loose-ish tolerance.
    np.testing.assert_allclose(np.asarray(out), np.asarray(ref), rtol=3e-2, atol=3e-2)

    print("KERNEL_OK")
</pallas_src>

<mosaic_0001>
module attributes {stable_mosaic.version = 11 : i64} {
  func.func @_cafg_kernel(%arg0: i32, %arg1: memref<8x32xf32, #tpu.memory_space<vmem>>, %arg2: memref<16x32xf32, #tpu.memory_space<vmem>>, %arg3: memref<32x32xbf16, #tpu.memory_space<vmem>>, %arg4: memref<32x32xbf16, #tpu.memory_space<vmem>>, %arg5: memref<32x32xbf16, #tpu.memory_space<vmem>>, %arg6: memref<8x4x32xbf16, #tpu.memory_space<vmem>>, %arg7: memref<1x32xf32, #tpu.memory_space<vmem>>, %arg8: memref<1x32xf32, #tpu.memory_space<vmem>>, %arg9: memref<1x32xf32, #tpu.memory_space<vmem>>, %arg10: memref<1x32xf32, #tpu.memory_space<vmem>>, %arg11: memref<1x32xf32, #tpu.memory_space<vmem>>, %arg12: memref<1x32xf32, #tpu.memory_space<vmem>>, %arg13: memref<32x128xbf16, #tpu.memory_space<vmem>>, %arg14: memref<1x128xf32, #tpu.memory_space<vmem>>, %arg15: memref<128x32xbf16, #tpu.memory_space<vmem>>, %arg16: memref<1x32xf32, #tpu.memory_space<vmem>>, %arg17: memref<1x32xf32, #tpu.memory_space<vmem>>, %arg18: memref<1x32xf32, #tpu.memory_space<vmem>>, %arg19: memref<8x32xf32, #tpu.memory_space<vmem>>) attributes {dimension_semantics = [#tpu.dimension_semantics<parallel>], iteration_bounds = array<i64: 2>, scalar_prefetch = 0 : i64, scratch_operands = 0 : i64, tpu.core_type = #tpu.core_type<tc>, window_params = [{transform_indices = @transform_0, window_bounds = array<i64: 8, 32>}, {transform_indices = @transform_1, window_bounds = array<i64: 16, 32>}, {pipeline_mode = #tpu.pipeline_mode<synchronous>, transform_indices = @transform_2, window_bounds = array<i64: 32, 32>}, {pipeline_mode = #tpu.pipeline_mode<synchronous>, transform_indices = @transform_3, window_bounds = array<i64: 32, 32>}, {pipeline_mode = #tpu.pipeline_mode<synchronous>, transform_indices = @transform_4, window_bounds = array<i64: 32, 32>}, {pipeline_mode = #tpu.pipeline_mode<synchronous>, transform_indices = @transform_5, window_bounds = array<i64: 8, 4, 32>}, {pipeline_mode = #tpu.pipeline_mode<synchronous>, transform_indices = @transform_6, window_bounds = array<i64: 1, 32>}, {pipeline_mode = #tpu.pipeline_mode<synchronous>, transform_indices = @transform_7, window_bounds = array<i64: 1, 32>}, {pipeline_mode = #tpu.pipeline_mode<synchronous>, transform_indices = @transform_8, window_bounds = array<i64: 1, 32>}, {pipeline_mode = #tpu.pipeline_mode<synchronous>, transform_indices = @transform_9, window_bounds = array<i64: 1, 32>}, {pipeline_mode = #tpu.pipeline_mode<synchronous>, transform_indices = @transform_10, window_bounds = array<i64: 1, 32>}, {pipeline_mode = #tpu.pipeline_mode<synchronous>, transform_indices = @transform_11, window_bounds = array<i64: 1, 32>}, {pipeline_mode = #tpu.pipeline_mode<synchronous>, transform_indices = @transform_12, window_bounds = array<i64: 32, 128>}, {pipeline_mode = #tpu.pipeline_mode<synchronous>, transform_indices = @transform_13, window_bounds = array<i64: 1, 128>}, {pipeline_mode = #tpu.pipeline_mode<synchronous>, transform_indices = @transform_14, window_bounds = array<i64: 128, 32>}, {pipeline_mode = #tpu.pipeline_mode<synchronous>, transform_indices = @transform_15, window_bounds = array<i64: 1, 32>}, {pipeline_mode = #tpu.pipeline_mode<synchronous>, transform_indices = @transform_16, window_bounds = array<i64: 1, 32>}, {pipeline_mode = #tpu.pipeline_mode<synchronous>, transform_indices = @transform_17, window_bounds = array<i64: 1, 32>}, {transform_indices = @transform_18, window_bounds = array<i64: 8, 32>}]} {
    %c0 = arith.constant 0 : index
    %c0_0 = arith.constant 0 : index
    %0 = vector.load %arg1[%c0, %c0_0] : memref<8x32xf32, #tpu.memory_space<vmem>>, vector<8x32xf32>
    %1 = arith.truncf %0 : vector<8x32xf32> to vector<8x32xbf16>
    %c0_1 = arith.constant 0 : index
    %c0_2 = arith.constant 0 : index
    %2 = vector.load %arg2[%c0_1, %c0_2] : memref<16x32xf32, #tpu.memory_space<vmem>>, vector<16x32xf32>
    %3 = arith.truncf %2 : vector<16x32xf32> to vector<16x32xbf16>
    %c0_3 = arith.constant 0 : index
    %c0_4 = arith.constant 0 : index
    %4 = vector.load %arg3[%c0_3, %c0_4] : memref<32x32xbf16, #tpu.memory_space<vmem>>, vector<32x32xbf16>
    %cst = arith.constant dense<0.000000e+00> : vector<8x32xf32>
    %5 = tpu.matmul %1, %4, %cst {dimension_numbers = #tpu.dot_dimension_numbers<[1], [0], [0], [1], [0, 0, 1, 1], [], []>} : vector<8x32xbf16>, vector<32x32xbf16>, vector<8x32xf32> -> vector<8x32xf32>
    %c0_5 = arith.constant 0 : index
    %c0_6 = arith.constant 0 : index
    %6 = vector.load %arg7[%c0_5, %c0_6] : memref<1x32xf32, #tpu.memory_space<vmem>>, vector<1x32xf32>
    %7 = vector.broadcast %6 : vector<1x32xf32> to vector<8x32xf32>
    %8 = arith.addf %5, %7 : vector<8x32xf32>
    %c0_7 = arith.constant 0 : index
    %c0_8 = arith.constant 0 : index
    %9 = vector.load %arg4[%c0_7, %c0_8] : memref<32x32xbf16, #tpu.memory_space<vmem>>, vector<32x32xbf16>
    %cst_9 = arith.constant dense<0.000000e+00> : vector<16x32xf32>
    %10 = tpu.matmul %3, %9, %cst_9 {dimension_numbers = #tpu.dot_dimension_numbers<[1], [0], [0], [1], [0, 0, 1, 1], [], []>} : vector<16x32xbf16>, vector<32x32xbf16>, vector<16x32xf32> -> vector<16x32xf32>
    %c0_10 = arith.constant 0 : index
    %c0_11 = arith.constant 0 : index
    %11 = vector.load %arg8[%c0_10, %c0_11] : memref<1x32xf32, #tpu.memory_space<vmem>>, vector<1x32xf32>
    %12 = vector.broadcast %11 : vector<1x32xf32> to vector<16x32xf32>
    %13 = arith.addf %10, %12 : vector<16x32xf32>
    %c0_12 = arith.constant 0 : index
    %c0_13 = arith.constant 0 : index
    %14 = vector.load %arg5[%c0_12, %c0_13] : memref<32x32xbf16, #tpu.memory_space<vmem>>, vector<32x32xbf16>
    %cst_14 = arith.constant dense<0.000000e+00> : vector<16x32xf32>
    %15 = tpu.matmul %3, %14, %cst_14 {dimension_numbers = #tpu.dot_dimension_numbers<[1], [0], [0], [1], [0, 0, 1, 1], [], []>} : vector<16x32xbf16>, vector<32x32xbf16>, vector<16x32xf32> -> vector<16x32xf32>
    %c0_15 = arith.constant 0 : index
    %c0_16 = arith.constant 0 : index
    %16 = vector.load %arg9[%c0_15, %c0_16] : memref<1x32xf32, #tpu.memory_space<vmem>>, vector<1x32xf32>
    %17 = vector.broadcast %16 : vector<1x32xf32> to vector<16x32xf32>
    %18 = arith.addf %15, %17 : vector<16x32xf32>
    %19 = arith.truncf %8 : vector<8x32xf32> to vector<8x32xbf16>
    %20 = vector.shape_cast %19 : vector<8x32xbf16> to vector<1x8x32xbf16>
    %21 = arith.truncf %13 : vector<16x32xf32> to vector<16x32xbf16>
    %22 = vector.shape_cast %21 : vector<16x32xbf16> to vector<1x16x32xbf16>
    %23 = arith.truncf %18 : vector<16x32xf32> to vector<16x32xbf16>
    %24 = vector.shape_cast %23 : vector<16x32xbf16> to vector<1x16x32xbf16>
    %25 = vector.extract_strided_slice %20 {offsets = [0, 0, 0], sizes = [1, 8, 4], strides = [1, 1, 1]} : vector<1x8x32xbf16> to vector<1x8x4xbf16>
    %26 = vector.extract_strided_slice %22 {offsets = [0, 0, 0], sizes = [1, 16, 4], strides = [1, 1, 1]} : vector<1x16x32xbf16> to vector<1x16x4xbf16>
    %27 = vector.extract_strided_slice %24 {offsets = [0, 0, 0], sizes = [1, 16, 4], strides = [1, 1, 1]} : vector<1x16x32xbf16> to vector<1x16x4xbf16>
    "tpu.trace_start"() <{level = 10 : i32, message = "bqd,bkd->bqk"}> : () -> ()
    %cst_17 = arith.constant dense<0.000000e+00> : vector<1x8x16xf32>
    %28 = tpu.matmul %25, %26, %cst_17 {dimension_numbers = #tpu.dot_dimension_numbers<[2], [2], [1], [1], [0, 0, 0, 1, 1, 1], [0], [0]>} : vector<1x8x4xbf16>, vector<1x16x4xbf16>, vector<1x8x16xf32> -> vector<1x8x16xf32>
    "tpu.trace_stop"() : () -> ()
    %cst_18 = arith.constant dense<0xFF800000> : vector<1x8xf32>
    %29 = vector.multi_reduction <maximumf>, %28, %cst_18 [2] : vector<1x8x16xf32> to vector<1x8xf32>
    %30 = vector.shape_cast %29 : vector<1x8xf32> to vector<1x8x1xf32>
    %31 = vector.broadcast %30 : vector<1x8x1xf32> to vector<1x8x16xf32>
    %32 = arith.subf %28, %31 : vector<1x8x16xf32>
    %33 = math.exp %32 : vector<1x8x16xf32>
    %cst_19 = arith.constant dense<0.000000e+00> : vector<1x8xf32>
    %34 = vector.multi_reduction <add>, %33, %cst_19 [2] : vector<1x8x16xf32> to vector<1x8xf32>
    %35 = vector.shape_cast %34 : vector<1x8xf32> to vector<1x8x1xf32>
    %36 = tpu.reciprocal %35 {approx = true} : vector<1x8x1xf32> -> vector<1x8x1xf32>
    %37 = vector.broadcast %36 : vector<1x8x1xf32> to vector<1x8x16xf32>
    %38 = arith.mulf %33, %37 : vector<1x8x16xf32>
    %39 = arith.truncf %38 : vector<1x8x16xf32> to vector<1x8x16xbf16>
    "tpu.trace_start"() <{level = 10 : i32, message = "bqk,bkd->bqd"}> : () -> ()
    %cst_20 = arith.constant dense<0.000000e+00> : vector<1x8x4xf32>
    %40 = tpu.matmul %39, %27, %cst_20 {dimension_numbers = #tpu.dot_dimension_numbers<[2], [1], [1], [2], [0, 0, 0, 1, 1, 2], [0], [0]>} : vector<1x8x16xbf16>, vector<1x16x4xbf16>, vector<1x8x4xf32> -> vector<1x8x4xf32>
    "tpu.trace_stop"() : () -> ()
    %41 = vector.shape_cast %40 : vector<1x8x4xf32> to vector<8x4xf32>
    %42 = arith.truncf %41 : vector<8x4xf32> to vector<8x4xbf16>
    %c0_21 = arith.constant 0 : index
    %c0_22 = arith.constant 0 : index
    %c0_23 = arith.constant 0 : index
    %43 = vector.load %arg6[%c0_21, %c0_22, %c0_23] : memref<8x4x32xbf16, #tpu.memory_space<vmem>>, vector<1x4x32xbf16>
    %44 = vector.shape_cast %43 : vector<1x4x32xbf16> to vector<4x32xbf16>
    %cst_24 = arith.constant dense<0.000000e+00> : vector<8x32xf32>
    %45 = tpu.matmul %42, %44, %cst_24 {dimension_numbers = #tpu.dot_dimension_numbers<[1], [0], [0], [1], [0, 0, 1, 1], [], []>} : vector<8x4xbf16>, vector<4x32xbf16>, vector<8x32xf32> -> vector<8x32xf32>
    %46 = vector.extract_strided_slice %20 {offsets = [0, 0, 4], sizes = [1, 8, 4], strides = [1, 1, 1]} : vector<1x8x32xbf16> to vector<1x8x4xbf16>
    %47 = vector.extract_strided_slice %22 {offsets = [0, 0, 4], sizes = [1, 16, 4], strides = [1, 1, 1]} : vector<1x16x32xbf16> to vector<1x16x4xbf16>
    %48 = vector.extract_strided_slice %24 {offsets = [0, 0, 4], sizes = [1, 16, 4], strides = [1, 1, 1]} : vector<1x16x32xbf16> to vector<1x16x4xbf16>
    "tpu.trace_start"() <{level = 10 : i32, message = "bqd,bkd->bqk"}> : () -> ()
    %cst_25 = arith.constant dense<0.000000e+00> : vector<1x8x16xf32>
    %49 = tpu.matmul %46, %47, %cst_25 {dimension_numbers = #tpu.dot_dimension_numbers<[2], [2], [1], [1], [0, 0, 0, 1, 1, 1], [0], [0]>} : vector<1x8x4xbf16>, vector<1x16x4xbf16>, vector<1x8x16xf32> -> vector<1x8x16xf32>
    "tpu.trace_stop"() : () -> ()
    %cst_26 = arith.constant dense<0xFF800000> : vector<1x8xf32>
    %50 = vector.multi_reduction <maximumf>, %49, %cst_26 [2] : vector<1x8x16xf32> to vector<1x8xf32>
    %51 = vector.shape_cast %50 : vector<1x8xf32> to vector<1x8x1xf32>
    %52 = vector.broadcast %51 : vector<1x8x1xf32> to vector<1x8x16xf32>
    %53 = arith.subf %49, %52 : vector<1x8x16xf32>
    %54 = math.exp %53 : vector<1x8x16xf32>
    %cst_27 = arith.constant dense<0.000000e+00> : vector<1x8xf32>
    %55 = vector.multi_reduction <add>, %54, %cst_27 [2] : vector<1x8x16xf32> to vector<1x8xf32>
    %56 = vector.shape_cast %55 : vector<1x8xf32> to vector<1x8x1xf32>
    %57 = tpu.reciprocal %56 {approx = true} : vector<1x8x1xf32> -> vector<1x8x1xf32>
    %58 = vector.broadcast %57 : vector<1x8x1xf32> to vector<1x8x16xf32>
    %59 = arith.mulf %54, %58 : vector<1x8x16xf32>
    %60 = arith.truncf %59 : vector<1x8x16xf32> to vector<1x8x16xbf16>
    "tpu.trace_start"() <{level = 10 : i32, message = "bqk,bkd->bqd"}> : () -> ()
    %cst_28 = arith.constant dense<0.000000e+00> : vector<1x8x4xf32>
    %61 = tpu.matmul %60, %48, %cst_28 {dimension_numbers = #tpu.dot_dimension_numbers<[2], [1], [1], [2], [0, 0, 0, 1, 1, 2], [0], [0]>} : vector<1x8x16xbf16>, vector<1x16x4xbf16>, vector<1x8x4xf32> -> vector<1x8x4xf32>
    "tpu.trace_stop"() : () -> ()
    %62 = vector.shape_cast %61 : vector<1x8x4xf32> to vector<8x4xf32>
    %63 = arith.truncf %62 : vector<8x4xf32> to vector<8x4xbf16>
    %c1 = arith.constant 1 : index
    %c0_29 = arith.constant 0 : index
    %c0_30 = arith.constant 0 : index
    %64 = vector.load %arg6[%c1, %c0_29, %c0_30] : memref<8x4x32xbf16, #tpu.memory_space<vmem>>, vector<1x4x32xbf16>
    %65 = vector.shape_cast %64 : vector<1x4x32xbf16> to vector<4x32xbf16>
    %cst_31 = arith.constant dense<0.000000e+00> : vector<8x32xf32>
    %66 = tpu.matmul %63, %65, %cst_31 {dimension_numbers = #tpu.dot_dimension_numbers<[1], [0], [0], [1], [0, 0, 1, 1], [], []>} : vector<8x4xbf16>, vector<4x32xbf16>, vector<8x32xf32> -> vector<8x32xf32>
    %67 = arith.addf %45, %66 : vector<8x32xf32>
    %68 = vector.extract_strided_slice %20 {offsets = [0, 0, 8], sizes = [1, 8, 4], strides = [1, 1, 1]} : vector<1x8x32xbf16> to vector<1x8x4xbf16>
    %69 = vector.extract_strided_slice %22 {offsets = [0, 0, 8], sizes = [1, 16, 4], strides = [1, 1, 1]} : vector<1x16x32xbf16> to vector<1x16x4xbf16>
    %70 = vector.extract_strided_slice %24 {offsets = [0, 0, 8], sizes = [1, 16, 4], strides = [1, 1, 1]} : vector<1x16x32xbf16> to vector<1x16x4xbf16>
    "tpu.trace_start"() <{level = 10 : i32, message = "bqd,bkd->bqk"}> : () -> ()
    %cst_32 = arith.constant dense<0.000000e+00> : vector<1x8x16xf32>
    %71 = tpu.matmul %68, %69, %cst_32 {dimension_numbers = #tpu.dot_dimension_numbers<[2], [2], [1], [1], [0, 0, 0, 1, 1, 1], [0], [0]>} : vector<1x8x4xbf16>, vector<1x16x4xbf16>, vector<1x8x16xf32> -> vector<1x8x16xf32>
    "tpu.trace_stop"() : () -> ()
    %cst_33 = arith.constant dense<0xFF800000> : vector<1x8xf32>
    %72 = vector.multi_reduction <maximumf>, %71, %cst_33 [2] : vector<1x8x16xf32> to vector<1x8xf32>
    %73 = vector.shape_cast %72 : vector<1x8xf32> to vector<1x8x1xf32>
    %74 = vector.broadcast %73 : vector<1x8x1xf32> to vector<1x8x16xf32>
    %75 = arith.subf %71, %74 : vector<1x8x16xf32>
    %76 = math.exp %75 : vector<1x8x16xf32>
    %cst_34 = arith.constant dense<0.000000e+00> : vector<1x8xf32>
    %77 = vector.multi_reduction <add>, %76, %cst_34 [2] : vector<1x8x16xf32> to vector<1x8xf32>
    %78 = vector.shape_cast %77 : vector<1x8xf32> to vector<1x8x1xf32>
    %79 = tpu.reciprocal %78 {approx = true} : vector<1x8x1xf32> -> vector<1x8x1xf32>
    %80 = vector.broadcast %79 : vector<1x8x1xf32> to vector<1x8x16xf32>
    %81 = arith.mulf %76, %80 : vector<1x8x16xf32>
    %82 = arith.truncf %81 : vector<1x8x16xf32> to vector<1x8x16xbf16>
    "tpu.trace_start"() <{level = 10 : i32, message = "bqk,bkd->bqd"}> : () -> ()
    %cst_35 = arith.constant dense<0.000000e+00> : vector<1x8x4xf32>
    %83 = tpu.matmul %82, %70, %cst_35 {dimension_numbers = #tpu.dot_dimension_numbers<[2], [1], [1], [2], [0, 0, 0, 1, 1, 2], [0], [0]>} : vector<1x8x16xbf16>, vector<1x16x4xbf16>, vector<1x8x4xf32> -> vector<1x8x4xf32>
    "tpu.trace_stop"() : () -> ()
    %84 = vector.shape_cast %83 : vector<1x8x4xf32> to vector<8x4xf32>
    %85 = arith.truncf %84 : vector<8x4xf32> to vector<8x4xbf16>
    %c2 = arith.constant 2 : index
    %c0_36 = arith.constant 0 : index
    %c0_37 = arith.constant 0 : index
    %86 = vector.load %arg6[%c2, %c0_36, %c0_37] : memref<8x4x32xbf16, #tpu.memory_space<vmem>>, vector<1x4x32xbf16>
    %87 = vector.shape_cast %86 : vector<1x4x32xbf16> to vector<4x32xbf16>
    %cst_38 = arith.constant dense<0.000000e+00> : vector<8x32xf32>
    %88 = tpu.matmul %85, %87, %cst_38 {dimension_numbers = #tpu.dot_dimension_numbers<[1], [0], [0], [1], [0, 0, 1, 1], [], []>} : vector<8x4xbf16>, vector<4x32xbf16>, vector<8x32xf32> -> vector<8x32xf32>
    %89 = arith.addf %67, %88 : vector<8x32xf32>
    %90 = vector.extract_strided_slice %20 {offsets = [0, 0, 12], sizes = [1, 8, 4], strides = [1, 1, 1]} : vector<1x8x32xbf16> to vector<1x8x4xbf16>
    %91 = vector.extract_strided_slice %22 {offsets = [0, 0, 12], sizes = [1, 16, 4], strides = [1, 1, 1]} : vector<1x16x32xbf16> to vector<1x16x4xbf16>
    %92 = vector.extract_strided_slice %24 {offsets = [0, 0, 12], sizes = [1, 16, 4], strides = [1, 1, 1]} : vector<1x16x32xbf16> to vector<1x16x4xbf16>
    "tpu.trace_start"() <{level = 10 : i32, message = "bqd,bkd->bqk"}> : () -> ()
    %cst_39 = arith.constant dense<0.000000e+00> : vector<1x8x16xf32>
    %93 = tpu.matmul %90, %91, %cst_39 {dimension_numbers = #tpu.dot_dimension_numbers<[2], [2], [1], [1], [0, 0, 0, 1, 1, 1], [0], [0]>} : vector<1x8x4xbf16>, vector<1x16x4xbf16>, vector<1x8x16xf32> -> vector<1x8x16xf32>
    "tpu.trace_stop"() : () -> ()
    %cst_40 = arith.constant dense<0xFF800000> : vector<1x8xf32>
    %94 = vector.multi_reduction <maximumf>, %93, %cst_40 [2] : vector<1x8x16xf32> to vector<1x8xf32>
    %95 = vector.shape_cast %94 : vector<1x8xf32> to vector<1x8x1xf32>
    %96 = vector.broadcast %95 : vector<1x8x1xf32> to vector<1x8x16xf32>
    %97 = arith.subf %93, %96 : vector<1x8x16xf32>
    %98 = math.exp %97 : vector<1x8x16xf32>
    %cst_41 = arith.constant dense<0.000000e+00> : vector<1x8xf32>
    %99 = vector.multi_reduction <add>, %98, %cst_41 [2] : vector<1x8x16xf32> to vector<1x8xf32>
    %100 = vector.shape_cast %99 : vector<1x8xf32> to vector<1x8x1xf32>
    %101 = tpu.reciprocal %100 {approx = true} : vector<1x8x1xf32> -> vector<1x8x1xf32>
    %102 = vector.broadcast %101 : vector<1x8x1xf32> to vector<1x8x16xf32>
    %103 = arith.mulf %98, %102 : vector<1x8x16xf32>
    %104 = arith.truncf %103 : vector<1x8x16xf32> to vector<1x8x16xbf16>
    "tpu.trace_start"() <{level = 10 : i32, message = "bqk,bkd->bqd"}> : () -> ()
    %cst_42 = arith.constant dense<0.000000e+00> : vector<1x8x4xf32>
    %105 = tpu.matmul %104, %92, %cst_42 {dimension_numbers = #tpu.dot_dimension_numbers<[2], [1], [1], [2], [0, 0, 0, 1, 1, 2], [0], [0]>} : vector<1x8x16xbf16>, vector<1x16x4xbf16>, vector<1x8x4xf32> -> vector<1x8x4xf32>
    "tpu.trace_stop"() : () -> ()
    %106 = vector.shape_cast %105 : vector<1x8x4xf32> to vector<8x4xf32>
    %107 = arith.truncf %106 : vector<8x4xf32> to vector<8x4xbf16>
    %c3 = arith.constant 3 : index
    %c0_43 = arith.constant 0 : index
    %c0_44 = arith.constant 0 : index
    %108 = vector.load %arg6[%c3, %c0_43, %c0_44] : memref<8x4x32xbf16, #tpu.memory_space<vmem>>, vector<1x4x32xbf16>
    %109 = vector.shape_cast %108 : vector<1x4x32xbf16> to vector<4x32xbf16>
    %cst_45 = arith.constant dense<0.000000e+00> : vector<8x32xf32>
    %110 = tpu.matmul %107, %109, %cst_45 {dimension_numbers = #tpu.dot_dimension_numbers<[1], [0], [0], [1], [0, 0, 1, 1], [], []>} : vector<8x4xbf16>, vector<4x32xbf16>, vector<8x32xf32> -> vector<8x32xf32>
    %111 = arith.addf %89, %110 : vector<8x32xf32>
    %112 = vector.extract_strided_slice %20 {offsets = [0, 0, 16], sizes = [1, 8, 4], strides = [1, 1, 1]} : vector<1x8x32xbf16> to vector<1x8x4xbf16>
    %113 = vector.extract_strided_slice %22 {offsets = [0, 0, 16], sizes = [1, 16, 4], strides = [1, 1, 1]} : vector<1x16x32xbf16> to vector<1x16x4xbf16>
    %114 = vector.extract_strided_slice %24 {offsets = [0, 0, 16], sizes = [1, 16, 4], strides = [1, 1, 1]} : vector<1x16x32xbf16> to vector<1x16x4xbf16>
    "tpu.trace_start"() <{level = 10 : i32, message = "bqd,bkd->bqk"}> : () -> ()
    %cst_46 = arith.constant dense<0.000000e+00> : vector<1x8x16xf32>
    %115 = tpu.matmul %112, %113, %cst_46 {dimension_numbers = #tpu.dot_dimension_numbers<[2], [2], [1], [1], [0, 0, 0, 1, 1, 1], [0], [0]>} : vector<1x8x4xbf16>, vector<1x16x4xbf16>, vector<1x8x16xf32> -> vector<1x8x16xf32>
    "tpu.trace_stop"() : () -> ()
    %cst_47 = arith.constant dense<0xFF800000> : vector<1x8xf32>
    %116 = vector.multi_reduction <maximumf>, %115, %cst_47 [2] : vector<1x8x16xf32> to vector<1x8xf32>
    %117 = vector.shape_cast %116 : vector<1x8xf32> to vector<1x8x1xf32>
    %118 = vector.broadcast %117 : vector<1x8x1xf32> to vector<1x8x16xf32>
    %119 = arith.subf %115, %118 : vector<1x8x16xf32>
    %120 = math.exp %119 : vector<1x8x16xf32>
    %cst_48 = arith.constant dense<0.000000e+00> : vector<1x8xf32>
    %121 = vector.multi_reduction <add>, %120, %cst_48 [2] : vector<1x8x16xf32> to vector<1x8xf32>
    %122 = vector.shape_cast %121 : vector<1x8xf32> to vector<1x8x1xf32>
    %123 = tpu.reciprocal %122 {approx = true} : vector<1x8x1xf32> -> vector<1x8x1xf32>
    %124 = vector.broadcast %123 : vector<1x8x1xf32> to vector<1x8x16xf32>
    %125 = arith.mulf %120, %124 : vector<1x8x16xf32>
    %126 = arith.truncf %125 : vector<1x8x16xf32> to vector<1x8x16xbf16>
    "tpu.trace_start"() <{level = 10 : i32, message = "bqk,bkd->bqd"}> : () -> ()
    %cst_49 = arith.constant dense<0.000000e+00> : vector<1x8x4xf32>
    %127 = tpu.matmul %126, %114, %cst_49 {dimension_numbers = #tpu.dot_dimension_numbers<[2], [1], [1], [2], [0, 0, 0, 1, 1, 2], [0], [0]>} : vector<1x8x16xbf16>, vector<1x16x4xbf16>, vector<1x8x4xf32> -> vector<1x8x4xf32>
    "tpu.trace_stop"() : () -> ()
    %128 = vector.shape_cast %127 : vector<1x8x4xf32> to vector<8x4xf32>
    %129 = arith.truncf %128 : vector<8x4xf32> to vector<8x4xbf16>
    %c4 = arith.constant 4 : index
    %c0_50 = arith.constant 0 : index
    %c0_51 = arith.constant 0 : index
    %130 = vector.load %arg6[%c4, %c0_50, %c0_51] : memref<8x4x32xbf16, #tpu.memory_space<vmem>>, vector<1x4x32xbf16>
    %131 = vector.shape_cast %130 : vector<1x4x32xbf16> to vector<4x32xbf16>
    %cst_52 = arith.constant dense<0.000000e+00> : vector<8x32xf32>
    %132 = tpu.matmul %129, %131, %cst_52 {dimension_numbers = #tpu.dot_dimension_numbers<[1], [0], [0], [1], [0, 0, 1, 1], [], []>} : vector<8x4xbf16>, vector<4x32xbf16>, vector<8x32xf32> -> vector<8x32xf32>
    %133 = arith.addf %111, %132 : vector<8x32xf32>
    %134 = vector.extract_strided_slice %20 {offsets = [0, 0, 20], sizes = [1, 8, 4], strides = [1, 1, 1]} : vector<1x8x32xbf16> to vector<1x8x4xbf16>
    %135 = vector.extract_strided_slice %22 {offsets = [0, 0, 20], sizes = [1, 16, 4], strides = [1, 1, 1]} : vector<1x16x32xbf16> to vector<1x16x4xbf16>
    %136 = vector.extract_strided_slice %24 {offsets = [0, 0, 20], sizes = [1, 16, 4], strides = [1, 1, 1]} : vector<1x16x32xbf16> to vector<1x16x4xbf16>
    "tpu.trace_start"() <{level = 10 : i32, message = "bqd,bkd->bqk"}> : () -> ()
    %cst_53 = arith.constant dense<0.000000e+00> : vector<1x8x16xf32>
    %137 = tpu.matmul %134, %135, %cst_53 {dimension_numbers = #tpu.dot_dimension_numbers<[2], [2], [1], [1], [0, 0, 0, 1, 1, 1], [0], [0]>} : vector<1x8x4xbf16>, vector<1x16x4xbf16>, vector<1x8x16xf32> -> vector<1x8x16xf32>
    "tpu.trace_stop"() : () -> ()
    %cst_54 = arith.constant dense<0xFF800000> : vector<1x8xf32>
    %138 = vector.multi_reduction <maximumf>, %137, %cst_54 [2] : vector<1x8x16xf32> to vector<1x8xf32>
    %139 = vector.shape_cast %138 : vector<1x8xf32> to vector<1x8x1xf32>
    %140 = vector.broadcast %139 : vector<1x8x1xf32> to vector<1x8x16xf32>
    %141 = arith.subf %137, %140 : vector<1x8x16xf32>
    %142 = math.exp %141 : vector<1x8x16xf32>
    %cst_55 = arith.constant dense<0.000000e+00> : vector<1x8xf32>
    %143 = vector.multi_reduction <add>, %142, %cst_55 [2] : vector<1x8x16xf32> to vector<1x8xf32>
    %144 = vector.shape_cast %143 : vector<1x8xf32> to vector<1x8x1xf32>
    %145 = tpu.reciprocal %144 {approx = true} : vector<1x8x1xf32> -> vector<1x8x1xf32>
    %146 = vector.broadcast %145 : vector<1x8x1xf32> to vector<1x8x16xf32>
    %147 = arith.mulf %142, %146 : vector<1x8x16xf32>
    %148 = arith.truncf %147 : vector<1x8x16xf32> to vector<1x8x16xbf16>
    "tpu.trace_start"() <{level = 10 : i32, message = "bqk,bkd->bqd"}> : () -> ()
    %cst_56 = arith.constant dense<0.000000e+00> : vector<1x8x4xf32>
    %149 = tpu.matmul %148, %136, %cst_56 {dimension_numbers = #tpu.dot_dimension_numbers<[2], [1], [1], [2], [0, 0, 0, 1, 1, 2], [0], [0]>} : vector<1x8x16xbf16>, vector<1x16x4xbf16>, vector<1x8x4xf32> -> vector<1x8x4xf32>
    "tpu.trace_stop"() : () -> ()
    %150 = vector.shape_cast %149 : vector<1x8x4xf32> to vector<8x4xf32>
    %151 = arith.truncf %150 : vector<8x4xf32> to vector<8x4xbf16>
    %c5 = arith.constant 5 : index
    %c0_57 = arith.constant 0 : index
    %c0_58 = arith.constant 0 : index
    %152 = vector.load %arg6[%c5, %c0_57, %c0_58] : memref<8x4x32xbf16, #tpu.memory_space<vmem>>, vector<1x4x32xbf16>
    %153 = vector.shape_cast %152 : vector<1x4x32xbf16> to vector<4x32xbf16>
    %cst_59 = arith.constant dense<0.000000e+00> : vector<8x32xf32>
    %154 = tpu.matmul %151, %153, %cst_59 {dimension_numbers = #tpu.dot_dimension_numbers<[1], [0], [0], [1], [0, 0, 1, 1], [], []>} : vector<8x4xbf16>, vector<4x32xbf16>, vector<8x32xf32> -> vector<8x32xf32>
    %155 = arith.addf %133, %154 : vector<8x32xf32>
    %156 = vector.extract_strided_slice %20 {offsets = [0, 0, 24], sizes = [1, 8, 4], strides = [1, 1, 1]} : vector<1x8x32xbf16> to vector<1x8x4xbf16>
    %157 = vector.extract_strided_slice %22 {offsets = [0, 0, 24], sizes = [1, 16, 4], strides = [1, 1, 1]} : vector<1x16x32xbf16> to vector<1x16x4xbf16>
    %158 = vector.extract_strided_slice %24 {offsets = [0, 0, 24], sizes = [1, 16, 4], strides = [1, 1, 1]} : vector<1x16x32xbf16> to vector<1x16x4xbf16>
    "tpu.trace_start"() <{level = 10 : i32, message = "bqd,bkd->bqk"}> : () -> ()
    %cst_60 = arith.constant dense<0.000000e+00> : vector<1x8x16xf32>
    %159 = tpu.matmul %156, %157, %cst_60 {dimension_numbers = #tpu.dot_dimension_numbers<[2], [2], [1], [1], [0, 0, 0, 1, 1, 1], [0], [0]>} : vector<1x8x4xbf16>, vector<1x16x4xbf16>, vector<1x8x16xf32> -> vector<1x8x16xf32>
    "tpu.trace_stop"() : () -> ()
    %cst_61 = arith.constant dense<0xFF800000> : vector<1x8xf32>
    %160 = vector.multi_reduction <maximumf>, %159, %cst_61 [2] : vector<1x8x16xf32> to vector<1x8xf32>
    %161 = vector.shape_cast %160 : vector<1x8xf32> to vector<1x8x1xf32>
    %162 = vector.broadcast %161 : vector<1x8x1xf32> to vector<1x8x16xf32>
    %163 = arith.subf %159, %162 : vector<1x8x16xf32>
    %164 = math.exp %163 : vector<1x8x16xf32>
    %cst_62 = arith.constant dense<0.000000e+00> : vector<1x8xf32>
    %165 = vector.multi_reduction <add>, %164, %cst_62 [2] : vector<1x8x16xf32> to vector<1x8xf32>
    %166 = vector.shape_cast %165 : vector<1x8xf32> to vector<1x8x1xf32>
    %167 = tpu.reciprocal %166 {approx = true} : vector<1x8x1xf32> -> vector<1x8x1xf32>
    %168 = vector.broadcast %167 : vector<1x8x1xf32> to vector<1x8x16xf32>
    %169 = arith.mulf %164, %168 : vector<1x8x16xf32>
    %170 = arith.truncf %169 : vector<1x8x16xf32> to vector<1x8x16xbf16>
    "tpu.trace_start"() <{level = 10 : i32, message = "bqk,bkd->bqd"}> : () -> ()
    %cst_63 = arith.constant dense<0.000000e+00> : vector<1x8x4xf32>
    %171 = tpu.matmul %170, %158, %cst_63 {dimension_numbers = #tpu.dot_dimension_numbers<[2], [1], [1], [2], [0, 0, 0, 1, 1, 2], [0], [0]>} : vector<1x8x16xbf16>, vector<1x16x4xbf16>, vector<1x8x4xf32> -> vector<1x8x4xf32>
    "tpu.trace_stop"() : () -> ()
    %172 = vector.shape_cast %171 : vector<1x8x4xf32> to vector<8x4xf32>
    %173 = arith.truncf %172 : vector<8x4xf32> to vector<8x4xbf16>
    %c6 = arith.constant 6 : index
    %c0_64 = arith.constant 0 : index
    %c0_65 = arith.constant 0 : index
    %174 = vector.load %arg6[%c6, %c0_64, %c0_65] : memref<8x4x32xbf16, #tpu.memory_space<vmem>>, vector<1x4x32xbf16>
    %175 = vector.shape_cast %174 : vector<1x4x32xbf16> to vector<4x32xbf16>
    %cst_66 = arith.constant dense<0.000000e+00> : vector<8x32xf32>
    %176 = tpu.matmul %173, %175, %cst_66 {dimension_numbers = #tpu.dot_dimension_numbers<[1], [0], [0], [1], [0, 0, 1, 1], [], []>} : vector<8x4xbf16>, vector<4x32xbf16>, vector<8x32xf32> -> vector<8x32xf32>
    %177 = arith.addf %155, %176 : vector<8x32xf32>
    %178 = vector.extract_strided_slice %20 {offsets = [0, 0, 28], sizes = [1, 8, 4], strides = [1, 1, 1]} : vector<1x8x32xbf16> to vector<1x8x4xbf16>
    %179 = vector.extract_strided_slice %22 {offsets = [0, 0, 28], sizes = [1, 16, 4], strides = [1, 1, 1]} : vector<1x16x32xbf16> to vector<1x16x4xbf16>
    %180 = vector.extract_strided_slice %24 {offsets = [0, 0, 28], sizes = [1, 16, 4], strides = [1, 1, 1]} : vector<1x16x32xbf16> to vector<1x16x4xbf16>
    "tpu.trace_start"() <{level = 10 : i32, message = "bqd,bkd->bqk"}> : () -> ()
    %cst_67 = arith.constant dense<0.000000e+00> : vector<1x8x16xf32>
    %181 = tpu.matmul %178, %179, %cst_67 {dimension_numbers = #tpu.dot_dimension_numbers<[2], [2], [1], [1], [0, 0, 0, 1, 1, 1], [0], [0]>} : vector<1x8x4xbf16>, vector<1x16x4xbf16>, vector<1x8x16xf32> -> vector<1x8x16xf32>
    "tpu.trace_stop"() : () -> ()
    %cst_68 = arith.constant dense<0xFF800000> : vector<1x8xf32>
    %182 = vector.multi_reduction <maximumf>, %181, %cst_68 [2] : vector<1x8x16xf32> to vector<1x8xf32>
    %183 = vector.shape_cast %182 : vector<1x8xf32> to vector<1x8x1xf32>
    %184 = vector.broadcast %183 : vector<1x8x1xf32> to vector<1x8x16xf32>
    %185 = arith.subf %181, %184 : vector<1x8x16xf32>
    %186 = math.exp %185 : vector<1x8x16xf32>
    %cst_69 = arith.constant dense<0.000000e+00> : vector<1x8xf32>
    %187 = vector.multi_reduction <add>, %186, %cst_69 [2] : vector<1x8x16xf32> to vector<1x8xf32>
    %188 = vector.shape_cast %187 : vector<1x8xf32> to vector<1x8x1xf32>
    %189 = tpu.reciprocal %188 {approx = true} : vector<1x8x1xf32> -> vector<1x8x1xf32>
    %190 = vector.broadcast %189 : vector<1x8x1xf32> to vector<1x8x16xf32>
    %191 = arith.mulf %186, %190 : vector<1x8x16xf32>
    %192 = arith.truncf %191 : vector<1x8x16xf32> to vector<1x8x16xbf16>
    "tpu.trace_start"() <{level = 10 : i32, message = "bqk,bkd->bqd"}> : () -> ()
    %cst_70 = arith.constant dense<0.000000e+00> : vector<1x8x4xf32>
    %193 = tpu.matmul %192, %180, %cst_70 {dimension_numbers = #tpu.dot_dimension_numbers<[2], [1], [1], [2], [0, 0, 0, 1, 1, 2], [0], [0]>} : vector<1x8x16xbf16>, vector<1x16x4xbf16>, vector<1x8x4xf32> -> vector<1x8x4xf32>
    "tpu.trace_stop"() : () -> ()
    %194 = vector.shape_cast %193 : vector<1x8x4xf32> to vector<8x4xf32>
    %195 = arith.truncf %194 : vector<8x4xf32> to vector<8x4xbf16>
    %c7 = arith.constant 7 : index
    %c0_71 = arith.constant 0 : index
    %c0_72 = arith.constant 0 : index
    %196 = vector.load %arg6[%c7, %c0_71, %c0_72] : memref<8x4x32xbf16, #tpu.memory_space<vmem>>, vector<1x4x32xbf16>
    %197 = vector.shape_cast %196 : vector<1x4x32xbf16> to vector<4x32xbf16>
    %cst_73 = arith.constant dense<0.000000e+00> : vector<8x32xf32>
    %198 = tpu.matmul %195, %197, %cst_73 {dimension_numbers = #tpu.dot_dimension_numbers<[1], [0], [0], [1], [0, 0, 1, 1], [], []>} : vector<8x4xbf16>, vector<4x32xbf16>, vector<8x32xf32> -> vector<8x32xf32>
    %199 = arith.addf %177, %198 : vector<8x32xf32>
    %c0_74 = arith.constant 0 : index
    %c0_75 = arith.constant 0 : index
    %200 = vector.load %arg10[%c0_74, %c0_75] : memref<1x32xf32, #tpu.memory_space<vmem>>, vector<1x32xf32>
    %201 = vector.broadcast %200 : vector<1x32xf32> to vector<8x32xf32>
    %202 = arith.addf %199, %201 : vector<8x32xf32>
    %cst_76 = arith.constant dense<0.000000e+00> : vector<8xf32>
    %203 = vector.multi_reduction <add>, %202, %cst_76 [1] : vector<8x32xf32> to vector<8xf32>
    %204 = vector.shape_cast %203 : vector<8xf32> to vector<8x1xf32>
    %cst_77 = arith.constant 3.200000e+01 : f32
    %205 = vector.broadcast %cst_77 : f32 to vector<8x1xf32>
    %206 = arith.divf %204, %205 : vector<8x1xf32>
    %207 = vector.broadcast %206 : vector<8x1xf32> to vector<8x32xf32>
    %208 = arith.subf %202, %207 : vector<8x32xf32>
    %209 = arith.mulf %208, %208 : vector<8x32xf32>
    %cst_78 = arith.constant dense<0.000000e+00> : vector<8xf32>
    %210 = vector.multi_reduction <add>, %209, %cst_78 [1] : vector<8x32xf32> to vector<8xf32>
    %211 = vector.shape_cast %210 : vector<8xf32> to vector<8x1xf32>
    %cst_79 = arith.constant 3.200000e+01 : f32
    %212 = vector.broadcast %cst_79 : f32 to vector<8x1xf32>
    %213 = arith.divf %211, %212 : vector<8x1xf32>
    %214 = vector.broadcast %206 : vector<8x1xf32> to vector<8x32xf32>
    %215 = arith.subf %202, %214 : vector<8x32xf32>
    %cst_80 = arith.constant 9.99999974E-6 : f32
    %216 = vector.broadcast %cst_80 : f32 to vector<8x1xf32>
    %217 = arith.addf %213, %216 : vector<8x1xf32>
    %218 = math.rsqrt %217 : vector<8x1xf32>
    %219 = vector.broadcast %218 : vector<8x1xf32> to vector<8x32xf32>
    %220 = arith.mulf %215, %219 : vector<8x32xf32>
    %c0_81 = arith.constant 0 : index
    %c0_82 = arith.constant 0 : index
    %221 = vector.load %arg11[%c0_81, %c0_82] : memref<1x32xf32, #tpu.memory_space<vmem>>, vector<1x32xf32>
    %222 = vector.broadcast %221 : vector<1x32xf32> to vector<8x32xf32>
    %223 = arith.mulf %220, %222 : vector<8x32xf32>
    %c0_83 = arith.constant 0 : index
    %c0_84 = arith.constant 0 : index
    %224 = vector.load %arg12[%c0_83, %c0_84] : memref<1x32xf32, #tpu.memory_space<vmem>>, vector<1x32xf32>
    %225 = vector.broadcast %224 : vector<1x32xf32> to vector<8x32xf32>
    %226 = arith.addf %223, %225 : vector<8x32xf32>
    %227 = arith.truncf %226 : vector<8x32xf32> to vector<8x32xbf16>
    %c0_85 = arith.constant 0 : index
    %c0_86 = arith.constant 0 : index
    %228 = vector.load %arg13[%c0_85, %c0_86] : memref<32x128xbf16, #tpu.memory_space<vmem>>, vector<32x128xbf16>
    %cst_87 = arith.constant dense<0.000000e+00> : vector<8x128xf32>
    %229 = tpu.matmul %227, %228, %cst_87 {dimension_numbers = #tpu.dot_dimension_numbers<[1], [0], [0], [1], [0, 0, 1, 1], [], []>} : vector<8x32xbf16>, vector<32x128xbf16>, vector<8x128xf32> -> vector<8x128xf32>
    %c0_88 = arith.constant 0 : index
    %c0_89 = arith.constant 0 : index
    %230 = vector.load %arg14[%c0_88, %c0_89] : memref<1x128xf32, #tpu.memory_space<vmem>>, vector<1x128xf32>
    %231 = vector.broadcast %230 : vector<1x128xf32> to vector<8x128xf32>
    %232 = arith.addf %229, %231 : vector<8x128xf32>
    %cst_90 = arith.constant 5.000000e-01 : f32
    %233 = vector.broadcast %cst_90 : f32 to vector<8x128xf32>
    %234 = arith.mulf %233, %232 : vector<8x128xf32>
    %cst_91 = arith.constant 0.707106769 : f32
    %235 = vector.broadcast %cst_91 : f32 to vector<8x128xf32>
    %236 = arith.mulf %232, %235 : vector<8x128xf32>
    %237 = math.erf %236 : vector<8x128xf32>
    %cst_92 = arith.constant 1.000000e+00 : f32
    %238 = vector.broadcast %cst_92 : f32 to vector<8x128xf32>
    %239 = arith.addf %238, %237 : vector<8x128xf32>
    %240 = arith.mulf %234, %239 : vector<8x128xf32>
    %241 = arith.truncf %240 : vector<8x128xf32> to vector<8x128xbf16>
    %c0_93 = arith.constant 0 : index
    %c0_94 = arith.constant 0 : index
    %242 = vector.load %arg15[%c0_93, %c0_94] : memref<128x32xbf16, #tpu.memory_space<vmem>>, vector<128x32xbf16>
    %cst_95 = arith.constant dense<0.000000e+00> : vector<8x32xf32>
    %243 = tpu.matmul %241, %242, %cst_95 {dimension_numbers = #tpu.dot_dimension_numbers<[1], [0], [0], [1], [0, 0, 1, 1], [], []>} : vector<8x128xbf16>, vector<128x32xbf16>, vector<8x32xf32> -> vector<8x32xf32>
    %c0_96 = arith.constant 0 : index
    %c0_97 = arith.constant 0 : index
    %244 = vector.load %arg16[%c0_96, %c0_97] : memref<1x32xf32, #tpu.memory_space<vmem>>, vector<1x32xf32>
    %245 = vector.broadcast %244 : vector<1x32xf32> to vector<8x32xf32>
    %246 = arith.addf %243, %245 : vector<8x32xf32>
    %247 = arith.addf %226, %246 : vector<8x32xf32>
    %cst_98 = arith.constant dense<0.000000e+00> : vector<8xf32>
    %248 = vector.multi_reduction <add>, %247, %cst_98 [1] : vector<8x32xf32> to vector<8xf32>
    %249 = vector.shape_cast %248 : vector<8xf32> to vector<8x1xf32>
    %cst_99 = arith.constant 3.200000e+01 : f32
    %250 = vector.broadcast %cst_99 : f32 to vector<8x1xf32>
    %251 = arith.divf %249, %250 : vector<8x1xf32>
    %252 = vector.broadcast %251 : vector<8x1xf32> to vector<8x32xf32>
    %253 = arith.subf %247, %252 : vector<8x32xf32>
    %254 = arith.mulf %253, %253 : vector<8x32xf32>
    %cst_100 = arith.constant dense<0.000000e+00> : vector<8xf32>
    %255 = vector.multi_reduction <add>, %254, %cst_100 [1] : vector<8x32xf32> to vector<8xf32>
    %256 = vector.shape_cast %255 : vector<8xf32> to vector<8x1xf32>
    %cst_101 = arith.constant 3.200000e+01 : f32
    %257 = vector.broadcast %cst_101 : f32 to vector<8x1xf32>
    %258 = arith.divf %256, %257 : vector<8x1xf32>
    %259 = vector.broadcast %251 : vector<8x1xf32> to vector<8x32xf32>
    %260 = arith.subf %247, %259 : vector<8x32xf32>
    %cst_102 = arith.constant 9.99999974E-6 : f32
    %261 = vector.broadcast %cst_102 : f32 to vector<8x1xf32>
    %262 = arith.addf %258, %261 : vector<8x1xf32>
    %263 = math.rsqrt %262 : vector<8x1xf32>
    %264 = vector.broadcast %263 : vector<8x1xf32> to vector<8x32xf32>
    %265 = arith.mulf %260, %264 : vector<8x32xf32>
    %c0_103 = arith.constant 0 : index
    %c0_104 = arith.constant 0 : index
    %266 = vector.load %arg17[%c0_103, %c0_104] : memref<1x32xf32, #tpu.memory_space<vmem>>, vector<1x32xf32>
    %267 = vector.broadcast %266 : vector<1x32xf32> to vector<8x32xf32>
    %268 = arith.mulf %265, %267 : vector<8x32xf32>
    %c0_105 = arith.constant 0 : index
    %c0_106 = arith.constant 0 : index
    %269 = vector.load %arg18[%c0_105, %c0_106] : memref<1x32xf32, #tpu.memory_space<vmem>>, vector<1x32xf32>
    %270 = vector.broadcast %269 : vector<1x32xf32> to vector<8x32xf32>
    %271 = arith.addf %268, %270 : vector<8x32xf32>
    %c0_107 = arith.constant 0 : index
    %c0_108 = arith.constant 0 : index
    %272 = vector.load %arg19[%c0_107, %c0_108] : memref<8x32xf32, #tpu.memory_space<vmem>>, vector<8x32xf32>
    tpu.vector_store %arg19[%c0_107, %c0_108], %271 {strides = array<i32>} : memref<8x32xf32, #tpu.memory_space<vmem>>, vector<8x32xf32>,
    return
  }
  func.func @transform_0(%arg0: i32) -> (i32, i32) {
    %c0_i32 = arith.constant 0 : i32
    %c0_i32_0 = arith.constant 0 : i32
    return %arg0, %c0_i32 : i32, i32
  }
  func.func @transform_1(%arg0: i32) -> (i32, i32) {
    %c0_i32 = arith.constant 0 : i32
    %c0_i32_0 = arith.constant 0 : i32
    return %arg0, %c0_i32 : i32, i32
  }
  func.func @transform_2(%arg0: i32) -> (i32, i32) {
    %c0_i32 = arith.constant 0 : i32
    %c0_i32_0 = arith.constant 0 : i32
    %c0_i32_1 = arith.constant 0 : i32
    return %c0_i32, %c0_i32_0 : i32, i32
  }
  func.func @transform_3(%arg0: i32) -> (i32, i32) {
    %c0_i32 = arith.constant 0 : i32
    %c0_i32_0 = arith.constant 0 : i32
    %c0_i32_1 = arith.constant 0 : i32
    return %c0_i32, %c0_i32_0 : i32, i32
  }
  func.func @transform_4(%arg0: i32) -> (i32, i32) {
    %c0_i32 = arith.constant 0 : i32
    %c0_i32_0 = arith.constant 0 : i32
    %c0_i32_1 = arith.constant 0 : i32
    return %c0_i32, %c0_i32_0 : i32, i32
  }
  func.func @transform_5(%arg0: i32) -> (i32, i32, i32) {
    %c0_i32 = arith.constant 0 : i32
    %c0_i32_0 = arith.constant 0 : i32
    %c0_i32_1 = arith.constant 0 : i32
    %c0_i32_2 = arith.constant 0 : i32
    return %c0_i32, %c0_i32_0, %c0_i32_1 : i32, i32, i32
  }
  func.func @transform_6(%arg0: i32) -> (i32, i32) {
    %c0_i32 = arith.constant 0 : i32
    %c0_i32_0 = arith.constant 0 : i32
    %c0_i32_1 = arith.constant 0 : i32
    return %c0_i32, %c0_i32_0 : i32, i32
  }
  func.func @transform_7(%arg0: i32) -> (i32, i32) {
    %c0_i32 = arith.constant 0 : i32
    %c0_i32_0 = arith.constant 0 : i32
    %c0_i32_1 = arith.constant 0 : i32
    return %c0_i32, %c0_i32_0 : i32, i32
  }
  func.func @transform_8(%arg0: i32) -> (i32, i32) {
    %c0_i32 = arith.constant 0 : i32
    %c0_i32_0 = arith.constant 0 : i32
    %c0_i32_1 = arith.constant 0 : i32
    return %c0_i32, %c0_i32_0 : i32, i32
  }
  func.func @transform_9(%arg0: i32) -> (i32, i32) {
    %c0_i32 = arith.constant 0 : i32
    %c0_i32_0 = arith.constant 0 : i32
    %c0_i32_1 = arith.constant 0 : i32
    return %c0_i32, %c0_i32_0 : i32, i32
  }
  func.func @transform_10(%arg0: i32) -> (i32, i32) {
    %c0_i32 = arith.constant 0 : i32
    %c0_i32_0 = arith.constant 0 : i32
    %c0_i32_1 = arith.constant 0 : i32
    return %c0_i32, %c0_i32_0 : i32, i32
  }
  func.func @transform_11(%arg0: i32) -> (i32, i32) {
    %c0_i32 = arith.constant 0 : i32
    %c0_i32_0 = arith.constant 0 : i32
    %c0_i32_1 = arith.constant 0 : i32
    return %c0_i32, %c0_i32_0 : i32, i32
  }
  func.func @transform_12(%arg0: i32) -> (i32, i32) {
    %c0_i32 = arith.constant 0 : i32
    %c0_i32_0 = arith.constant 0 : i32
    %c0_i32_1 = arith.constant 0 : i32
    return %c0_i32, %c0_i32_0 : i32, i32
  }
  func.func @transform_13(%arg0: i32) -> (i32, i32) {
    %c0_i32 = arith.constant 0 : i32
    %c0_i32_0 = arith.constant 0 : i32
    %c0_i32_1 = arith.constant 0 : i32
    return %c0_i32, %c0_i32_0 : i32, i32
  }
  func.func @transform_14(%arg0: i32) -> (i32, i32) {
    %c0_i32 = arith.constant 0 : i32
    %c0_i32_0 = arith.constant 0 : i32
    %c0_i32_1 = arith.constant 0 : i32
    return %c0_i32, %c0_i32_0 : i32, i32
  }
  func.func @transform_15(%arg0: i32) -> (i32, i32) {
    %c0_i32 = arith.constant 0 : i32
    %c0_i32_0 = arith.constant 0 : i32
    %c0_i32_1 = arith.constant 0 : i32
    return %c0_i32, %c0_i32_0 : i32, i32
  }
  func.func @transform_16(%arg0: i32) -> (i32, i32) {
    %c0_i32 = arith.constant 0 : i32
    %c0_i32_0 = arith.constant 0 : i32
    %c0_i32_1 = arith.constant 0 : i32
    return %c0_i32, %c0_i32_0 : i32, i32
  }
  func.func @transform_17(%arg0: i32) -> (i32, i32) {
    %c0_i32 = arith.constant 0 : i32
    %c0_i32_0 = arith.constant 0 : i32
    %c0_i32_1 = arith.constant 0 : i32
    return %c0_i32, %c0_i32_0 : i32, i32
  }
  func.func @transform_18(%arg0: i32) -> (i32, i32) {
    %c0_i32 = arith.constant 0 : i32
    %c0_i32_0 = arith.constant 0 : i32
    return %arg0, %c0_i32 : i32, i32
  }
}

</mosaic_0001>

<llo_original>
// kernel: tpu_custom_call.1
$region0: #{tpu_custom_call.1}
  #allocation0 [shape = 'u32[]', space=smem, size = 0x4, offset = 0x4, fixed_abs, tag = 'smem constant byte address 0x4 - core index']
  #allocation1 [shape = 'u32[144,128]{1,0:T(1,128)}', space=vmem, size = 0x12000, scoped, tag = 'internal scratch']
  %s0 = inlined_call_operand.vmem [shape: f32[16,32], index: 0, kind: input, shape index: {}]
  %s1 = inlined_call_operand.vmem [shape: f32[32,32], index: 1, kind: input, shape index: {}]
  %s2 = inlined_call_operand.vmem [shape: bf16[32,32], index: 2, kind: input, shape index: {}]
  %s3 = inlined_call_operand.vmem [shape: bf16[32,32], index: 3, kind: input, shape index: {}]
  %s4 = inlined_call_operand.hbm [shape: bf16[32,32], index: 4, kind: input, shape index: {}]
  %s5 = inlined_call_operand.hbm [shape: bf16[8,4,32], index: 5, kind: input, shape index: {}]
  %s6 = inlined_call_operand.vmem [shape: f32[1,32], index: 6, kind: input, shape index: {}]
  %s7 = inlined_call_operand.vmem [shape: f32[1,32], index: 7, kind: input, shape index: {}]
  %s8 = inlined_call_operand.hbm [shape: f32[1,32], index: 8, kind: input, shape index: {}]
  %s9 = inlined_call_operand.hbm [shape: f32[1,32], index: 9, kind: input, shape index: {}]
  %s10 = inlined_call_operand.vmem [shape: f32[1,32], index: 10, kind: input, shape index: {}]
  %s11 = inlined_call_operand.vmem [shape: f32[1,32], index: 11, kind: input, shape index: {}]
  %s12 = inlined_call_operand.vmem [shape: bf16[32,128], index: 12, kind: input, shape index: {}]
  %s13 = inlined_call_operand.vmem [shape: f32[1,128], index: 13, kind: input, shape index: {}]
  %s14 = inlined_call_operand.vmem [shape: bf16[128,32], index: 14, kind: input, shape index: {}]
  %s15 = inlined_call_operand.vmem [shape: f32[1,32], index: 15, kind: input, shape index: {}]
  %s16 = inlined_call_operand.vmem [shape: f32[1,32], index: 16, kind: input, shape index: {}]
  %s17 = inlined_call_operand.vmem [shape: f32[1,32], index: 17, kind: input, shape index: {}]
  %s18 = inlined_call_operand.hbm [shape: f32[16,32], index: 18, kind: output, shape index: {}]
  %s19 = sld [smem:[#allocation0]]
  $region121: #{tpu_custom_call.1} parent=0
    _
  %s21 = ssub.s32 1, %s19
  %s22 = scalar_select 0, %s21, %s19
  $region1: #{tpu_custom_call.1} parent=0
    #allocation2 [shape = 'u8[8192]{0}', space=vmem, size = 0x2000, scoped, tag = 'input window, operand 4, single buffered']
    #allocation3 [shape = 's32[2]{0}', space=sflag, size = 0x8, scoped, tag = 'scoped memory for tpu_custom_call.1']
    #allocation4 [shape = 's32[2]{0}', space=sflag, size = 0x8, scoped, tag = 'scoped memory for tpu_custom_call.1']
    #allocation5 [shape = 'u8[8192]{0}', space=vmem, size = 0x2000, scoped, tag = 'input window, operand 5, single buffered']
    #allocation6 [shape = 's32[1]{0}', space=sflag, size = 0x4, scoped, tag = 'scoped memory for tpu_custom_call.1']
    #allocation7 [shape = 'u8[512]{0}', space=vmem, size = 0x400, scoped, tag = 'input window, operand 8, single buffered']
    #allocation8 [shape = 'u8[512]{0}', space=vmem, size = 0x400, scoped, tag = 'input window, operand 9, single buffered']
    #allocation9 [shape = 's32[1]{0}', space=sflag, size = 0x4, scoped, tag = 'scoped memory for tpu_custom_call.1']
    #allocation10 [shape = 'u8[8192]{0}', space=vmem, size = 0x2000, scoped, tag = 'output window, operand 0']
    %23 = vsyncpa [#allocation3], 0
    %24 = vsyncpa [#allocation6], 0
    %25 = vsyncpa [#allocation9], 0
    %26 = vsyncpa [#allocation4], 0
    %s27 = scalar_lea.sflag [#allocation4], 1
    %28 = vsyncpa %s27, 0
    loop: start=0, step=1, limit=4
    $region2: #{tpu_custom_call.1} parent=1 // loop_pre_header
      _
    $region3: #{tpu_custom_call.1} parent=1 // loop_header
      %s30 = sphi 0, %s34
      %p31 = scmp.ge.s32.totalorder %s30, 4
      %s40 = sphi 0, %s42
      %s43 = sphi 0, %s40
      %s44 = sphi 0, %s43
      %s60 = sphi 0, %s44
      %s66 = sphi 0, %s68
      %s69 = sphi 0, %s66
      %s70 = sphi 0, %s69
      %s86 = sphi 0, %s70
      %s90 = sphi 0, %s90
      %s92 = sphi 0, %s90
      %s93 = sphi 0, %s92
      %s107 = sphi 0, %s93
      %s111 = sphi 0, %s111
      %s113 = sphi 0, %s111
      %s114 = sphi 0, %s113
      %s128 = sphi 0, %s114
      %s132 = sphi 0, %s132
      %s134 = sphi 0, %s132
      %s135 = sphi 0, %s134
      %s149 = sphi 0, %s135
      %s153 = sphi 0, %s153
      %s155 = sphi 0, %s153
      %s156 = sphi 0, %s155
      %s170 = sphi 0, %s156
      %s174 = sphi 0, %s174
      %s176 = sphi 0, %s174
      %s177 = sphi 0, %s176
      %s191 = sphi 0, %s177
      %s195 = sphi 0, %s195
      %s197 = sphi 0, %s195
      %s198 = sphi 0, %s197
      %s212 = sphi 0, %s198
      %s216 = sphi 0, %s216
      %s218 = sphi 0, %s216
      %s219 = sphi 0, %s218
      %s233 = sphi 0, %s219
      %s237 = sphi 0, %s237
      %s239 = sphi 0, %s237
      %s240 = sphi 0, %s239
      %s254 = sphi 0, %s240
      %s258 = sphi 0, %s258
      %s260 = sphi 0, %s258
      %s261 = sphi 0, %s260
      %s275 = sphi 0, %s261
      %s279 = sphi 0, %s279
      %s281 = sphi 0, %s279
      %s282 = sphi 0, %s281
      %s296 = sphi 0, %s282
      %s300 = sphi 0, %s300
      %s302 = sphi 0, %s300
      %s303 = sphi 0, %s302
      %s317 = sphi 0, %s303
      %s321 = sphi 0, %s321
      %s323 = sphi 0, %s321
      %s324 = sphi 0, %s323
      %s338 = sphi 0, %s324
      %s342 = sphi 0, %s342
      %s344 = sphi 0, %s342
      %s345 = sphi 0, %s344
      %s359 = sphi 0, %s345
      %s363 = sphi 0, %s363
      %s365 = sphi 0, %s363
      %s366 = sphi 0, %s365
      %s380 = sphi 0, %s366
      %s384 = sphi 0, %s384
      %s386 = sphi 0, %s384
      %s387 = sphi 0, %s386
      %s401 = sphi 0, %s387
      %s405 = sphi 0, %s405
      %s407 = sphi 0, %s405
      %s408 = sphi 0, %s407
      %s422 = sphi 0, %s408
      %s428 = sphi 0, %s430
      %s431 = sphi 0, %s428
      %s432 = sphi 0, %s431
      %s448 = sphi 0, %s432
    $region4: #{tpu_custom_call.1} parent=1 // loop_header_branch
      %33 = sbr.rel (%p31) target = $region8
    $region5: #{tpu_custom_call.1} parent=1 // loop_body
      %s35 = ssub.s32 %s30, 1
      %s36 = ssub.s32 %s30, 2
      %s37 = sadd.s32 %s30, 1
      %s38 = ssub.s32 %s30, %s37
      %p39 = scmp.eq.s32.totalorder %s38, 0
      %s41 = sadd.s32 %s40, 1
      %s42 = scalar_select %p39, %s40, %s41
      %p45 = pneg %p39
      %p46 = scmp.eq.s32.totalorder %s30, 1
      %p47 = por %p45, %p46
      %p48 = scmp.ne.s32.totalorder %s40, %s43
      %p49 = scmp.eq.s32.totalorder %s30, 0
      %p50 = por %p48, %p49
      %p51 = scmp.ne.s32.totalorder %s40, %s43
      %p52 = scmp.eq.s32.totalorder %s35, 1
      %p53 = por %p51, %p52
      %p54 = scmp.ne.s32.totalorder %s43, %s44
      %p55 = scmp.eq.s32.totalorder %s35, 0
      %p56 = por %p54, %p55
      %p57 = scmp.ne.s32.totalorder %s43, %s44
      %p58 = scmp.eq.s32.totalorder %s36, 1
      %p59 = por %p57, %p58
      %p61 = scmp.ne.s32.totalorder %s44, %s60
      %p62 = scmp.eq.s32.totalorder %s36, 0
      %p63 = por %p61, %p62
      %s64 = ssub.s32 %s30, %s37
      %p65 = scmp.eq.s32.totalorder %s64, 0
      %s67 = sadd.s32 %s66, 1
      %s68 = scalar_select %p65, %s66, %s67
      %p71 = pneg %p65
      %p72 = scmp.eq.s32.totalorder %s30, 1
      %p73 = por %p71, %p72
      %p74 = scmp.ne.s32.totalorder %s66, %s69
      %p75 = scmp.eq.s32.totalorder %s30, 0
      %p76 = por %p74, %p75
      %p77 = scmp.ne.s32.totalorder %s66, %s69
      %p78 = scmp.eq.s32.totalorder %s35, 1
      %p79 = por %p77, %p78
      %p80 = scmp.ne.s32.totalorder %s69, %s70
      %p81 = scmp.eq.s32.totalorder %s35, 0
      %p82 = por %p80, %p81
      %p83 = scmp.ne.s32.totalorder %s69, %s70
      %p84 = scmp.eq.s32.totalorder %s36, 1
      %p85 = por %p83, %p84
      %p87 = scmp.ne.s32.totalorder %s70, %s86
      %p88 = scmp.eq.s32.totalorder %s36, 0
      %p89 = por %p87, %p88
      %s91 = sadd.s32 %s90, 1
      %p94 = scmp.eq.s32.totalorder %s30, 1
      %p95 = scmp.ne.s32.totalorder %s90, %s92
      %p96 = scmp.eq.s32.totalorder %s30, 0
      %p97 = por %p95, %p96
      %p98 = scmp.ne.s32.totalorder %s90, %s92
      %p99 = scmp.eq.s32.totalorder %s35, 1
      %p100 = por %p98, %p99
      %p101 = scmp.ne.s32.totalorder %s92, %s93
      %p102 = scmp.eq.s32.totalorder %s35, 0
      %p103 = por %p101, %p102
      %p104 = scmp.ne.s32.totalorder %s92, %s93
      %p105 = scmp.eq.s32.totalorder %s36, 1
      %p106 = por %p104, %p105
      %p108 = scmp.ne.s32.totalorder %s93, %s107
      %p109 = scmp.eq.s32.totalorder %s36, 0
      %p110 = por %p108, %p109
      %s112 = sadd.s32 %s111, 1
      %p115 = scmp.eq.s32.totalorder %s30, 1
      %p116 = scmp.ne.s32.totalorder %s111, %s113
      %p117 = scmp.eq.s32.totalorder %s30, 0
      %p118 = por %p116, %p117
      %p119 = scmp.ne.s32.totalorder %s111, %s113
      %p120 = scmp.eq.s32.totalorder %s35, 1
      %p121 = por %p119, %p120
      %p122 = scmp.ne.s32.totalorder %s113, %s114
      %p123 = scmp.eq.s32.totalorder %s35, 0
      %p124 = por %p122, %p123
      %p125 = scmp.ne.s32.totalorder %s113, %s114
      %p126 = scmp.eq.s32.totalorder %s36, 1
      %p127 = por %p125, %p126
      %p129 = scmp.ne.s32.totalorder %s114, %s128
      %p130 = scmp.eq.s32.totalorder %s36, 0
      %p131 = por %p129, %p130
      %s133 = sadd.s32 %s132, 1
      %p136 = scmp.eq.s32.totalorder %s30, 1
      %p137 = scmp.ne.s32.totalorder %s132, %s134
      %p138 = scmp.eq.s32.totalorder %s30, 0
      %p139 = por %p137, %p138
      %p140 = scmp.ne.s32.totalorder %s132, %s134
      %p141 = scmp.eq.s32.totalorder %s35, 1
      %p142 = por %p140, %p141
      %p143 = scmp.ne.s32.totalorder %s134, %s135
      %p144 = scmp.eq.s32.totalorder %s35, 0
      %p145 = por %p143, %p144
      %p146 = scmp.ne.s32.totalorder %s134, %s135
      %p147 = scmp.eq.s32.totalorder %s36, 1
      %p148 = por %p146, %p147
      %p150 = scmp.ne.s32.totalorder %s135, %s149
      %p151 = scmp.eq.s32.totalorder %s36, 0
      %p152 = por %p150, %p151
      %s154 = sadd.s32 %s153, 1
      %p157 = scmp.eq.s32.totalorder %s30, 1
      %p158 = scmp.ne.s32.totalorder %s153, %s155
      %p159 = scmp.eq.s32.totalorder %s30, 0
      %p160 = por %p158, %p159
      %p161 = scmp.ne.s32.totalorder %s153, %s155
      %p162 = scmp.eq.s32.totalorder %s35, 1
      %p163 = por %p161, %p162
      %p164 = scmp.ne.s32.totalorder %s155, %s156
      %p165 = scmp.eq.s32.totalorder %s35, 0
      %p166 = por %p164, %p165
      %p167 = scmp.ne.s32.totalorder %s155, %s156
      %p168 = scmp.eq.s32.totalorder %s36, 1
      %p169 = por %p167, %p168
      %p171 = scmp.ne.s32.totalorder %s156, %s170
      %p172 = scmp.eq.s32.totalorder %s36, 0
      %p173 = por %p171, %p172
      %s175 = sadd.s32 %s174, 1
      %p178 = scmp.eq.s32.totalorder %s30, 1
      %p179 = scmp.ne.s32.totalorder %s174, %s176
      %p180 = scmp.eq.s32.totalorder %s30, 0
      %p181 = por %p179, %p180
      %p182 = scmp.ne.s32.totalorder %s174, %s176
      %p183 = scmp.eq.s32.totalorder %s35, 1
      %p184 = por %p182, %p183
      %p185 = scmp.ne.s32.totalorder %s176, %s177
      %p186 = scmp.eq.s32.totalorder %s35, 0
      %p187 = por %p185, %p186
      %p188 = scmp.ne.s32.totalorder %s176, %s177
      %p189 = scmp.eq.s32.totalorder %s36, 1
      %p190 = por %p188, %p189
      %p192 = scmp.ne.s32.totalorder %s177, %s191
      %p193 = scmp.eq.s32.totalorder %s36, 0
      %p194 = por %p192, %p193
      %s196 = sadd.s32 %s195, 1
      %p199 = scmp.eq.s32.totalorder %s30, 1
      %p200 = scmp.ne.s32.totalorder %s195, %s197
      %p201 = scmp.eq.s32.totalorder %s30, 0
      %p202 = por %p200, %p201
      %p203 = scmp.ne.s32.totalorder %s195, %s197
      %p204 = scmp.eq.s32.totalorder %s35, 1
      %p205 = por %p203, %p204
      %p206 = scmp.ne.s32.totalorder %s197, %s198
      %p207 = scmp.eq.s32.totalorder %s35, 0
      %p208 = por %p206, %p207
      %p209 = scmp.ne.s32.totalorder %s197, %s198
      %p210 = scmp.eq.s32.totalorder %s36, 1
      %p211 = por %p209, %p210
      %p213 = scmp.ne.s32.totalorder %s198, %s212
      %p214 = scmp.eq.s32.totalorder %s36, 0
      %p215 = por %p213, %p214
      %s217 = sadd.s32 %s216, 1
      %p220 = scmp.eq.s32.totalorder %s30, 1
      %p221 = scmp.ne.s32.totalorder %s216, %s218
      %p222 = scmp.eq.s32.totalorder %s30, 0
      %p223 = por %p221, %p222
      %p224 = scmp.ne.s32.totalorder %s216, %s218
      %p225 = scmp.eq.s32.totalorder %s35, 1
      %p226 = por %p224, %p225
      %p227 = scmp.ne.s32.totalorder %s218, %s219
      %p228 = scmp.eq.s32.totalorder %s35, 0
      %p229 = por %p227, %p228
      %p230 = scmp.ne.s32.totalorder %s218, %s219
      %p231 = scmp.eq.s32.totalorder %s36, 1
      %p232 = por %p230, %p231
      %p234 = scmp.ne.s32.totalorder %s219, %s233
      %p235 = scmp.eq.s32.totalorder %s36, 0
      %p236 = por %p234, %p235
      %s238 = sadd.s32 %s237, 1
      %p241 = scmp.eq.s32.totalorder %s30, 1
      %p242 = scmp.ne.s32.totalorder %s237, %s239
      %p243 = scmp.eq.s32.totalorder %s30, 0
      %p244 = por %p242, %p243
      %p245 = scmp.ne.s32.totalorder %s237, %s239
      %p246 = scmp.eq.s32.totalorder %s35, 1
      %p247 = por %p245, %p246
      %p248 = scmp.ne.s32.totalorder %s239, %s240
      %p249 = scmp.eq.s32.totalorder %s35, 0
      %p250 = por %p248, %p249
      %p251 = scmp.ne.s32.totalorder %s239, %s240
      %p252 = scmp.eq.s32.totalorder %s36, 1
      %p253 = por %p251, %p252
      %p255 = scmp.ne.s32.totalorder %s240, %s254
      %p256 = scmp.eq.s32.totalorder %s36, 0
      %p257 = por %p255, %p256
      %s259 = sadd.s32 %s258, 1
      %p262 = scmp.eq.s32.totalorder %s30, 1
      %p263 = scmp.ne.s32.totalorder %s258, %s260
      %p264 = scmp.eq.s32.totalorder %s30, 0
      %p265 = por %p263, %p264
      %p266 = scmp.ne.s32.totalorder %s258, %s260
      %p267 = scmp.eq.s32.totalorder %s35, 1
      %p268 = por %p266, %p267
      %p269 = scmp.ne.s32.totalorder %s260, %s261
      %p270 = scmp.eq.s32.totalorder %s35, 0
      %p271 = por %p269, %p270
      %p272 = scmp.ne.s32.totalorder %s260, %s261
      %p273 = scmp.eq.s32.totalorder %s36, 1
      %p274 = por %p272, %p273
      %p276 = scmp.ne.s32.totalorder %s261, %s275
      %p277 = scmp.eq.s32.totalorder %s36, 0
      %p278 = por %p276, %p277
      %s280 = sadd.s32 %s279, 1
      %p283 = scmp.eq.s32.totalorder %s30, 1
      %p284 = scmp.ne.s32.totalorder %s279, %s281
      %p285 = scmp.eq.s32.totalorder %s30, 0
      %p286 = por %p284, %p285
      %p287 = scmp.ne.s32.totalorder %s279, %s281
      %p288 = scmp.eq.s32.totalorder %s35, 1
      %p289 = por %p287, %p288
      %p290 = scmp.ne.s32.totalorder %s281, %s282
      %p291 = scmp.eq.s32.totalorder %s35, 0
      %p292 = por %p290, %p291
      %p293 = scmp.ne.s32.totalorder %s281, %s282
      %p294 = scmp.eq.s32.totalorder %s36, 1
      %p295 = por %p293, %p294
      %p297 = scmp.ne.s32.totalorder %s282, %s296
      %p298 = scmp.eq.s32.totalorder %s36, 0
      %p299 = por %p297, %p298
      %s301 = sadd.s32 %s300, 1
      %p304 = scmp.eq.s32.totalorder %s30, 1
      %p305 = scmp.ne.s32.totalorder %s300, %s302
      %p306 = scmp.eq.s32.totalorder %s30, 0
      %p307 = por %p305, %p306
      %p308 = scmp.ne.s32.totalorder %s300, %s302
      %p309 = scmp.eq.s32.totalorder %s35, 1
      %p310 = por %p308, %p309
      %p311 = scmp.ne.s32.totalorder %s302, %s303
      %p312 = scmp.eq.s32.totalorder %s35, 0
      %p313 = por %p311, %p312
      %p314 = scmp.ne.s32.totalorder %s302, %s303
      %p315 = scmp.eq.s32.totalorder %s36, 1
      %p316 = por %p314, %p315
      %p318 = scmp.ne.s32.totalorder %s303, %s317
      %p319 = scmp.eq.s32.totalorder %s36, 0
      %p320 = por %p318, %p319
      %s322 = sadd.s32 %s321, 1
      %p325 = scmp.eq.s32.totalorder %s30, 1
      %p326 = scmp.ne.s32.totalorder %s321, %s323
      %p327 = scmp.eq.s32.totalorder %s30, 0
      %p328 = por %p326, %p327
      %p329 = scmp.ne.s32.totalorder %s321, %s323
      %p330 = scmp.eq.s32.totalorder %s35, 1
      %p331 = por %p329, %p330
      %p332 = scmp.ne.s32.totalorder %s323, %s324
      %p333 = scmp.eq.s32.totalorder %s35, 0
      %p334 = por %p332, %p333
      %p335 = scmp.ne.s32.totalorder %s323, %s324
      %p336 = scmp.eq.s32.totalorder %s36, 1
      %p337 = por %p335, %p336
      %p339 = scmp.ne.s32.totalorder %s324, %s338
      %p340 = scmp.eq.s32.totalorder %s36, 0
      %p341 = por %p339, %p340
      %s343 = sadd.s32 %s342, 1
      %p346 = scmp.eq.s32.totalorder %s30, 1
      %p347 = scmp.ne.s32.totalorder %s342, %s344
      %p348 = scmp.eq.s32.totalorder %s30, 0
      %p349 = por %p347, %p348
      %p350 = scmp.ne.s32.totalorder %s342, %s344
      %p351 = scmp.eq.s32.totalorder %s35, 1
      %p352 = por %p350, %p351
      %p353 = scmp.ne.s32.totalorder %s344, %s345
      %p354 = scmp.eq.s32.totalorder %s35, 0
      %p355 = por %p353, %p354
      %p356 = scmp.ne.s32.totalorder %s344, %s345
      %p357 = scmp.eq.s32.totalorder %s36, 1
      %p358 = por %p356, %p357
      %p360 = scmp.ne.s32.totalorder %s345, %s359
      %p361 = scmp.eq.s32.totalorder %s36, 0
      %p362 = por %p360, %p361
      %s364 = sadd.s32 %s363, 1
      %p367 = scmp.eq.s32.totalorder %s30, 1
      %p368 = scmp.ne.s32.totalorder %s363, %s365
      %p369 = scmp.eq.s32.totalorder %s30, 0
      %p370 = por %p368, %p369
      %p371 = scmp.ne.s32.totalorder %s363, %s365
      %p372 = scmp.eq.s32.totalorder %s35, 1
      %p373 = por %p371, %p372
      %p374 = scmp.ne.s32.totalorder %s365, %s366
      %p375 = scmp.eq.s32.totalorder %s35, 0
      %p376 = por %p374, %p375
      %p377 = scmp.ne.s32.totalorder %s365, %s366
      %p378 = scmp.eq.s32.totalorder %s36, 1
      %p379 = por %p377, %p378
      %p381 = scmp.ne.s32.totalorder %s366, %s380
      %p382 = scmp.eq.s32.totalorder %s36, 0
      %p383 = por %p381, %p382
      %s385 = sadd.s32 %s384, 1
      %p388 = scmp.eq.s32.totalorder %s30, 1
      %p389 = scmp.ne.s32.totalorder %s384, %s386
      %p390 = scmp.eq.s32.totalorder %s30, 0
      %p391 = por %p389, %p390
      %p392 = scmp.ne.s32.totalorder %s384, %s386
      %p393 = scmp.eq.s32.totalorder %s35, 1
      %p394 = por %p392, %p393
      %p395 = scmp.ne.s32.totalorder %s386, %s387
      %p396 = scmp.eq.s32.totalorder %s35, 0
      %p397 = por %p395, %p396
      %p398 = scmp.ne.s32.totalorder %s386, %s387
      %p399 = scmp.eq.s32.totalorder %s36, 1
      %p400 = por %p398, %p399
      %p402 = scmp.ne.s32.totalorder %s387, %s401
      %p403 = scmp.eq.s32.totalorder %s36, 0
      %p404 = por %p402, %p403
      %s406 = sadd.s32 %s405, 1
      %p409 = scmp.eq.s32.totalorder %s30, 1
      %p410 = scmp.ne.s32.totalorder %s405, %s407
      %p411 = scmp.eq.s32.totalorder %s30, 0
      %p412 = por %p410, %p411
      %p413 = scmp.ne.s32.totalorder %s405, %s407
      %p414 = scmp.eq.s32.totalorder %s35, 1
      %p415 = por %p413, %p414
      %p416 = scmp.ne.s32.totalorder %s407, %s408
      %p417 = scmp.eq.s32.totalorder %s35, 0
      %p418 = por %p416, %p417
      %p419 = scmp.ne.s32.totalorder %s407, %s408
      %p420 = scmp.eq.s32.totalorder %s36, 1
      %p421 = por %p419, %p420
      %p423 = scmp.ne.s32.totalorder %s408, %s422
      %p424 = scmp.eq.s32.totalorder %s36, 0
      %p425 = por %p423, %p424
      %s426 = ssub.s32 %s30, %s37
      %p427 = scmp.eq.s32.totalorder %s426, 0
      %s429 = sadd.s32 %s428, 1
      %s430 = scalar_select %p427, %s428, %s429
      %p433 = pneg %p427
      %p434 = scmp.eq.s32.totalorder %s30, 1
      %p435 = por %p433, %p434
      %p436 = scmp.ne.s32.totalorder %s428, %s431
      %p437 = scmp.eq.s32.totalorder %s30, 0
      %p438 = por %p436, %p437
      %p439 = scmp.ne.s32.totalorder %s428, %s431
      %p440 = scmp.eq.s32.totalorder %s35, 1
      %p441 = por %p439, %p440
      %p442 = scmp.ne.s32.totalorder %s431, %s432
      %p443 = scmp.eq.s32.totalorder %s35, 0
      %p444 = por %p442, %p443
      %p445 = scmp.ne.s32.totalorder %s431, %s432
      %p446 = scmp.eq.s32.totalorder %s36, 1
      %p447 = por %p445, %p446
      %p449 = scmp.ne.s32.totalorder %s432, %s448
      %p450 = scmp.eq.s32.totalorder %s36, 0
      %p451 = por %p449, %p450
      %p452 = scmp.le.s32.totalorder 1, %s30
      %p453 = scmp.lt.s32.totalorder %s30, 3
      %p454 = pnand %p452, %p453
      %p455 = pneg %p454
      // Predicated region
      $region9: #{tpu_custom_call.1} parent=5 // pred_check
        _
      $region10: #{tpu_custom_call.1} parent=5 // pred_check_branch
        %457 = sbr.rel (%p454) target = $region12
      $region11: #{tpu_custom_call.1} parent=5 // pred_region
        %s458 = ssub.s32 %s30, 1
        // Predicated region
        $region13: #{tpu_custom_call.1} parent=11 // pred_check
          %p459 = pneg %p103
        $region14: #{tpu_custom_call.1} parent=11 // pred_check_branch
          %461 = sbr.rel (%p459) target = $region16
        $region15: #{tpu_custom_call.1} parent=11 // pred_region
          _
        $region16: #{tpu_custom_call.1} parent=11 // pred_fallthru
          _
        // Predicated region
        $region17: #{tpu_custom_call.1} parent=11 // pred_check
          %p462 = pneg %p124
        $region18: #{tpu_custom_call.1} parent=11 // pred_check_branch
          %464 = sbr.rel (%p462) target = $region20
        $region19: #{tpu_custom_call.1} parent=11 // pred_region
          _
        $region20: #{tpu_custom_call.1} parent=11 // pred_fallthru
          _
        // Predicated region
        $region21: #{tpu_custom_call.1} parent=11 // pred_check
          %p465 = pneg %p145
        $region22: #{tpu_custom_call.1} parent=11 // pred_check_branch
          %467 = sbr.rel (%p465) target = $region24
        $region23: #{tpu_custom_call.1} parent=11 // pred_region
          %s469 = ssub.s32 256, 256
          %470 = vsyncadd [#allocation3], %s469
          %s471 = sshll.u32 [#allocation2], 4
          %s472 = int_to_ptr.vmem [resolvable:$true] %s471
          %477 = dma.hbm_to_vmem [thread:$0]  %s4, 256, %s472, [#allocation3], 64, 64, 4
        $region24: #{tpu_custom_call.1} parent=11 // pred_fallthru
          _
        // Predicated region
        $region25: #{tpu_custom_call.1} parent=11 // pred_check
          %p478 = pneg %p166
        $region26: #{tpu_custom_call.1} parent=11 // pred_check_branch
          %480 = sbr.rel (%p478) target = $region28
        $region27: #{tpu_custom_call.1} parent=11 // pred_region
          %s482 = ssub.s32 256, 256
          %483 = vsyncadd [#allocation6], %s482
          %s484 = sshll.u32 [#allocation5], 4
          %s485 = int_to_ptr.vmem [resolvable:$true] %s484
          %490 = dma.hbm_to_vmem [thread:$0]  %s5, 256, %s485, [#allocation6], 32, 32, 2
        $region28: #{tpu_custom_call.1} parent=11 // pred_fallthru
          _
        // Predicated region
        $region29: #{tpu_custom_call.1} parent=11 // pred_check
          %p491 = pneg %p187
        $region30: #{tpu_custom_call.1} parent=11 // pred_check_branch
          %493 = sbr.rel (%p491) target = $region32
        $region31: #{tpu_custom_call.1} parent=11 // pred_region
          _
        $region32: #{tpu_custom_call.1} parent=11 // pred_fallthru
          _
        // Predicated region
        $region33: #{tpu_custom_call.1} parent=11 // pred_check
          %p494 = pneg %p208
        $region34: #{tpu_custom_call.1} parent=11 // pred_check_branch
          %496 = sbr.rel (%p494) target = $region36
        $region35: #{tpu_custom_call.1} parent=11 // pred_region
          _
        $region36: #{tpu_custom_call.1} parent=11 // pred_fallthru
          _
        // Predicated region
        $region37: #{tpu_custom_call.1} parent=11 // pred_check
          %p497 = pneg %p229
        $region38: #{tpu_custom_call.1} parent=11 // pred_check_branch
          %499 = sbr.rel (%p497) target = $region40
        $region39: #{tpu_custom_call.1} parent=11 // pred_region
          %s501 = ssub.s32 16, 16
          %502 = vsyncadd [#allocation6], %s501
          %s504 = sshll.u32 [#allocation7], 4
          %s505 = int_to_ptr.vmem [resolvable:$true] %s504
          %507 = dma.hbm_to_vmem [thread:$0]  %s8, 16, %s505, [#allocation6]
        $region40: #{tpu_custom_call.1} parent=11 // pred_fallthru
          _
        // Predicated region
        $region41: #{tpu_custom_call.1} parent=11 // pred_check
          %p508 = pneg %p250
        $region42: #{tpu_custom_call.1} parent=11 // pred_check_branch
          %510 = sbr.rel (%p508) target = $region44
        $region43: #{tpu_custom_call.1} parent=11 // pred_region
          %s512 = ssub.s32 16, 16
          %513 = vsyncadd [#allocation9], %s512
          %s515 = sshll.u32 [#allocation8], 4
          %s516 = int_to_ptr.vmem [resolvable:$true] %s515
          %518 = dma.hbm_to_vmem [thread:$0]  %s9, 16, %s516, [#allocation9]
        $region44: #{tpu_custom_call.1} parent=11 // pred_fallthru
          _
        // Predicated region
        $region45: #{tpu_custom_call.1} parent=11 // pred_check
          %p519 = pneg %p271
        $region46: #{tpu_custom_call.1} parent=11 // pred_check_branch
          %521 = sbr.rel (%p519) target = $region48
        $region47: #{tpu_custom_call.1} parent=11 // pred_region
          _
        $region48: #{tpu_custom_call.1} parent=11 // pred_fallthru
          _
        // Predicated region
        $region49: #{tpu_custom_call.1} parent=11 // pred_check
          %p522 = pneg %p292
        $region50: #{tpu_custom_call.1} parent=11 // pred_check_branch
          %524 = sbr.rel (%p522) target = $region52
        $region51: #{tpu_custom_call.1} parent=11 // pred_region
          _
        $region52: #{tpu_custom_call.1} parent=11 // pred_fallthru
          _
        // Predicated region
        $region53: #{tpu_custom_call.1} parent=11 // pred_check
          %p525 = pneg %p313
        $region54: #{tpu_custom_call.1} parent=11 // pred_check_branch
          %527 = sbr.rel (%p525) target = $region56
        $region55: #{tpu_custom_call.1} parent=11 // pred_region
          _
        $region56: #{tpu_custom_call.1} parent=11 // pred_fallthru
          _
        // Predicated region
        $region57: #{tpu_custom_call.1} parent=11 // pred_check
          %p528 = pneg %p334
        $region58: #{tpu_custom_call.1} parent=11 // pred_check_branch
          %530 = sbr.rel (%p528) target = $region60
        $region59: #{tpu_custom_call.1} parent=11 // pred_region
          _
        $region60: #{tpu_custom_call.1} parent=11 // pred_fallthru
          _
        // Predicated region
        $region61: #{tpu_custom_call.1} parent=11 // pred_check
          %p531 = pneg %p355
        $region62: #{tpu_custom_call.1} parent=11 // pred_check_branch
          %533 = sbr.rel (%p531) target = $region64
        $region63: #{tpu_custom_call.1} parent=11 // pred_region
          _
        $region64: #{tpu_custom_call.1} parent=11 // pred_fallthru
          _
        // Predicated region
        $region65: #{tpu_custom_call.1} parent=11 // pred_check
          %p534 = pneg %p376
        $region66: #{tpu_custom_call.1} parent=11 // pred_check_branch
          %536 = sbr.rel (%p534) target = $region68
        $region67: #{tpu_custom_call.1} parent=11 // pred_region
          _
        $region68: #{tpu_custom_call.1} parent=11 // pred_fallthru
          _
        // Predicated region
        $region69: #{tpu_custom_call.1} parent=11 // pred_check
          %p537 = pneg %p397
        $region70: #{tpu_custom_call.1} parent=11 // pred_check_branch
          %539 = sbr.rel (%p537) target = $region72
        $region71: #{tpu_custom_call.1} parent=11 // pred_region
          _
        $region72: #{tpu_custom_call.1} parent=11 // pred_fallthru
          _
        // Predicated region
        $region73: #{tpu_custom_call.1} parent=11 // pred_check
          %p540 = pneg %p418
        $region74: #{tpu_custom_call.1} parent=11 // pred_check_branch
          %542 = sbr.rel (%p540) target = $region76
        $region75: #{tpu_custom_call.1} parent=11 // pred_region
          _
        $region76: #{tpu_custom_call.1} parent=11 // pred_fallthru
          _
      $region12: #{tpu_custom_call.1} parent=5 // pred_fallthru
        _
      %p543 = scmp.lt.s32.totalorder %s30, 2
      // Predicated region
      $region77: #{tpu_custom_call.1} parent=5 // pred_check
        %p544 = pneg %p543
      $region78: #{tpu_custom_call.1} parent=5 // pred_check_branch
        %546 = sbr.rel (%p544) target = $region80
      $region79: #{tpu_custom_call.1} parent=5 // pred_region
        // Predicated region
        $region81: #{tpu_custom_call.1} parent=79 // pred_check
          %p547 = pneg %p50
        $region82: #{tpu_custom_call.1} parent=79 // pred_check_branch
          %549 = sbr.rel (%p547) target = $region84
        $region83: #{tpu_custom_call.1} parent=79 // pred_region
          %p550 = scmp.lt.s32.totalorder %s30, 1
          %s551 = scalar_select %p550, %s30, 1
          %s552 = smul.addr %s551, 8
          %s553 = scalar_lea.vmem %s0, %s552
        $region84: #{tpu_custom_call.1} parent=79 // pred_fallthru
          _
        // Predicated region
        $region85: #{tpu_custom_call.1} parent=79 // pred_check
          %p554 = pneg %p76
        $region86: #{tpu_custom_call.1} parent=79 // pred_check_branch
          %556 = sbr.rel (%p554) target = $region88
        $region87: #{tpu_custom_call.1} parent=79 // pred_region
          %s557 = smul.u32 2, %s30
          %p558 = scmp.lt.s32.totalorder %s557, 3
          %s559 = scalar_select %p558, %s557, 3
          %s560 = smul.addr %s559, 8
          %s561 = scalar_lea.vmem %s1, %s560
          %s562 = smul.u32 2, %s30
        $region88: #{tpu_custom_call.1} parent=79 // pred_fallthru
          _
      $region80: #{tpu_custom_call.1} parent=5 // pred_fallthru
        _
      %p563 = scmp.le.s32.totalorder 1, %s30
      %p564 = scmp.lt.s32.totalorder %s30, 3
      %p565 = pnand %p563, %p564
      %p566 = pneg %p565
      // Predicated region
      $region89: #{tpu_custom_call.1} parent=5 // pred_check
        _
      $region90: #{tpu_custom_call.1} parent=5 // pred_check_branch
        %568 = sbr.rel (%p565) target = $region92
      $region91: #{tpu_custom_call.1} parent=5 // pred_region
        %s569 = ssub.s32 %s30, 1
        // Predicated region
        $region93: #{tpu_custom_call.1} parent=91 // pred_check
          %p570 = pneg %p145
        $region94: #{tpu_custom_call.1} parent=91 // pred_check_branch
          %572 = sbr.rel (%p570) target = $region96
        $region95: #{tpu_custom_call.1} parent=91 // pred_region
          %573 = dma.done [#allocation3], 256
        $region96: #{tpu_custom_call.1} parent=91 // pred_fallthru
          _
        // Predicated region
        $region97: #{tpu_custom_call.1} parent=91 // pred_check
          %p574 = pneg %p166
        $region98: #{tpu_custom_call.1} parent=91 // pred_check_branch
          %576 = sbr.rel (%p574) target = $region100
        $region99: #{tpu_custom_call.1} parent=91 // pred_region
          %577 = dma.done [#allocation6], 256
        $region100: #{tpu_custom_call.1} parent=91 // pred_fallthru
          _
        // Predicated region
        $region101: #{tpu_custom_call.1} parent=91 // pred_check
          %p578 = pneg %p229
        $region102: #{tpu_custom_call.1} parent=91 // pred_check_branch
          %580 = sbr.rel (%p578) target = $region104
        $region103: #{tpu_custom_call.1} parent=91 // pred_region
          %581 = dma.done [#allocation6], 16
        $region104: #{tpu_custom_call.1} parent=91 // pred_fallthru
          _
        // Predicated region
        $region105: #{tpu_custom_call.1} parent=91 // pred_check
          %p582 = pneg %p250
        $region106: #{tpu_custom_call.1} parent=91 // pred_check_branch
          %584 = sbr.rel (%p582) target = $region108
        $region107: #{tpu_custom_call.1} parent=91 // pred_region
          %585 = dma.done [#allocation9], 16
        $region108: #{tpu_custom_call.1} parent=91 // pred_fallthru
          _
        %p586 = scmp.lt.s32.totalorder %s35, 1
        %s587 = scalar_select %p586, %s35, 1
        %s588 = smul.addr %s587, 8
        %s589 = scalar_lea.vmem %s0, %s588
        %p590 = pneg %p56
        %p591 = pneg %p53
        %s592 = smul.u32 2, %s35
        %p593 = scmp.lt.s32.totalorder %s592, 3
        %s594 = scalar_select %p593, %s592, 3
        %s595 = smul.addr %s594, 8
        %s596 = scalar_lea.vmem %s1, %s595
        %p597 = pneg %p82
        %p598 = pneg %p79
        %p599 = pneg %p103
        %p600 = pneg %p100
        %p601 = pneg %p124
        %p602 = pneg %p121
        %p603 = pneg %p145
        %p604 = pneg %p142
        %p605 = pneg %p166
        %p606 = pneg %p163
        %p607 = pneg %p187
        %p608 = pneg %p184
        %p609 = pneg %p208
        %p610 = pneg %p205
        %p611 = pneg %p229
        %p612 = pneg %p226
        %p613 = pneg %p250
        %p614 = pneg %p247
        %p615 = pneg %p271
        %p616 = pneg %p268
        %p617 = pneg %p292
        %p618 = pneg %p289
        %p619 = pneg %p313
        %p620 = pneg %p310
        %p621 = pneg %p334
        %p622 = pneg %p331
        %p623 = pneg %p355
        %p624 = pneg %p352
        %p625 = pneg %p376
        %p626 = pneg %p373
        %p627 = pneg %p397
        %p628 = pneg %p394
        %p629 = pneg %p418
        %p630 = pneg %p415
        %p631 = pneg %p444
        %p632 = pneg %p441
        %s633 = sand.u32 %s431, 1
        %s634 = scalar_lea.sflag [#allocation4], %s633
        %s635 = sand.u32 %s431, 1
        %s636 = smul.addr %s635, 8
        %s637 = scalar_lea.vmem [#allocation10], %s636
        %p638 = scmp.lt.s32.totalorder %s35, 1
        %s639 = scalar_select %p638, %s35, 1
        %s640 = smul.addr %s639, 8
        %s641 = scalar_lea.vmem %s0, %s640
        %s642 = smul.u32 2, %s35
        %p643 = scmp.lt.s32.totalorder %s642, 3
        %s644 = scalar_select %p643, %s642, 3
        %s645 = smul.addr %s644, 8
        %s646 = scalar_lea.vmem %s1, %s645
        %s647 = smul.u32 2, %s35
        %v649 = vld [vmem:[%s641] sm:$0xff]
        %v650 = vpack.c.bf16 %v649, %v649
        %v651 = vld [vmem:[%s646] sm:$0xff]
        %v652 = vld [vmem:[%s646 + $0x8] sm:$0xff]
        %v653 = vpack.c.bf16 %v652, %v651
        %v654 = vld [vmem:[%s2] sm:$0xf]
        %v655 = vld [vmem:[%s2 + $0x4] sm:$0xf]
        %v656 = vld [vmem:[%s2 + $0x8] sm:$0xf]
        %v657 = vld [vmem:[%s2 + $0xc] sm:$0xf]
        %v658 = vld [vmem:[%s6] sm:$0x1]
        %v660 = vlaneseq
        %v661 = vshrl.u32 %v660, 7
        %v662 = vsub.s32 0, %v661
        %v663 = vrot.slane %v658, %v662
        %v669 = vunpack.c.l.b16 %v654
        %v670 = vunpack.c.l.b16 %v655
        %v671 = vunpack.c.l.b16 %v656
        %v672 = vunpack.c.l.b16 %v657
        %v673 = vpack.c.b16 %v670, %v669
        %v674 = vpack.c.b16 %v672, %v671
        %vm677 = vcmask 261120
        %v679 = vsel %vm677, %v650, 0
        %681 = vmatprep.subr.bf16.mxu0 0
        %682 = vmatpush1.bf16.msra.mxu0 %v673
        %683 = vmatprep.subr.bf16.mxu0 0
        %684 = vmatpush1.bf16.msra.mxu0 %v674
        %685 = vmatprep.subr.bf16.mxu0 0
        %686 = vmatpush1.bf16.msra.mxu0 0
        %687 = vmatprep.subr.bf16.mxu0 0
        %688 = vmatpush1.bf16.msra.mxu0 0
        %689 = vmatprep.subr.bf16.mxu0 0
        %690 = vmatpush1.bf16.msra.mxu0 0
        %691 = vmatprep.subr.bf16.mxu0 0
        %692 = vmatpush1.bf16.msra.mxu0 0
        %693 = vmatprep.subr.bf16.mxu0 0
        %694 = vmatpush1.bf16.msra.mxu0 0
        %695 = vmatprep.subr.bf16.mxu0 0
        %696 = vmatpush1.bf16.msra.mxu0 0
        %697 = vmatprep.subr.bf16.mxu0 0
        %698 = vmatpush1.bf16.msra.mxu0 0
        %699 = vmatprep.subr.bf16.mxu0 0
        %700 = vmatpush1.bf16.msra.mxu0 0
        %701 = vmatprep.subr.bf16.mxu0 0
        %702 = vmatpush1.bf16.msra.mxu0 0
        %703 = vmatprep.subr.bf16.mxu0 0
        %704 = vmatpush1.bf16.msra.mxu0 0
        %705 = vmatprep.subr.bf16.mxu0 0
        %706 = vmatpush1.bf16.msra.mxu0 0
        %707 = vmatprep.subr.bf16.mxu0 0
        %708 = vmatpush1.bf16.msra.mxu0 0
        %709 = vmatprep.subr.bf16.mxu0 0
        %710 = vmatpush1.bf16.msra.mxu0 0
        %711 = vmatprep.subr.bf16.mxu0 0
        %712 = vmatpush1.bf16.msra.mxu0 0
        %713 = vmatprep.mubr.bf16.mxu0 0
        %714 = vmatmul.mubr.bf16.gmra.mrb[0].mxu0 %v679
        %v715 = vpop.f32.mrb[0].mxu0
        %v716 = vadd.f32 %v663, %v715
        %v717 = vpop.f32.mrb[0].mxu0
        %v718 = vpop.f32.mrb[0].mxu0
        %v719 = vpop.f32.mrb[0].mxu0
        %720 = vdwg.mxu0
        %v721 = vld [vmem:[%s3] sm:$0xf]
        %v722 = vld [vmem:[%s3 + $0x4] sm:$0xf]
        %v723 = vld [vmem:[%s3 + $0x8] sm:$0xf]
        %v724 = vld [vmem:[%s3 + $0xc] sm:$0xf]
        %v725 = vld [vmem:[%s7] sm:$0x1]
        %v727 = vlaneseq
        %v728 = vshrl.u32 %v727, 7
        %v729 = vsub.s32 0, %v728
        %v730 = vrot.slane %v725, %v729
        %v736 = vunpack.c.l.b16 %v721
        %v737 = vunpack.c.l.b16 %v722
        %v738 = vunpack.c.l.b16 %v723
        %v739 = vunpack.c.l.b16 %v724
        %v740 = vpack.c.b16 %v737, %v736
        %v741 = vpack.c.b16 %v739, %v738
        %v745 = vsel %vm677, %v653, 0
        %747 = vmatprep.subr.bf16.mxu0 0
        %748 = vmatpush1.bf16.msra.mxu0 %v740
        %749 = vmatprep.subr.bf16.mxu0 0
        %750 = vmatpush1.bf16.msra.mxu0 %v741
        %751 = vmatprep.subr.bf16.mxu0 0
        %752 = vmatpush1.bf16.msra.mxu0 0
        %753 = vmatprep.subr.bf16.mxu0 0
        %754 = vmatpush1.bf16.msra.mxu0 0
        %755 = vmatprep.subr.bf16.mxu0 0
        %756 = vmatpush1.bf16.msra.mxu0 0
        %757 = vmatprep.subr.bf16.mxu0 0
        %758 = vmatpush1.bf16.msra.mxu0 0
        %759 = vmatprep.subr.bf16.mxu0 0
        %760 = vmatpush1.bf16.msra.mxu0 0
        %761 = vmatprep.subr.bf16.mxu0 0
        %762 = vmatpush1.bf16.msra.mxu0 0
        %763 = vmatprep.subr.bf16.mxu0 0
        %764 = vmatpush1.bf16.msra.mxu0 0
        %765 = vmatprep.subr.bf16.mxu0 0
        %766 = vmatpush1.bf16.msra.mxu0 0
        %767 = vmatprep.subr.bf16.mxu0 0
        %768 = vmatpush1.bf16.msra.mxu0 0
        %769 = vmatprep.subr.bf16.mxu0 0
        %770 = vmatpush1.bf16.msra.mxu0 0
        %771 = vmatprep.subr.bf16.mxu0 0
        %772 = vmatpush1.bf16.msra.mxu0 0
        %773 = vmatprep.subr.bf16.mxu0 0
        %774 = vmatpush1.bf16.msra.mxu0 0
        %775 = vmatprep.subr.bf16.mxu0 0
        %776 = vmatpush1.bf16.msra.mxu0 0
        %777 = vmatprep.subr.bf16.mxu0 0
        %778 = vmatpush1.bf16.msra.mxu0 0
        %779 = vmatprep.mubr.bf16.mxu0 0
        %780 = vmatmul.mubr.bf16.gmra.mrb[0].mxu0 %v745
        %v781 = vpop.f32.mrb[0].mxu0
        %v782 = vadd.f32 %v730, %v781
        %v783 = vpop.f32.mrb[0].mxu0
        %v784 = vpop.f32.mrb[0].mxu0
        %v785 = vadd.f32 %v730, %v784
        %v786 = vpop.f32.mrb[0].mxu0
        %787 = vdwg.mxu0
        %v788 = vld [vmem:[#allocation2] sm:$0xf]
        %v789 = vld [vmem:[#allocation2 + $0x4] sm:$0xf]
        %v790 = vld [vmem:[#allocation2 + $0x8] sm:$0xf]
        %v791 = vld [vmem:[#allocation2 + $0xc] sm:$0xf]
        %v792 = vld [vmem:[#allocation7] sm:$0x1]
        %v794 = vlaneseq
        %v795 = vshrl.u32 %v794, 7
        %v796 = vsub.s32 0, %v795
        %v797 = vrot.slane %v792, %v796
        %v803 = vunpack.c.l.b16 %v788
        %v804 = vunpack.c.l.b16 %v789
        %v805 = vunpack.c.l.b16 %v790
        %v806 = vunpack.c.l.b16 %v791
        %v807 = vpack.c.b16 %v804, %v803
        %v808 = vpack.c.b16 %v806, %v805
        %811 = vmatprep.subr.bf16.mxu0 0
        %812 = vmatpush1.bf16.msra.mxu0 %v807
        %813 = vmatprep.subr.bf16.mxu0 0
        %814 = vmatpush1.bf16.msra.mxu0 %v808
        %815 = vmatprep.subr.bf16.mxu0 0
        %816 = vmatpush1.bf16.msra.mxu0 0
        %817 = vmatprep.subr.bf16.mxu0 0
        %818 = vmatpush1.bf16.msra.mxu0 0
        %819 = vmatprep.subr.bf16.mxu0 0
        %820 = vmatpush1.bf16.msra.mxu0 0
        %821 = vmatprep.subr.bf16.mxu0 0
        %822 = vmatpush1.bf16.msra.mxu0 0
        %823 = vmatprep.subr.bf16.mxu0 0
        %824 = vmatpush1.bf16.msra.mxu0 0
        %825 = vmatprep.subr.bf16.mxu0 0
        %826 = vmatpush1.bf16.msra.mxu0 0
        %827 = vmatprep.subr.bf16.mxu0 0
        %828 = vmatpush1.bf16.msra.mxu0 0
        %829 = vmatprep.subr.bf16.mxu0 0
        %830 = vmatpush1.bf16.msra.mxu0 0
        %831 = vmatprep.subr.bf16.mxu0 0
        %832 = vmatpush1.bf16.msra.mxu0 0
        %833 = vmatprep.subr.bf16.mxu0 0
        %834 = vmatpush1.bf16.msra.mxu0 0
        %835 = vmatprep.subr.bf16.mxu0 0
        %836 = vmatpush1.bf16.msra.mxu0 0
        %837 = vmatprep.subr.bf16.mxu0 0
        %838 = vmatpush1.bf16.msra.mxu0 0
        %839 = vmatprep.subr.bf16.mxu0 0
        %840 = vmatpush1.bf16.msra.mxu0 0
        %841 = vmatprep.subr.bf16.mxu0 0
        %842 = vmatpush1.bf16.msra.mxu0 0
        %843 = vmatprep.mubr.bf16.mxu0 0
        %844 = vmatmul.mubr.bf16.gmra.mrb[0].mxu0 %v745
        %v845 = vpop.f32.mrb[0].mxu0
        %v846 = vadd.f32 %v797, %v845
        %v847 = vpop.f32.mrb[0].mxu0
        %v848 = vpop.f32.mrb[0].mxu0
        %v849 = vadd.f32 %v797, %v848
        %v850 = vpop.f32.mrb[0].mxu0
        %851 = vdwg.mxu0
        %v852 = vpack.c.bf16 %v716, %v716
        %v853 = vpack.c.bf16 %v785, %v782
        %v854 = vpack.c.bf16 %v849, %v846
        %vm855 = vcmask 31744
        %v857 = vsel %vm855, %v852, 0
        %v860 = vsel %vm855, %v853, 0
        %862 = vmatprep.subr.bf16.mxu0 0
        %863 = vmatpush1.bf16.xpose.msra.mxu0 %v860
        %864 = vmatprep.subr.bf16.mxu0 0
        %865 = vmatpush1.bf16.xpose.msra.mxu0 0
        %866 = vmatprep.subr.bf16.mxu0 0
        %867 = vmatpush1.bf16.xpose.msra.mxu0 0
        %868 = vmatprep.subr.bf16.mxu0 0
        %869 = vmatpush1.bf16.xpose.msra.mxu0 0
        %870 = vmatprep.subr.bf16.mxu0 0
        %871 = vmatpush1.bf16.xpose.msra.mxu0 0
        %872 = vmatprep.subr.bf16.mxu0 0
        %873 = vmatpush1.bf16.xpose.msra.mxu0 0
        %874 = vmatprep.subr.bf16.mxu0 0
        %875 = vmatpush1.bf16.xpose.msra.mxu0 0
        %876 = vmatprep.subr.bf16.mxu0 0
        %877 = vmatpush1.bf16.xpose.msra.mxu0 0
        %878 = vmatprep.subr.bf16.mxu0 0
        %879 = vmatpush1.bf16.xpose.msra.mxu0 0
        %880 = vmatprep.subr.bf16.mxu0 0
        %881 = vmatpush1.bf16.xpose.msra.mxu0 0
        %882 = vmatprep.subr.bf16.mxu0 0
        %883 = vmatpush1.bf16.xpose.msra.mxu0 0
        %884 = vmatprep.subr.bf16.mxu0 0
        %885 = vmatpush1.bf16.xpose.msra.mxu0 0
        %886 = vmatprep.subr.bf16.mxu0 0
        %887 = vmatpush1.bf16.xpose.msra.mxu0 0
        %888 = vmatprep.subr.bf16.mxu0 0
        %889 = vmatpush1.bf16.xpose.msra.mxu0 0
        %890 = vmatprep.subr.bf16.mxu0 0
        %891 = vmatpush1.bf16.xpose.msra.mxu0 0
        %892 = vmatprep.subr.bf16.mxu0 0
        %893 = vmatpush1.bf16.xpose.msra.mxu0 0
        %894 = vmatprep.mubr.bf16.mxu0 0
        %895 = vmatmul.mubr.bf16.gmra.mrb[0].mxu0 %v857
        %v896 = vpop.f32.mrb[0].mxu0
        %v897 = vadd.f32 0.0, %v896
        %v898 = vpop.f32.mrb[0].mxu0
        %v899 = vpop.f32.mrb[0].mxu0
        %v900 = vpop.f32.mrb[0].mxu0
        %901 = vdwg.mxu0
        %vm902 = vcmask 130048
        %v903 = vsel %vm902, %v897, -inf
        %904 = vmax.xlane.f32.xlu0 %v903
        %v905 = vpop.xlane.xlu0 %904
        %v906 = vsub.f32 %v897, %v905
        %v907 = vmul.f32 %v906, 1.442695
        %v908 = vpow.pop %v907
        %v909 = vsel %vm902, %v908, 0.0
        %910 = vadd.xlane.f32.xlu0 %v909
        %v911 = vpop.xlane.xlu0 %910
        %v912 = vrcp.pop %v911
        %v913 = vmul.f32 %v908, %v912
        %v914 = vpack.c.bf16 %v913, %v913
        %v916 = vsel %vm902, %v914, 0
        %918 = vmatprep.subr.bf16.mxu0 0
        %919 = vmatpush1.bf16.msra.mxu0 %v854
        %920 = vmatprep.subr.bf16.mxu0 0
        %921 = vmatpush1.bf16.msra.mxu0 0
        %922 = vmatprep.subr.bf16.mxu0 0
        %923 = vmatpush1.bf16.msra.mxu0 0
        %924 = vmatprep.subr.bf16.mxu0 0
        %925 = vmatpush1.bf16.msra.mxu0 0
        %926 = vmatprep.subr.bf16.mxu0 0
        %927 = vmatpush1.bf16.msra.mxu0 0
        %928 = vmatprep.subr.bf16.mxu0 0
        %929 = vmatpush1.bf16.msra.mxu0 0
        %930 = vmatprep.subr.bf16.mxu0 0
        %931 = vmatpush1.bf16.msra.mxu0 0
        %932 = vmatprep.subr.bf16.mxu0 0
        %933 = vmatpush1.bf16.msra.mxu0 0
        %934 = vmatprep.subr.bf16.mxu0 0
        %935 = vmatpush1.bf16.msra.mxu0 0
        %936 = vmatprep.subr.bf16.mxu0 0
        %937 = vmatpush1.bf16.msra.mxu0 0
        %938 = vmatprep.subr.bf16.mxu0 0
        %939 = vmatpush1.bf16.msra.mxu0 0
        %940 = vmatprep.subr.bf16.mxu0 0
        %941 = vmatpush1.bf16.msra.mxu0 0
        %942 = vmatprep.subr.bf16.mxu0 0
        %943 = vmatpush1.bf16.msra.mxu0 0
        %944 = vmatprep.subr.bf16.mxu0 0
        %945 = vmatpush1.bf16.msra.mxu0 0
        %946 = vmatprep.subr.bf16.mxu0 0
        %947 = vmatpush1.bf16.msra.mxu0 0
        %948 = vmatprep.subr.bf16.mxu0 0
        %949 = vmatpush1.bf16.msra.mxu0 0
        %950 = vmatprep.mubr.bf16.mxu0 0
        %951 = vmatmul.mubr.bf16.gmra.mrb[0].mxu0 %v916
        %v952 = vpop.f32.mrb[0].mxu0
        %v953 = vadd.f32 0.0, %v952
        %v954 = vpop.f32.mrb[0].mxu0
        %v955 = vpop.f32.mrb[0].mxu0
        %v956 = vpop.f32.mrb[0].mxu0
        %957 = vdwg.mxu0
        %v958 = vpack.c.bf16 %v953, %v953
        %v959 = vld [vmem:[#allocation5] sm:$0x3]
        %961 = vrot.lane.b32.xlu0 %v852, 124
        %v962 = vpop.permute.xlu0 %961
        %964 = vrot.lane.b32.xlu0 %v853, 124
        %v965 = vpop.permute.xlu0 %964
        %v967 = vsel %vm855, %v962, 0
        %v970 = vsel %vm855, %v965, 0
        %972 = vmatprep.subr.bf16.mxu0 0
        %973 = vmatpush1.bf16.xpose.msra.mxu0 %v970
        %974 = vmatprep.subr.bf16.mxu0 0
        %975 = vmatpush1.bf16.xpose.msra.mxu0 0
        %976 = vmatprep.subr.bf16.mxu0 0
        %977 = vmatpush1.bf16.xpose.msra.mxu0 0
        %978 = vmatprep.subr.bf16.mxu0 0
        %979 = vmatpush1.bf16.xpose.msra.mxu0 0
        %980 = vmatprep.subr.bf16.mxu0 0
        %981 = vmatpush1.bf16.xpose.msra.mxu0 0
        %982 = vmatprep.subr.bf16.mxu0 0
        %983 = vmatpush1.bf16.xpose.msra.mxu0 0
        %984 = vmatprep.subr.bf16.mxu0 0
        %985 = vmatpush1.bf16.xpose.msra.mxu0 0
        %986 = vmatprep.subr.bf16.mxu0 0
        %987 = vmatpush1.bf16.xpose.msra.mxu0 0
        %988 = vmatprep.subr.bf16.mxu0 0
        %989 = vmatpush1.bf16.xpose.msra.mxu0 0
        %990 = vmatprep.subr.bf16.mxu0 0
        %991 = vmatpush1.bf16.xpose.msra.mxu0 0
        %992 = vmatprep.subr.bf16.mxu0 0
        %993 = vmatpush1.bf16.xpose.msra.mxu0 0
        %994 = vmatprep.subr.bf16.mxu0 0
        %995 = vmatpush1.bf16.xpose.msra.mxu0 0
        %996 = vmatprep.subr.bf16.mxu0 0
        %997 = vmatpush1.bf16.xpose.msra.mxu0 0
        %998 = vmatprep.subr.bf16.mxu0 0
        %999 = vmatpush1.bf16.xpose.msra.mxu0 0
        %1000 = vmatprep.subr.bf16.mxu0 0
        %1001 = vmatpush1.bf16.xpose.msra.mxu0 0
        %1002 = vmatprep.subr.bf16.mxu0 0
        %1003 = vmatpush1.bf16.xpose.msra.mxu0 0
        %1004 = vmatprep.mubr.bf16.mxu0 0
        %1005 = vmatmul.mubr.bf16.gmra.mrb[0].mxu0 %v967
        %v1006 = vpop.f32.mrb[0].mxu0
        %v1007 = vadd.f32 0.0, %v1006
        %v1008 = vpop.f32.mrb[0].mxu0
        %v1009 = vpop.f32.mrb[0].mxu0
        %v1010 = vpop.f32.mrb[0].mxu0
        %1011 = vdwg.mxu0
        %v1012 = vsel %vm902, %v1007, -inf
        %1013 = vmax.xlane.f32.xlu0 %v1012
        %v1014 = vpop.xlane.xlu0 %1013
        %v1015 = vsub.f32 %v1007, %v1014
        %v1016 = vmul.f32 %v1015, 1.442695
        %v1017 = vpow.pop %v1016
        %v1018 = vsel %vm902, %v1017, 0.0
        %1019 = vadd.xlane.f32.xlu0 %v1018
        %v1020 = vpop.xlane.xlu0 %1019
        %v1021 = vrcp.pop %v1020
        %v1022 = vmul.f32 %v1017, %v1021
        %v1023 = vpack.c.bf16 %v1022, %v1022
        %1025 = vrot.lane.b32.xlu0 %v854, 124
        %v1026 = vpop.permute.xlu0 %1025
        %v1029 = vsel %vm902, %v1023, 0
        %1031 = vmatprep.subr.bf16.mxu0 0
        %1032 = vmatpush1.bf16.msra.mxu0 %v1026
        %1033 = vmatprep.subr.bf16.mxu0 0
        %1034 = vmatpush1.bf16.msra.mxu0 0
        %1035 = vmatprep.subr.bf16.mxu0 0
        %1036 = vmatpush1.bf16.msra.mxu0 0
        %1037 = vmatprep.subr.bf16.mxu0 0
        %1038 = vmatpush1.bf16.msra.mxu0 0
        %1039 = vmatprep.subr.bf16.mxu0 0
        %1040 = vmatpush1.bf16.msra.mxu0 0
        %1041 = vmatprep.subr.bf16.mxu0 0
        %1042 = vmatpush1.bf16.msra.mxu0 0
        %1043 = vmatprep.subr.bf16.mxu0 0
        %1044 = vmatpush1.bf16.msra.mxu0 0
        %1045 = vmatprep.subr.bf16.mxu0 0
        %1046 = vmatpush1.bf16.msra.mxu0 0
        %1047 = vmatprep.subr.bf16.mxu0 0
        %1048 = vmatpush1.bf16.msra.mxu0 0
        %1049 = vmatprep.subr.bf16.mxu0 0
        %1050 = vmatpush1.bf16.msra.mxu0 0
        %1051 = vmatprep.subr.bf16.mxu0 0
        %1052 = vmatpush1.bf16.msra.mxu0 0
        %1053 = vmatprep.subr.bf16.mxu0 0
        %1054 = vmatpush1.bf16.msra.mxu0 0
        %1055 = vmatprep.subr.bf16.mxu0 0
        %1056 = vmatpush1.bf16.msra.mxu0 0
        %1057 = vmatprep.subr.bf16.mxu0 0
        %1058 = vmatpush1.bf16.msra.mxu0 0
        %1059 = vmatprep.subr.bf16.mxu0 0
        %1060 = vmatpush1.bf16.msra.mxu0 0
        %1061 = vmatprep.subr.bf16.mxu0 0
        %1062 = vmatpush1.bf16.msra.mxu0 0
        %1063 = vmatprep.mubr.bf16.mxu0 0
        %1064 = vmatmul.mubr.bf16.gmra.mrb[0].mxu0 %v1029
        %v1065 = vpop.f32.mrb[0].mxu0
        %v1066 = vadd.f32 0.0, %v1065
        %v1067 = vpop.f32.mrb[0].mxu0
        %v1068 = vpop.f32.mrb[0].mxu0
        %v1069 = vpop.f32.mrb[0].mxu0
        %1070 = vdwg.mxu0
        %v1071 = vpack.c.bf16 %v1066, %v1066
        %s1072 = scalar_lea.vmem [#allocation5], 2
        %v1073 = vld [vmem:[%s1072] sm:$0x3]
        %v1075 = vsel %vm855, %v1071, 0
        %vm1077 = vcmask 1041408
        %v1079 = vsel %vm1077, %v1073, 0
        %1081 = vmatprep.subr.bf16.mxu0 0
        %1082 = vmatpush1.bf16.msra.mxu0 %v1079
        %1083 = vmatprep.subr.bf16.mxu0 0
        %1084 = vmatpush1.bf16.msra.mxu0 0
        %1085 = vmatprep.subr.bf16.mxu0 0
        %1086 = vmatpush1.bf16.msra.mxu0 0
        %1087 = vmatprep.subr.bf16.mxu0 0
        %1088 = vmatpush1.bf16.msra.mxu0 0
        %1089 = vmatprep.subr.bf16.mxu0 0
        %1090 = vmatpush1.bf16.msra.mxu0 0
        %1091 = vmatprep.subr.bf16.mxu0 0
        %1092 = vmatpush1.bf16.msra.mxu0 0
        %1093 = vmatprep.subr.bf16.mxu0 0
        %1094 = vmatpush1.bf16.msra.mxu0 0
        %1095 = vmatprep.subr.bf16.mxu0 0
        %1096 = vmatpush1.bf16.msra.mxu0 0
        %1097 = vmatprep.subr.bf16.mxu0 0
        %1098 = vmatpush1.bf16.msra.mxu0 0
        %1099 = vmatprep.subr.bf16.mxu0 0
        %1100 = vmatpush1.bf16.msra.mxu0 0
        %1101 = vmatprep.subr.bf16.mxu0 0
        %1102 = vmatpush1.bf16.msra.mxu0 0
        %1103 = vmatprep.subr.bf16.mxu0 0
        %1104 = vmatpush1.bf16.msra.mxu0 0
        %1105 = vmatprep.subr.bf16.mxu0 0
        %1106 = vmatpush1.bf16.msra.mxu0 0
        %1107 = vmatprep.subr.bf16.mxu0 0
        %1108 = vmatpush1.bf16.msra.mxu0 0
        %1109 = vmatprep.subr.bf16.mxu0 0
        %1110 = vmatpush1.bf16.msra.mxu0 0
        %1111 = vmatprep.subr.bf16.mxu0 0
        %1112 = vmatpush1.bf16.msra.mxu0 0
        %1113 = vmatprep.mubr.bf16.mxu0 0
        %1114 = vmatmul.mubr.bf16.gmra.mrb[0].mxu0 %v1075
        %v1115 = vpop.f32.mrb[0].mxu0
        %v1116 = vadd.f32 0.0, %v1115
        %v1117 = vpop.f32.mrb[0].mxu0
        %v1118 = vpop.f32.mrb[0].mxu0
        %v1119 = vpop.f32.mrb[0].mxu0
        %1120 = vdwg.mxu0
        %v1122 = vsel %vm855, %v958, 0
        %v1125 = vsel %vm1077, %v959, 0
        %1127 = vmatprep.subr.bf16.mxu0 0
        %1128 = vmatpush1.bf16.msra.mxu0 %v1125
        %1129 = vmatprep.subr.bf16.mxu0 0
        %1130 = vmatpush1.bf16.msra.mxu0 0
        %1131 = vmatprep.subr.bf16.mxu0 0
        %1132 = vmatpush1.bf16.msra.mxu0 0
        %1133 = vmatprep.subr.bf16.mxu0 0
        %1134 = vmatpush1.bf16.msra.mxu0 0
        %1135 = vmatprep.subr.bf16.mxu0 0
        %1136 = vmatpush1.bf16.msra.mxu0 0
        %1137 = vmatprep.subr.bf16.mxu0 0
        %1138 = vmatpush1.bf16.msra.mxu0 0
        %1139 = vmatprep.subr.bf16.mxu0 0
        %1140 = vmatpush1.bf16.msra.mxu0 0
        %1141 = vmatprep.subr.bf16.mxu0 0
        %1142 = vmatpush1.bf16.msra.mxu0 0
        %1143 = vmatprep.subr.bf16.mxu0 0
        %1144 = vmatpush1.bf16.msra.mxu0 0
        %1145 = vmatprep.subr.bf16.mxu0 0
        %1146 = vmatpush1.bf16.msra.mxu0 0
        %1147 = vmatprep.subr.bf16.mxu0 0
        %1148 = vmatpush1.bf16.msra.mxu0 0
        %1149 = vmatprep.subr.bf16.mxu0 0
        %1150 = vmatpush1.bf16.msra.mxu0 0
        %1151 = vmatprep.subr.bf16.mxu0 0
        %1152 = vmatpush1.bf16.msra.mxu0 0
        %1153 = vmatprep.subr.bf16.mxu0 0
        %1154 = vmatpush1.bf16.msra.mxu0 0
        %1155 = vmatprep.subr.bf16.mxu0 0
        %1156 = vmatpush1.bf16.msra.mxu0 0
        %1157 = vmatprep.subr.bf16.mxu0 0
        %1158 = vmatpush1.bf16.msra.mxu0 0
        %1159 = vmatprep.mubr.bf16.mxu0 0
        %1160 = vmatmul.mubr.bf16.gmra.mrb[0].mxu0 %v1122
        %v1161 = vpop.f32.mrb[0].mxu0
        %v1162 = vadd.f32 %v1116, %v1161
        %v1163 = vpop.f32.mrb[0].mxu0
        %v1164 = vpop.f32.mrb[0].mxu0
        %v1165 = vpop.f32.mrb[0].mxu0
        %1166 = vdwg.mxu0
        %1167 = vrot.lane.b32.xlu0 %v852, 120
        %v1168 = vpop.permute.xlu0 %1167
        %1169 = vrot.lane.b32.xlu0 %v853, 120
        %v1170 = vpop.permute.xlu0 %1169
        %v1172 = vsel %vm855, %v1168, 0
        %v1175 = vsel %vm855, %v1170, 0
        %1177 = vmatprep.subr.bf16.mxu0 0
        %1178 = vmatpush1.bf16.xpose.msra.mxu0 %v1175
        %1179 = vmatprep.subr.bf16.mxu0 0
        %1180 = vmatpush1.bf16.xpose.msra.mxu0 0
        %1181 = vmatprep.subr.bf16.mxu0 0
        %1182 = vmatpush1.bf16.xpose.msra.mxu0 0
        %1183 = vmatprep.subr.bf16.mxu0 0
        %1184 = vmatpush1.bf16.xpose.msra.mxu0 0
        %1185 = vmatprep.subr.bf16.mxu0 0
        %1186 = vmatpush1.bf16.xpose.msra.mxu0 0
        %1187 = vmatprep.subr.bf16.mxu0 0
        %1188 = vmatpush1.bf16.xpose.msra.mxu0 0
        %1189 = vmatprep.subr.bf16.mxu0 0
        %1190 = vmatpush1.bf16.xpose.msra.mxu0 0
        %1191 = vmatprep.subr.bf16.mxu0 0
        %1192 = vmatpush1.bf16.xpose.msra.mxu0 0
        %1193 = vmatprep.subr.bf16.mxu0 0
        %1194 = vmatpush1.bf16.xpose.msra.mxu0 0
        %1195 = vmatprep.subr.bf16.mxu0 0
        %1196 = vmatpush1.bf16.xpose.msra.mxu0 0
        %1197 = vmatprep.subr.bf16.mxu0 0
        %1198 = vmatpush1.bf16.xpose.msra.mxu0 0
        %1199 = vmatprep.subr.bf16.mxu0 0
        %1200 = vmatpush1.bf16.xpose.msra.mxu0 0
        %1201 = vmatprep.subr.bf16.mxu0 0
        %1202 = vmatpush1.bf16.xpose.msra.mxu0 0
        %1203 = vmatprep.subr.bf16.mxu0 0
        %1204 = vmatpush1.bf16.xpose.msra.mxu0 0
        %1205 = vmatprep.subr.bf16.mxu0 0
        %1206 = vmatpush1.bf16.xpose.msra.mxu0 0
        %1207 = vmatprep.subr.bf16.mxu0 0
        %1208 = vmatpush1.bf16.xpose.msra.mxu0 0
        %1209 = vmatprep.mubr.bf16.mxu0 0
        %1210 = vmatmul.mubr.bf16.gmra.mrb[0].mxu0 %v1172
        %v1211 = vpop.f32.mrb[0].mxu0
        %v1212 = vadd.f32 0.0, %v1211
        %v1213 = vpop.f32.mrb[0].mxu0
        %v1214 = vpop.f32.mrb[0].mxu0
        %v1215 = vpop.f32.mrb[0].mxu0
        %1216 = vdwg.mxu0
        %v1217 = vsel %vm902, %v1212, -inf
        %1218 = vmax.xlane.f32.xlu0 %v1217
        %v1219 = vpop.xlane.xlu0 %1218
        %v1220 = vsub.f32 %v1212, %v1219
        %v1221 = vmul.f32 %v1220, 1.442695
        %v1222 = vpow.pop %v1221
        %v1223 = vsel %vm902, %v1222, 0.0
        %1224 = vadd.xlane.f32.xlu0 %v1223
        %v1225 = vpop.xlane.xlu0 %1224
        %v1226 = vrcp.pop %v1225
        %v1227 = vmul.f32 %v1222, %v1226
        %v1228 = vpack.c.bf16 %v1227, %v1227
        %1229 = vrot.lane.b32.xlu0 %v854, 120
        %v1230 = vpop.permute.xlu0 %1229
        %v1233 = vsel %vm902, %v1228, 0
        %1235 = vmatprep.subr.bf16.mxu0 0
        %1236 = vmatpush1.bf16.msra.mxu0 %v1230
        %1237 = vmatprep.subr.bf16.mxu0 0
        %1238 = vmatpush1.bf16.msra.mxu0 0
        %1239 = vmatprep.subr.bf16.mxu0 0
        %1240 = vmatpush1.bf16.msra.mxu0 0
        %1241 = vmatprep.subr.bf16.mxu0 0
        %1242 = vmatpush1.bf16.msra.mxu0 0
        %1243 = vmatprep.subr.bf16.mxu0 0
        %1244 = vmatpush1.bf16.msra.mxu0 0
        %1245 = vmatprep.subr.bf16.mxu0 0
        %1246 = vmatpush1.bf16.msra.mxu0 0
        %1247 = vmatprep.subr.bf16.mxu0 0
        %1248 = vmatpush1.bf16.msra.mxu0 0
        %1249 = vmatprep.subr.bf16.mxu0 0
        %1250 = vmatpush1.bf16.msra.mxu0 0
        %1251 = vmatprep.subr.bf16.mxu0 0
        %1252 = vmatpush1.bf16.msra.mxu0 0
        %1253 = vmatprep.subr.bf16.mxu0 0
        %1254 = vmatpush1.bf16.msra.mxu0 0
        %1255 = vmatprep.subr.bf16.mxu0 0
        %1256 = vmatpush1.bf16.msra.mxu0 0
        %1257 = vmatprep.subr.bf16.mxu0 0
        %1258 = vmatpush1.bf16.msra.mxu0 0
        %1259 = vmatprep.subr.bf16.mxu0 0
        %1260 = vmatpush1.bf16.msra.mxu0 0
        %1261 = vmatprep.subr.bf16.mxu0 0
        %1262 = vmatpush1.bf16.msra.mxu0 0
        %1263 = vmatprep.subr.bf16.mxu0 0
        %1264 = vmatpush1.bf16.msra.mxu0 0
        %1265 = vmatprep.subr.bf16.mxu0 0
        %1266 = vmatpush1.bf16.msra.mxu0 0
        %1267 = vmatprep.mubr.bf16.mxu0 0
        %1268 = vmatmul.mubr.bf16.gmra.mrb[0].mxu0 %v1233
        %v1269 = vpop.f32.mrb[0].mxu0
        %v1270 = vadd.f32 0.0, %v1269
        %v1271 = vpop.f32.mrb[0].mxu0
        %v1272 = vpop.f32.mrb[0].mxu0
        %v1273 = vpop.f32.mrb[0].mxu0
        %1274 = vdwg.mxu0
        %v1275 = vpack.c.bf16 %v1270, %v1270
        %s1276 = scalar_lea.vmem [#allocation5], 4
        %v1277 = vld [vmem:[%s1276] sm:$0x3]
        %v1279 = vsel %vm855, %v1275, 0
        %v1282 = vsel %vm1077, %v1277, 0
        %1284 = vmatprep.subr.bf16.mxu0 0
        %1285 = vmatpush1.bf16.msra.mxu0 %v1282
        %1286 = vmatprep.subr.bf16.mxu0 0
        %1287 = vmatpush1.bf16.msra.mxu0 0
        %1288 = vmatprep.subr.bf16.mxu0 0
        %1289 = vmatpush1.bf16.msra.mxu0 0
        %1290 = vmatprep.subr.bf16.mxu0 0
        %1291 = vmatpush1.bf16.msra.mxu0 0
        %1292 = vmatprep.subr.bf16.mxu0 0
        %1293 = vmatpush1.bf16.msra.mxu0 0
        %1294 = vmatprep.subr.bf16.mxu0 0
        %1295 = vmatpush1.bf16.msra.mxu0 0
        %1296 = vmatprep.subr.bf16.mxu0 0
        %1297 = vmatpush1.bf16.msra.mxu0 0
        %1298 = vmatprep.subr.bf16.mxu0 0
        %1299 = vmatpush1.bf16.msra.mxu0 0
        %1300 = vmatprep.subr.bf16.mxu0 0
        %1301 = vmatpush1.bf16.msra.mxu0 0
        %1302 = vmatprep.subr.bf16.mxu0 0
        %1303 = vmatpush1.bf16.msra.mxu0 0
        %1304 = vmatprep.subr.bf16.mxu0 0
        %1305 = vmatpush1.bf16.msra.mxu0 0
        %1306 = vmatprep.subr.bf16.mxu0 0
        %1307 = vmatpush1.bf16.msra.mxu0 0
        %1308 = vmatprep.subr.bf16.mxu0 0
        %1309 = vmatpush1.bf16.msra.mxu0 0
        %1310 = vmatprep.subr.bf16.mxu0 0
        %1311 = vmatpush1.bf16.msra.mxu0 0
        %1312 = vmatprep.subr.bf16.mxu0 0
        %1313 = vmatpush1.bf16.msra.mxu0 0
        %1314 = vmatprep.subr.bf16.mxu0 0
        %1315 = vmatpush1.bf16.msra.mxu0 0
        %1316 = vmatprep.mubr.bf16.mxu0 0
        %1317 = vmatmul.mubr.bf16.gmra.mrb[0].mxu0 %v1279
        %v1318 = vpop.f32.mrb[0].mxu0
        %v1319 = vadd.f32 0.0, %v1318
        %v1320 = vpop.f32.mrb[0].mxu0
        %v1321 = vpop.f32.mrb[0].mxu0
        %v1322 = vpop.f32.mrb[0].mxu0
        %1323 = vdwg.mxu0
        %v1324 = vadd.f32 %v1162, %v1319
        %1325 = vrot.lane.b32.xlu0 %v852, 116
        %v1326 = vpop.permute.xlu0 %1325
        %1327 = vrot.lane.b32.xlu0 %v853, 116
        %v1328 = vpop.permute.xlu0 %1327
        %v1330 = vsel %vm855, %v1326, 0
        %v1333 = vsel %vm855, %v1328, 0
        %1335 = vmatprep.subr.bf16.mxu0 0
        %1336 = vmatpush1.bf16.xpose.msra.mxu0 %v1333
        %1337 = vmatprep.subr.bf16.mxu0 0
        %1338 = vmatpush1.bf16.xpose.msra.mxu0 0
        %1339 = vmatprep.subr.bf16.mxu0 0
        %1340 = vmatpush1.bf16.xpose.msra.mxu0 0
        %1341 = vmatprep.subr.bf16.mxu0 0
        %1342 = vmatpush1.bf16.xpose.msra.mxu0 0
        %1343 = vmatprep.subr.bf16.mxu0 0
        %1344 = vmatpush1.bf16.xpose.msra.mxu0 0
        %1345 = vmatprep.subr.bf16.mxu0 0
        %1346 = vmatpush1.bf16.xpose.msra.mxu0 0
        %1347 = vmatprep.subr.bf16.mxu0 0
        %1348 = vmatpush1.bf16.xpose.msra.mxu0 0
        %1349 = vmatprep.subr.bf16.mxu0 0
        %1350 = vmatpush1.bf16.xpose.msra.mxu0 0
        %1351 = vmatprep.subr.bf16.mxu0 0
        %1352 = vmatpush1.bf16.xpose.msra.mxu0 0
        %1353 = vmatprep.subr.bf16.mxu0 0
        %1354 = vmatpush1.bf16.xpose.msra.mxu0 0
        %1355 = vmatprep.subr.bf16.mxu0 0
        %1356 = vmatpush1.bf16.xpose.msra.mxu0 0
        %1357 = vmatprep.subr.bf16.mxu0 0
        %1358 = vmatpush1.bf16.xpose.msra.mxu0 0
        %1359 = vmatprep.subr.bf16.mxu0 0
        %1360 = vmatpush1.bf16.xpose.msra.mxu0 0
        %1361 = vmatprep.subr.bf16.mxu0 0
        %1362 = vmatpush1.bf16.xpose.msra.mxu0 0
        %1363 = vmatprep.subr.bf16.mxu0 0
        %1364 = vmatpush1.bf16.xpose.msra.mxu0 0
        %1365 = vmatprep.subr.bf16.mxu0 0
        %1366 = vmatpush1.bf16.xpose.msra.mxu0 0
        %1367 = vmatprep.mubr.bf16.mxu0 0
        %1368 = vmatmul.mubr.bf16.gmra.mrb[0].mxu0 %v1330
        %v1369 = vpop.f32.mrb[0].mxu0
        %v1370 = vadd.f32 0.0, %v1369
        %v1371 = vpop.f32.mrb[0].mxu0
        %v1372 = vpop.f32.mrb[0].mxu0
        %v1373 = vpop.f32.mrb[0].mxu0
        %1374 = vdwg.mxu0
        %v1375 = vsel %vm902, %v1370, -inf
        %1376 = vmax.xlane.f32.xlu0 %v1375
        %v1377 = vpop.xlane.xlu0 %1376
        %v1378 = vsub.f32 %v1370, %v1377
        %v1379 = vmul.f32 %v1378, 1.442695
        %v1380 = vpow.pop %v1379
        %v1381 = vsel %vm902, %v1380, 0.0
        %1382 = vadd.xlane.f32.xlu0 %v1381
        %v1383 = vpop.xlane.xlu0 %1382
        %v1384 = vrcp.pop %v1383
        %v1385 = vmul.f32 %v1380, %v1384
        %v1386 = vpack.c.bf16 %v1385, %v1385
        %1387 = vrot.lane.b32.xlu0 %v854, 116
        %v1388 = vpop.permute.xlu0 %1387
        %v1391 = vsel %vm902, %v1386, 0
        %1393 = vmatprep.subr.bf16.mxu0 0
        %1394 = vmatpush1.bf16.msra.mxu0 %v1388
        %1395 = vmatprep.subr.bf16.mxu0 0
        %1396 = vmatpush1.bf16.msra.mxu0 0
        %1397 = vmatprep.subr.bf16.mxu0 0
        %1398 = vmatpush1.bf16.msra.mxu0 0
        %1399 = vmatprep.subr.bf16.mxu0 0
        %1400 = vmatpush1.bf16.msra.mxu0 0
        %1401 = vmatprep.subr.bf16.mxu0 0
        %1402 = vmatpush1.bf16.msra.mxu0 0
        %1403 = vmatprep.subr.bf16.mxu0 0
        %1404 = vmatpush1.bf16.msra.mxu0 0
        %1405 = vmatprep.subr.bf16.mxu0 0
        %1406 = vmatpush1.bf16.msra.mxu0 0
        %1407 = vmatprep.subr.bf16.mxu0 0
        %1408 = vmatpush1.bf16.msra.mxu0 0
        %1409 = vmatprep.subr.bf16.mxu0 0
        %1410 = vmatpush1.bf16.msra.mxu0 0
        %1411 = vmatprep.subr.bf16.mxu0 0
        %1412 = vmatpush1.bf16.msra.mxu0 0
        %1413 = vmatprep.subr.bf16.mxu0 0
        %1414 = vmatpush1.bf16.msra.mxu0 0
        %1415 = vmatprep.subr.bf16.mxu0 0
        %1416 = vmatpush1.bf16.msra.mxu0 0
        %1417 = vmatprep.subr.bf16.mxu0 0
        %1418 = vmatpush1.bf16.msra.mxu0 0
        %1419 = vmatprep.subr.bf16.mxu0 0
        %1420 = vmatpush1.bf16.msra.mxu0 0
        %1421 = vmatprep.subr.bf16.mxu0 0
        %1422 = vmatpush1.bf16.msra.mxu0 0
        %1423 = vmatprep.subr.bf16.mxu0 0
        %1424 = vmatpush1.bf16.msra.mxu0 0
        %1425 = vmatprep.mubr.bf16.mxu0 0
        %1426 = vmatmul.mubr.bf16.gmra.mrb[0].mxu0 %v1391
        %v1427 = vpop.f32.mrb[0].mxu0
        %v1428 = vadd.f32 0.0, %v1427
        %v1429 = vpop.f32.mrb[0].mxu0
        %v1430 = vpop.f32.mrb[0].mxu0
        %v1431 = vpop.f32.mrb[0].mxu0
        %1432 = vdwg.mxu0
        %v1433 = vpack.c.bf16 %v1428, %v1428
        %s1434 = scalar_lea.vmem [#allocation5], 6
        %v1435 = vld [vmem:[%s1434] sm:$0x3]
        %v1437 = vsel %vm855, %v1433, 0
        %v1440 = vsel %vm1077, %v1435, 0
        %1442 = vmatprep.subr.bf16.mxu0 0
        %1443 = vmatpush1.bf16.msra.mxu0 %v1440
        %1444 = vmatprep.subr.bf16.mxu0 0
        %1445 = vmatpush1.bf16.msra.mxu0 0
        %1446 = vmatprep.subr.bf16.mxu0 0
        %1447 = vmatpush1.bf16.msra.mxu0 0
        %1448 = vmatprep.subr.bf16.mxu0 0
        %1449 = vmatpush1.bf16.msra.mxu0 0
        %1450 = vmatprep.subr.bf16.mxu0 0
        %1451 = vmatpush1.bf16.msra.mxu0 0
        %1452 = vmatprep.subr.bf16.mxu0 0
        %1453 = vmatpush1.bf16.msra.mxu0 0
        %1454 = vmatprep.subr.bf16.mxu0 0
        %1455 = vmatpush1.bf16.msra.mxu0 0
        %1456 = vmatprep.subr.bf16.mxu0 0
        %1457 = vmatpush1.bf16.msra.mxu0 0
        %1458 = vmatprep.subr.bf16.mxu0 0
        %1459 = vmatpush1.bf16.msra.mxu0 0
        %1460 = vmatprep.subr.bf16.mxu0 0
        %1461 = vmatpush1.bf16.msra.mxu0 0
        %1462 = vmatprep.subr.bf16.mxu0 0
        %1463 = vmatpush1.bf16.msra.mxu0 0
        %1464 = vmatprep.subr.bf16.mxu0 0
        %1465 = vmatpush1.bf16.msra.mxu0 0
        %1466 = vmatprep.subr.bf16.mxu0 0
        %1467 = vmatpush1.bf16.msra.mxu0 0
        %1468 = vmatprep.subr.bf16.mxu0 0
        %1469 = vmatpush1.bf16.msra.mxu0 0
        %1470 = vmatprep.subr.bf16.mxu0 0
        %1471 = vmatpush1.bf16.msra.mxu0 0
        %1472 = vmatprep.subr.bf16.mxu0 0
        %1473 = vmatpush1.bf16.msra.mxu0 0
        %1474 = vmatprep.mubr.bf16.mxu0 0
        %1475 = vmatmul.mubr.bf16.gmra.mrb[0].mxu0 %v1437
        %v1476 = vpop.f32.mrb[0].mxu0
        %v1477 = vadd.f32 0.0, %v1476
        %v1478 = vpop.f32.mrb[0].mxu0
        %v1479 = vpop.f32.mrb[0].mxu0
        %v1480 = vpop.f32.mrb[0].mxu0
        %1481 = vdwg.mxu0
        %v1482 = vadd.f32 %v1324, %v1477
        %1483 = vrot.lane.b32.xlu0 %v852, 112
        %v1484 = vpop.permute.xlu0 %1483
        %1485 = vrot.lane.b32.xlu0 %v853, 112
        %v1486 = vpop.permute.xlu0 %1485
        %v1488 = vsel %vm855, %v1484, 0
        %v1491 = vsel %vm855, %v1486, 0
        %1493 = vmatprep.subr.bf16.mxu0 0
        %1494 = vmatpush1.bf16.xpose.msra.mxu0 %v1491
        %1495 = vmatprep.subr.bf16.mxu0 0
        %1496 = vmatpush1.bf16.xpose.msra.mxu0 0
        %1497 = vmatprep.subr.bf16.mxu0 0
        %1498 = vmatpush1.bf16.xpose.msra.mxu0 0
        %1499 = vmatprep.subr.bf16.mxu0 0
        %1500 = vmatpush1.bf16.xpose.msra.mxu0 0
        %1501 = vmatprep.subr.bf16.mxu0 0
        %1502 = vmatpush1.bf16.xpose.msra.mxu0 0
        %1503 = vmatprep.subr.bf16.mxu0 0
        %1504 = vmatpush1.bf16.xpose.msra.mxu0 0
        %1505 = vmatprep.subr.bf16.mxu0 0
        %1506 = vmatpush1.bf16.xpose.msra.mxu0 0
        %1507 = vmatprep.subr.bf16.mxu0 0
        %1508 = vmatpush1.bf16.xpose.msra.mxu0 0
        %1509 = vmatprep.subr.bf16.mxu0 0
        %1510 = vmatpush1.bf16.xpose.msra.mxu0 0
        %1511 = vmatprep.subr.bf16.mxu0 0
        %1512 = vmatpush1.bf16.xpose.msra.mxu0 0
        %1513 = vmatprep.subr.bf16.mxu0 0
        %1514 = vmatpush1.bf16.xpose.msra.mxu0 0
        %1515 = vmatprep.subr.bf16.mxu0 0
        %1516 = vmatpush1.bf16.xpose.msra.mxu0 0
        %1517 = vmatprep.subr.bf16.mxu0 0
        %1518 = vmatpush1.bf16.xpose.msra.mxu0 0
        %1519 = vmatprep.subr.bf16.mxu0 0
        %1520 = vmatpush1.bf16.xpose.msra.mxu0 0
        %1521 = vmatprep.subr.bf16.mxu0 0
        %1522 = vmatpush1.bf16.xpose.msra.mxu0 0
        %1523 = vmatprep.subr.bf16.mxu0 0
        %1524 = vmatpush1.bf16.xpose.msra.mxu0 0
        %1525 = vmatprep.mubr.bf16.mxu0 0
        %1526 = vmatmul.mubr.bf16.gmra.mrb[0].mxu0 %v1488
        %v1527 = vpop.f32.mrb[0].mxu0
        %v1528 = vadd.f32 0.0, %v1527
        %v1529 = vpop.f32.mrb[0].mxu0
        %v1530 = vpop.f32.mrb[0].mxu0
        %v1531 = vpop.f32.mrb[0].mxu0
        %1532 = vdwg.mxu0
        %v1533 = vsel %vm902, %v1528, -inf
        %1534 = vmax.xlane.f32.xlu0 %v1533
        %v1535 = vpop.xlane.xlu0 %1534
        %v1536 = vsub.f32 %v1528, %v1535
        %v1537 = vmul.f32 %v1536, 1.442695
        %v1538 = vpow.pop %v1537
        %v1539 = vsel %vm902, %v1538, 0.0
        %1540 = vadd.xlane.f32.xlu0 %v1539
        %v1541 = vpop.xlane.xlu0 %1540
        %v1542 = vrcp.pop %v1541
        %v1543 = vmul.f32 %v1538, %v1542
        %v1544 = vpack.c.bf16 %v1543, %v1543
        %1545 = vrot.lane.b32.xlu0 %v854, 112
        %v1546 = vpop.permute.xlu0 %1545
        %v1549 = vsel %vm902, %v1544, 0
        %1551 = vmatprep.subr.bf16.mxu0 0
        %1552 = vmatpush1.bf16.msra.mxu0 %v1546
        %1553 = vmatprep.subr.bf16.mxu0 0
        %1554 = vmatpush1.bf16.msra.mxu0 0
        %1555 = vmatprep.subr.bf16.mxu0 0
        %1556 = vmatpush1.bf16.msra.mxu0 0
        %1557 = vmatprep.subr.bf16.mxu0 0
        %1558 = vmatpush1.bf16.msra.mxu0 0
        %1559 = vmatprep.subr.bf16.mxu0 0
        %1560 = vmatpush1.bf16.msra.mxu0 0
        %1561 = vmatprep.subr.bf16.mxu0 0
        %1562 = vmatpush1.bf16.msra.mxu0 0
        %1563 = vmatprep.subr.bf16.mxu0 0
        %1564 = vmatpush1.bf16.msra.mxu0 0
        %1565 = vmatprep.subr.bf16.mxu0 0
        %1566 = vmatpush1.bf16.msra.mxu0 0
        %1567 = vmatprep.subr.bf16.mxu0 0
        %1568 = vmatpush1.bf16.msra.mxu0 0
        %1569 = vmatprep.subr.bf16.mxu0 0
        %1570 = vmatpush1.bf16.msra.mxu0 0
        %1571 = vmatprep.subr.bf16.mxu0 0
        %1572 = vmatpush1.bf16.msra.mxu0 0
        %1573 = vmatprep.subr.bf16.mxu0 0
        %1574 = vmatpush1.bf16.msra.mxu0 0
        %1575 = vmatprep.subr.bf16.mxu0 0
        %1576 = vmatpush1.bf16.msra.mxu0 0
        %1577 = vmatprep.subr.bf16.mxu0 0
        %1578 = vmatpush1.bf16.msra.mxu0 0
        %1579 = vmatprep.subr.bf16.mxu0 0
        %1580 = vmatpush1.bf16.msra.mxu0 0
        %1581 = vmatprep.subr.bf16.mxu0 0
        %1582 = vmatpush1.bf16.msra.mxu0 0
        %1583 = vmatprep.mubr.bf16.mxu0 0
        %1584 = vmatmul.mubr.bf16.gmra.mrb[0].mxu0 %v1549
        %v1585 = vpop.f32.mrb[0].mxu0
        %v1586 = vadd.f32 0.0, %v1585
        %v1587 = vpop.f32.mrb[0].mxu0
        %v1588 = vpop.f32.mrb[0].mxu0
        %v1589 = vpop.f32.mrb[0].mxu0
        %1590 = vdwg.mxu0
        %v1591 = vpack.c.bf16 %v1586, %v1586
        %s1592 = scalar_lea.vmem [#allocation5], 8
        %v1593 = vld [vmem:[%s1592] sm:$0x3]
        %v1595 = vsel %vm855, %v1591, 0
        %v1598 = vsel %vm1077, %v1593, 0
        %1600 = vmatprep.subr.bf16.mxu0 0
        %1601 = vmatpush1.bf16.msra.mxu0 %v1598
        %1602 = vmatprep.subr.bf16.mxu0 0
        %1603 = vmatpush1.bf16.msra.mxu0 0
        %1604 = vmatprep.subr.bf16.mxu0 0
        %1605 = vmatpush1.bf16.msra.mxu0 0
        %1606 = vmatprep.subr.bf16.mxu0 0
        %1607 = vmatpush1.bf16.msra.mxu0 0
        %1608 = vmatprep.subr.bf16.mxu0 0
        %1609 = vmatpush1.bf16.msra.mxu0 0
        %1610 = vmatprep.subr.bf16.mxu0 0
        %1611 = vmatpush1.bf16.msra.mxu0 0
        %1612 = vmatprep.subr.bf16.mxu0 0
        %1613 = vmatpush1.bf16.msra.mxu0 0
        %1614 = vmatprep.subr.bf16.mxu0 0
        %1615 = vmatpush1.bf16.msra.mxu0 0
        %1616 = vmatprep.subr.bf16.mxu0 0
        %1617 = vmatpush1.bf16.msra.mxu0 0
        %1618 = vmatprep.subr.bf16.mxu0 0
        %1619 = vmatpush1.bf16.msra.mxu0 0
        %1620 = vmatprep.subr.bf16.mxu0 0
        %1621 = vmatpush1.bf16.msra.mxu0 0
        %1622 = vmatprep.subr.bf16.mxu0 0
        %1623 = vmatpush1.bf16.msra.mxu0 0
        %1624 = vmatprep.subr.bf16.mxu0 0
        %1625 = vmatpush1.bf16.msra.mxu0 0
        %1626 = vmatprep.subr.bf16.mxu0 0
        %1627 = vmatpush1.bf16.msra.mxu0 0
        %1628 = vmatprep.subr.bf16.mxu0 0
        %1629 = vmatpush1.bf16.msra.mxu0 0
        %1630 = vmatprep.subr.bf16.mxu0 0
        %1631 = vmatpush1.bf16.msra.mxu0 0
        %1632 = vmatprep.mubr.bf16.mxu0 0
        %1633 = vmatmul.mubr.bf16.gmra.mrb[0].mxu0 %v1595
        %v1634 = vpop.f32.mrb[0].mxu0
        %v1635 = vadd.f32 0.0, %v1634
        %v1636 = vpop.f32.mrb[0].mxu0
        %v1637 = vpop.f32.mrb[0].mxu0
        %v1638 = vpop.f32.mrb[0].mxu0
        %1639 = vdwg.mxu0
        %v1640 = vadd.f32 %v1482, %v1635
        %1641 = vrot.lane.b32.xlu0 %v852, 108
        %v1642 = vpop.permute.xlu0 %1641
        %1643 = vrot.lane.b32.xlu0 %v853, 108
        %v1644 = vpop.permute.xlu0 %1643
        %v1646 = vsel %vm855, %v1642, 0
        %v1649 = vsel %vm855, %v1644, 0
        %1651 = vmatprep.subr.bf16.mxu0 0
        %1652 = vmatpush1.bf16.xpose.msra.mxu0 %v1649
        %1653 = vmatprep.subr.bf16.mxu0 0
        %1654 = vmatpush1.bf16.xpose.msra.mxu0 0
        %1655 = vmatprep.subr.bf16.mxu0 0
        %1656 = vmatpush1.bf16.xpose.msra.mxu0 0
        %1657 = vmatprep.subr.bf16.mxu0 0
        %1658 = vmatpush1.bf16.xpose.msra.mxu0 0
        %1659 = vmatprep.subr.bf16.mxu0 0
        %1660 = vmatpush1.bf16.xpose.msra.mxu0 0
        %1661 = vmatprep.subr.bf16.mxu0 0
        %1662 = vmatpush1.bf16.xpose.msra.mxu0 0
        %1663 = vmatprep.subr.bf16.mxu0 0
        %1664 = vmatpush1.bf16.xpose.msra.mxu0 0
        %1665 = vmatprep.subr.bf16.mxu0 0
        %1666 = vmatpush1.bf16.xpose.msra.mxu0 0
        %1667 = vmatprep.subr.bf16.mxu0 0
        %1668 = vmatpush1.bf16.xpose.msra.mxu0 0
        %1669 = vmatprep.subr.bf16.mxu0 0
        %1670 = vmatpush1.bf16.xpose.msra.mxu0 0
        %1671 = vmatprep.subr.bf16.mxu0 0
        %1672 = vmatpush1.bf16.xpose.msra.mxu0 0
        %1673 = vmatprep.subr.bf16.mxu0 0
        %1674 = vmatpush1.bf16.xpose.msra.mxu0 0
        %1675 = vmatprep.subr.bf16.mxu0 0
        %1676 = vmatpush1.bf16.xpose.msra.mxu0 0
        %1677 = vmatprep.subr.bf16.mxu0 0
        %1678 = vmatpush1.bf16.xpose.msra.mxu0 0
        %1679 = vmatprep.subr.bf16.mxu0 0
        %1680 = vmatpush1.bf16.xpose.msra.mxu0 0
        %1681 = vmatprep.subr.bf16.mxu0 0
        %1682 = vmatpush1.bf16.xpose.msra.mxu0 0
        %1683 = vmatprep.mubr.bf16.mxu0 0
        %1684 = vmatmul.mubr.bf16.gmra.mrb[0].mxu0 %v1646
        %v1685 = vpop.f32.mrb[0].mxu0
        %v1686 = vadd.f32 0.0, %v1685
        %v1687 = vpop.f32.mrb[0].mxu0
        %v1688 = vpop.f32.mrb[0].mxu0
        %v1689 = vpop.f32.mrb[0].mxu0
        %1690 = vdwg.mxu0
        %v1691 = vsel %vm902, %v1686, -inf
        %1692 = vmax.xlane.f32.xlu0 %v1691
        %v1693 = vpop.xlane.xlu0 %1692
        %v1694 = vsub.f32 %v1686, %v1693
        %v1695 = vmul.f32 %v1694, 1.442695
        %v1696 = vpow.pop %v1695
        %v1697 = vsel %vm902, %v1696, 0.0
        %1698 = vadd.xlane.f32.xlu0 %v1697
        %v1699 = vpop.xlane.xlu0 %1698
        %v1700 = vrcp.pop %v1699
        %v1701 = vmul.f32 %v1696, %v1700
        %v1702 = vpack.c.bf16 %v1701, %v1701
        %1703 = vrot.lane.b32.xlu0 %v854, 108
        %v1704 = vpop.permute.xlu0 %1703
        %v1707 = vsel %vm902, %v1702, 0
        %1709 = vmatprep.subr.bf16.mxu0 0
        %1710 = vmatpush1.bf16.msra.mxu0 %v1704
        %1711 = vmatprep.subr.bf16.mxu0 0
        %1712 = vmatpush1.bf16.msra.mxu0 0
        %1713 = vmatprep.subr.bf16.mxu0 0
        %1714 = vmatpush1.bf16.msra.mxu0 0
        %1715 = vmatprep.subr.bf16.mxu0 0
        %1716 = vmatpush1.bf16.msra.mxu0 0
        %1717 = vmatprep.subr.bf16.mxu0 0
        %1718 = vmatpush1.bf16.msra.mxu0 0
        %1719 = vmatprep.subr.bf16.mxu0 0
        %1720 = vmatpush1.bf16.msra.mxu0 0
        %1721 = vmatprep.subr.bf16.mxu0 0
        %1722 = vmatpush1.bf16.msra.mxu0 0
        %1723 = vmatprep.subr.bf16.mxu0 0
        %1724 = vmatpush1.bf16.msra.mxu0 0
        %1725 = vmatprep.subr.bf16.mxu0 0
        %1726 = vmatpush1.bf16.msra.mxu0 0
        %1727 = vmatprep.subr.bf16.mxu0 0
        %1728 = vmatpush1.bf16.msra.mxu0 0
        %1729 = vmatprep.subr.bf16.mxu0 0
        %1730 = vmatpush1.bf16.msra.mxu0 0
        %1731 = vmatprep.subr.bf16.mxu0 0
        %1732 = vmatpush1.bf16.msra.mxu0 0
        %1733 = vmatprep.subr.bf16.mxu0 0
        %1734 = vmatpush1.bf16.msra.mxu0 0
        %1735 = vmatprep.subr.bf16.mxu0 0
        %1736 = vmatpush1.bf16.msra.mxu0 0
        %1737 = vmatprep.subr.bf16.mxu0 0
        %1738 = vmatpush1.bf16.msra.mxu0 0
        %1739 = vmatprep.subr.bf16.mxu0 0
        %1740 = vmatpush1.bf16.msra.mxu0 0
        %1741 = vmatprep.mubr.bf16.mxu0 0
        %1742 = vmatmul.mubr.bf16.gmra.mrb[0].mxu0 %v1707
        %v1743 = vpop.f32.mrb[0].mxu0
        %v1744 = vadd.f32 0.0, %v1743
        %v1745 = vpop.f32.mrb[0].mxu0
        %v1746 = vpop.f32.mrb[0].mxu0
        %v1747 = vpop.f32.mrb[0].mxu0
        %1748 = vdwg.mxu0
        %v1749 = vpack.c.bf16 %v1744, %v1744
        %s1750 = scalar_lea.vmem [#allocation5], 10
        %v1751 = vld [vmem:[%s1750] sm:$0x3]
        %v1753 = vsel %vm855, %v1749, 0
        %v1756 = vsel %vm1077, %v1751, 0
        %1758 = vmatprep.subr.bf16.mxu0 0
        %1759 = vmatpush1.bf16.msra.mxu0 %v1756
        %1760 = vmatprep.subr.bf16.mxu0 0
        %1761 = vmatpush1.bf16.msra.mxu0 0
        %1762 = vmatprep.subr.bf16.mxu0 0
        %1763 = vmatpush1.bf16.msra.mxu0 0
        %1764 = vmatprep.subr.bf16.mxu0 0
        %1765 = vmatpush1.bf16.msra.mxu0 0
        %1766 = vmatprep.subr.bf16.mxu0 0
        %1767 = vmatpush1.bf16.msra.mxu0 0
        %1768 = vmatprep.subr.bf16.mxu0 0
        %1769 = vmatpush1.bf16.msra.mxu0 0
        %1770 = vmatprep.subr.bf16.mxu0 0
        %1771 = vmatpush1.bf16.msra.mxu0 0
        %1772 = vmatprep.subr.bf16.mxu0 0
        %1773 = vmatpush1.bf16.msra.mxu0 0
        %1774 = vmatprep.subr.bf16.mxu0 0
        %1775 = vmatpush1.bf16.msra.mxu0 0
        %1776 = vmatprep.subr.bf16.mxu0 0
        %1777 = vmatpush1.bf16.msra.mxu0 0
        %1778 = vmatprep.subr.bf16.mxu0 0
        %1779 = vmatpush1.bf16.msra.mxu0 0
        %1780 = vmatprep.subr.bf16.mxu0 0
        %1781 = vmatpush1.bf16.msra.mxu0 0
        %1782 = vmatprep.subr.bf16.mxu0 0
        %1783 = vmatpush1.bf16.msra.mxu0 0
        %1784 = vmatprep.subr.bf16.mxu0 0
        %1785 = vmatpush1.bf16.msra.mxu0 0
        %1786 = vmatprep.subr.bf16.mxu0 0
        %1787 = vmatpush1.bf16.msra.mxu0 0
        %1788 = vmatprep.subr.bf16.mxu0 0
        %1789 = vmatpush1.bf16.msra.mxu0 0
        %1790 = vmatprep.mubr.bf16.mxu0 0
        %1791 = vmatmul.mubr.bf16.gmra.mrb[0].mxu0 %v1753
        %v1792 = vpop.f32.mrb[0].mxu0
        %v1793 = vadd.f32 0.0, %v1792
        %v1794 = vpop.f32.mrb[0].mxu0
        %v1795 = vpop.f32.mrb[0].mxu0
        %v1796 = vpop.f32.mrb[0].mxu0
        %1797 = vdwg.mxu0
        %v1798 = vadd.f32 %v1640, %v1793
        %1799 = vrot.lane.b32.xlu0 %v852, 104
        %v1800 = vpop.permute.xlu0 %1799
        %1801 = vrot.lane.b32.xlu0 %v853, 104
        %v1802 = vpop.permute.xlu0 %1801
        %v1804 = vsel %vm855, %v1800, 0
        %v1807 = vsel %vm855, %v1802, 0
        %1809 = vmatprep.subr.bf16.mxu0 0
        %1810 = vmatpush1.bf16.xpose.msra.mxu0 %v1807
        %1811 = vmatprep.subr.bf16.mxu0 0
        %1812 = vmatpush1.bf16.xpose.msra.mxu0 0
        %1813 = vmatprep.subr.bf16.mxu0 0
        %1814 = vmatpush1.bf16.xpose.msra.mxu0 0
        %1815 = vmatprep.subr.bf16.mxu0 0
        %1816 = vmatpush1.bf16.xpose.msra.mxu0 0
        %1817 = vmatprep.subr.bf16.mxu0 0
        %1818 = vmatpush1.bf16.xpose.msra.mxu0 0
        %1819 = vmatprep.subr.bf16.mxu0 0
        %1820 = vmatpush1.bf16.xpose.msra.mxu0 0
        %1821 = vmatprep.subr.bf16.mxu0 0
        %1822 = vmatpush1.bf16.xpose.msra.mxu0 0
        %1823 = vmatprep.subr.bf16.mxu0 0
        %1824 = vmatpush1.bf16.xpose.msra.mxu0 0
        %1825 = vmatprep.subr.bf16.mxu0 0
        %1826 = vmatpush1.bf16.xpose.msra.mxu0 0
        %1827 = vmatprep.subr.bf16.mxu0 0
        %1828 = vmatpush1.bf16.xpose.msra.mxu0 0
        %1829 = vmatprep.subr.bf16.mxu0 0
        %1830 = vmatpush1.bf16.xpose.msra.mxu0 0
        %1831 = vmatprep.subr.bf16.mxu0 0
        %1832 = vmatpush1.bf16.xpose.msra.mxu0 0
        %1833 = vmatprep.subr.bf16.mxu0 0
        %1834 = vmatpush1.bf16.xpose.msra.mxu0 0
        %1835 = vmatprep.subr.bf16.mxu0 0
        %1836 = vmatpush1.bf16.xpose.msra.mxu0 0
        %1837 = vmatprep.subr.bf16.mxu0 0
        %1838 = vmatpush1.bf16.xpose.msra.mxu0 0
        %1839 = vmatprep.subr.bf16.mxu0 0
        %1840 = vmatpush1.bf16.xpose.msra.mxu0 0
        %1841 = vmatprep.mubr.bf16.mxu0 0
        %1842 = vmatmul.mubr.bf16.gmra.mrb[0].mxu0 %v1804
        %v1843 = vpop.f32.mrb[0].mxu0
        %v1844 = vadd.f32 0.0, %v1843
        %v1845 = vpop.f32.mrb[0].mxu0
        %v1846 = vpop.f32.mrb[0].mxu0
        %v1847 = vpop.f32.mrb[0].mxu0
        %1848 = vdwg.mxu0
        %v1849 = vsel %vm902, %v1844, -inf
        %1850 = vmax.xlane.f32.xlu0 %v1849
        %v1851 = vpop.xlane.xlu0 %1850
        %v1852 = vsub.f32 %v1844, %v1851
        %v1853 = vmul.f32 %v1852, 1.442695
        %v1854 = vpow.pop %v1853
        %v1855 = vsel %vm902, %v1854, 0.0
        %1856 = vadd.xlane.f32.xlu0 %v1855
        %v1857 = vpop.xlane.xlu0 %1856
        %v1858 = vrcp.pop %v1857
        %v1859 = vmul.f32 %v1854, %v1858
        %v1860 = vpack.c.bf16 %v1859, %v1859
        %1861 = vrot.lane.b32.xlu0 %v854, 104
        %v1862 = vpop.permute.xlu0 %1861
        %v1865 = vsel %vm902, %v1860, 0
        %1867 = vmatprep.subr.bf16.mxu0 0
        %1868 = vmatpush1.bf16.msra.mxu0 %v1862
        %1869 = vmatprep.subr.bf16.mxu0 0
        %1870 = vmatpush1.bf16.msra.mxu0 0
        %1871 = vmatprep.subr.bf16.mxu0 0
        %1872 = vmatpush1.bf16.msra.mxu0 0
        %1873 = vmatprep.subr.bf16.mxu0 0
        %1874 = vmatpush1.bf16.msra.mxu0 0
        %1875 = vmatprep.subr.bf16.mxu0 0
        %1876 = vmatpush1.bf16.msra.mxu0 0
        %1877 = vmatprep.subr.bf16.mxu0 0
        %1878 = vmatpush1.bf16.msra.mxu0 0
        %1879 = vmatprep.subr.bf16.mxu0 0
        %1880 = vmatpush1.bf16.msra.mxu0 0
        %1881 = vmatprep.subr.bf16.mxu0 0
        %1882 = vmatpush1.bf16.msra.mxu0 0
        %1883 = vmatprep.subr.bf16.mxu0 0
        %1884 = vmatpush1.bf16.msra.mxu0 0
        %1885 = vmatprep.subr.bf16.mxu0 0
        %1886 = vmatpush1.bf16.msra.mxu0 0
        %1887 = vmatprep.subr.bf16.mxu0 0
        %1888 = vmatpush1.bf16.msra.mxu0 0
        %1889 = vmatprep.subr.bf16.mxu0 0
        %1890 = vmatpush1.bf16.msra.mxu0 0
        %1891 = vmatprep.subr.bf16.mxu0 0
        %1892 = vmatpush1.bf16.msra.mxu0 0
        %1893 = vmatprep.subr.bf16.mxu0 0
        %1894 = vmatpush1.bf16.msra.mxu0 0
        %1895 = vmatprep.subr.bf16.mxu0 0
        %1896 = vmatpush1.bf16.msra.mxu0 0
        %1897 = vmatprep.subr.bf16.mxu0 0
        %1898 = vmatpush1.bf16.msra.mxu0 0
        %1899 = vmatprep.mubr.bf16.mxu0 0
        %1900 = vmatmul.mubr.bf16.gmra.mrb[0].mxu0 %v1865
        %v1901 = vpop.f32.mrb[0].mxu0
        %v1902 = vadd.f32 0.0, %v1901
        %v1903 = vpop.f32.mrb[0].mxu0
        %v1904 = vpop.f32.mrb[0].mxu0
        %v1905 = vpop.f32.mrb[0].mxu0
        %1906 = vdwg.mxu0
        %v1907 = vpack.c.bf16 %v1902, %v1902
        %s1908 = scalar_lea.vmem [#allocation5], 12
        %v1909 = vld [vmem:[%s1908] sm:$0x3]
        %v1911 = vsel %vm855, %v1907, 0
        %v1914 = vsel %vm1077, %v1909, 0
        %1916 = vmatprep.subr.bf16.mxu0 0
        %1917 = vmatpush1.bf16.msra.mxu0 %v1914
        %1918 = vmatprep.subr.bf16.mxu0 0
        %1919 = vmatpush1.bf16.msra.mxu0 0
        %1920 = vmatprep.subr.bf16.mxu0 0
        %1921 = vmatpush1.bf16.msra.mxu0 0
        %1922 = vmatprep.subr.bf16.mxu0 0
        %1923 = vmatpush1.bf16.msra.mxu0 0
        %1924 = vmatprep.subr.bf16.mxu0 0
        %1925 = vmatpush1.bf16.msra.mxu0 0
        %1926 = vmatprep.subr.bf16.mxu0 0
        %1927 = vmatpush1.bf16.msra.mxu0 0
        %1928 = vmatprep.subr.bf16.mxu0 0
        %1929 = vmatpush1.bf16.msra.mxu0 0
        %1930 = vmatprep.subr.bf16.mxu0 0
        %1931 = vmatpush1.bf16.msra.mxu0 0
        %1932 = vmatprep.subr.bf16.mxu0 0
        %1933 = vmatpush1.bf16.msra.mxu0 0
        %1934 = vmatprep.subr.bf16.mxu0 0
        %1935 = vmatpush1.bf16.msra.mxu0 0
        %1936 = vmatprep.subr.bf16.mxu0 0
        %1937 = vmatpush1.bf16.msra.mxu0 0
        %1938 = vmatprep.subr.bf16.mxu0 0
        %1939 = vmatpush1.bf16.msra.mxu0 0
        %1940 = vmatprep.subr.bf16.mxu0 0
        %1941 = vmatpush1.bf16.msra.mxu0 0
        %1942 = vmatprep.subr.bf16.mxu0 0
        %1943 = vmatpush1.bf16.msra.mxu0 0
        %1944 = vmatprep.subr.bf16.mxu0 0
        %1945 = vmatpush1.bf16.msra.mxu0 0
        %1946 = vmatprep.subr.bf16.mxu0 0
        %1947 = vmatpush1.bf16.msra.mxu0 0
        %1948 = vmatprep.mubr.bf16.mxu0 0
        %1949 = vmatmul.mubr.bf16.gmra.mrb[0].mxu0 %v1911
        %v1950 = vpop.f32.mrb[0].mxu0
        %v1951 = vadd.f32 0.0, %v1950
        %v1952 = vpop.f32.mrb[0].mxu0
        %v1953 = vpop.f32.mrb[0].mxu0
        %v1954 = vpop.f32.mrb[0].mxu0
        %1955 = vdwg.mxu0
        %v1956 = vadd.f32 %v1798, %v1951
        %1957 = vrot.lane.b32.xlu0 %v852, 100
        %v1958 = vpop.permute.xlu0 %1957
        %1959 = vrot.lane.b32.xlu0 %v853, 100
        %v1960 = vpop.permute.xlu0 %1959
        %v1962 = vsel %vm855, %v1958, 0
        %v1965 = vsel %vm855, %v1960, 0
        %1967 = vmatprep.subr.bf16.mxu0 0
        %1968 = vmatpush1.bf16.xpose.msra.mxu0 %v1965
        %1969 = vmatprep.subr.bf16.mxu0 0
        %1970 = vmatpush1.bf16.xpose.msra.mxu0 0
        %1971 = vmatprep.subr.bf16.mxu0 0
        %1972 = vmatpush1.bf16.xpose.msra.mxu0 0
        %1973 = vmatprep.subr.bf16.mxu0 0
        %1974 = vmatpush1.bf16.xpose.msra.mxu0 0
        %1975 = vmatprep.subr.bf16.mxu0 0
        %1976 = vmatpush1.bf16.xpose.msra.mxu0 0
        %1977 = vmatprep.subr.bf16.mxu0 0
        %1978 = vmatpush1.bf16.xpose.msra.mxu0 0
        %1979 = vmatprep.subr.bf16.mxu0 0
        %1980 = vmatpush1.bf16.xpose.msra.mxu0 0
        %1981 = vmatprep.subr.bf16.mxu0 0
        %1982 = vmatpush1.bf16.xpose.msra.mxu0 0
        %1983 = vmatprep.subr.bf16.mxu0 0
        %1984 = vmatpush1.bf16.xpose.msra.mxu0 0
        %1985 = vmatprep.subr.bf16.mxu0 0
        %1986 = vmatpush1.bf16.xpose.msra.mxu0 0
        %1987 = vmatprep.subr.bf16.mxu0 0
        %1988 = vmatpush1.bf16.xpose.msra.mxu0 0
        %1989 = vmatprep.subr.bf16.mxu0 0
        %1990 = vmatpush1.bf16.xpose.msra.mxu0 0
        %1991 = vmatprep.subr.bf16.mxu0 0
        %1992 = vmatpush1.bf16.xpose.msra.mxu0 0
        %1993 = vmatprep.subr.bf16.mxu0 0
        %1994 = vmatpush1.bf16.xpose.msra.mxu0 0
        %1995 = vmatprep.subr.bf16.mxu0 0
        %1996 = vmatpush1.bf16.xpose.msra.mxu0 0
        %1997 = vmatprep.subr.bf16.mxu0 0
        %1998 = vmatpush1.bf16.xpose.msra.mxu0 0
        %1999 = vmatprep.mubr.bf16.mxu0 0
        %2000 = vmatmul.mubr.bf16.gmra.mrb[0].mxu0 %v1962
        %v2001 = vpop.f32.mrb[0].mxu0
        %v2002 = vadd.f32 0.0, %v2001
        %v2003 = vpop.f32.mrb[0].mxu0
        %v2004 = vpop.f32.mrb[0].mxu0
        %v2005 = vpop.f32.mrb[0].mxu0
        %2006 = vdwg.mxu0
        %v2007 = vsel %vm902, %v2002, -inf
        %2008 = vmax.xlane.f32.xlu0 %v2007
        %v2009 = vpop.xlane.xlu0 %2008
        %v2010 = vsub.f32 %v2002, %v2009
        %v2011 = vmul.f32 %v2010, 1.442695
        %v2012 = vpow.pop %v2011
        %v2013 = vsel %vm902, %v2012, 0.0
        %2014 = vadd.xlane.f32.xlu0 %v2013
        %v2015 = vpop.xlane.xlu0 %2014
        %v2016 = vrcp.pop %v2015
        %v2017 = vmul.f32 %v2012, %v2016
        %v2018 = vpack.c.bf16 %v2017, %v2017
        %2019 = vrot.lane.b32.xlu0 %v854, 100
        %v2020 = vpop.permute.xlu0 %2019
        %v2023 = vsel %vm902, %v2018, 0
        %2025 = vmatprep.subr.bf16.mxu0 0
        %2026 = vmatpush1.bf16.msra.mxu0 %v2020
        %2027 = vmatprep.subr.bf16.mxu0 0
        %2028 = vmatpush1.bf16.msra.mxu0 0
        %2029 = vmatprep.subr.bf16.mxu0 0
        %2030 = vmatpush1.bf16.msra.mxu0 0
        %2031 = vmatprep.subr.bf16.mxu0 0
        %2032 = vmatpush1.bf16.msra.mxu0 0
        %2033 = vmatprep.subr.bf16.mxu0 0
        %2034 = vmatpush1.bf16.msra.mxu0 0
        %2035 = vmatprep.subr.bf16.mxu0 0
        %2036 = vmatpush1.bf16.msra.mxu0 0
        %2037 = vmatprep.subr.bf16.mxu0 0
        %2038 = vmatpush1.bf16.msra.mxu0 0
        %2039 = vmatprep.subr.bf16.mxu0 0
        %2040 = vmatpush1.bf16.msra.mxu0 0
        %2041 = vmatprep.subr.bf16.mxu0 0
        %2042 = vmatpush1.bf16.msra.mxu0 0
        %2043 = vmatprep.subr.bf16.mxu0 0
        %2044 = vmatpush1.bf16.msra.mxu0 0
        %2045 = vmatprep.subr.bf16.mxu0 0
        %2046 = vmatpush1.bf16.msra.mxu0 0
        %2047 = vmatprep.subr.bf16.mxu0 0
        %2048 = vmatpush1.bf16.msra.mxu0 0
        %2049 = vmatprep.subr.bf16.mxu0 0
        %2050 = vmatpush1.bf16.msra.mxu0 0
        %2051 = vmatprep.subr.bf16.mxu0 0
        %2052 = vmatpush1.bf16.msra.mxu0 0
        %2053 = vmatprep.subr.bf16.mxu0 0
        %2054 = vmatpush1.bf16.msra.mxu0 0
        %2055 = vmatprep.subr.bf16.mxu0 0
        %2056 = vmatpush1.bf16.msra.mxu0 0
        %2057 = vmatprep.mubr.bf16.mxu0 0
        %2058 = vmatmul.mubr.bf16.gmra.mrb[0].mxu0 %v2023
        %v2059 = vpop.f32.mrb[0].mxu0
        %v2060 = vadd.f32 0.0, %v2059
        %v2061 = vpop.f32.mrb[0].mxu0
        %v2062 = vpop.f32.mrb[0].mxu0
        %v2063 = vpop.f32.mrb[0].mxu0
        %2064 = vdwg.mxu0
        %v2065 = vpack.c.bf16 %v2060, %v2060
        %s2066 = scalar_lea.vmem [#allocation5], 14
        %v2067 = vld [vmem:[%s2066] sm:$0x3]
        %v2069 = vsel %vm855, %v2065, 0
        %v2072 = vsel %vm1077, %v2067, 0
        %2074 = vmatprep.subr.bf16.mxu0 0
        %2075 = vmatpush1.bf16.msra.mxu0 %v2072
        %2076 = vmatprep.subr.bf16.mxu0 0
        %2077 = vmatpush1.bf16.msra.mxu0 0
        %2078 = vmatprep.subr.bf16.mxu0 0
        %2079 = vmatpush1.bf16.msra.mxu0 0
        %2080 = vmatprep.subr.bf16.mxu0 0
        %2081 = vmatpush1.bf16.msra.mxu0 0
        %2082 = vmatprep.subr.bf16.mxu0 0
        %2083 = vmatpush1.bf16.msra.mxu0 0
        %2084 = vmatprep.subr.bf16.mxu0 0
        %2085 = vmatpush1.bf16.msra.mxu0 0
        %2086 = vmatprep.subr.bf16.mxu0 0
        %2087 = vmatpush1.bf16.msra.mxu0 0
        %2088 = vmatprep.subr.bf16.mxu0 0
        %2089 = vmatpush1.bf16.msra.mxu0 0
        %2090 = vmatprep.subr.bf16.mxu0 0
        %2091 = vmatpush1.bf16.msra.mxu0 0
        %2092 = vmatprep.subr.bf16.mxu0 0
        %2093 = vmatpush1.bf16.msra.mxu0 0
        %2094 = vmatprep.subr.bf16.mxu0 0
        %2095 = vmatpush1.bf16.msra.mxu0 0
        %2096 = vmatprep.subr.bf16.mxu0 0
        %2097 = vmatpush1.bf16.msra.mxu0 0
        %2098 = vmatprep.subr.bf16.mxu0 0
        %2099 = vmatpush1.bf16.msra.mxu0 0
        %2100 = vmatprep.subr.bf16.mxu0 0
        %2101 = vmatpush1.bf16.msra.mxu0 0
        %2102 = vmatprep.subr.bf16.mxu0 0
        %2103 = vmatpush1.bf16.msra.mxu0 0
        %2104 = vmatprep.subr.bf16.mxu0 0
        %2105 = vmatpush1.bf16.msra.mxu0 0
        %2106 = vmatprep.mubr.bf16.mxu0 0
        %2107 = vmatmul.mubr.bf16.gmra.mrb[0].mxu0 %v2069
        %v2108 = vpop.f32.mrb[0].mxu0
        %v2109 = vadd.f32 0.0, %v2108
        %v2110 = vpop.f32.mrb[0].mxu0
        %v2111 = vpop.f32.mrb[0].mxu0
        %v2112 = vpop.f32.mrb[0].mxu0
        %2113 = vdwg.mxu0
        %v2114 = vadd.f32 %v1956, %v2109
        %v2115 = vld [vmem:[#allocation8] sm:$0x1]
        %v2117 = vlaneseq
        %v2118 = vshrl.u32 %v2117, 7
        %v2119 = vsub.s32 0, %v2118
        %v2120 = vrot.slane %v2115, %v2119
        %v2122 = vadd.f32 %v2114, %v2120
        %v2123 = vsel %vm677, %v2122, 0.0
        %2124 = vadd.xlane.f32.xlu0 %v2123
        %v2125 = vpop.xlane.xlu0 %2124
        %v2126 = vrcp.pop 32.0
        %v2127 = vmul.f32 %v2125, %v2126
        %v2128 = vsub.f32 %v2122, %v2127
        %v2129 = vmul.f32 %v2128, %v2128
        %v2130 = vsel %vm677, %v2129, 0.0
        %2131 = vadd.xlane.f32.xlu0 %v2130
        %v2132 = vpop.xlane.xlu0 %2131
        %v2133 = vmul.f32 %v2132, %v2126
        %v2134 = vadd.f32 %v2133, 1e-05
        %v2135 = vrsqrt.pop %v2134
        %v2136 = vmul.f32 %v2128, %v2135
        %v2137 = vld [vmem:[%s10] sm:$0x1]
        %v2139 = vlaneseq
        %v2140 = vshrl.u32 %v2139, 7
        %v2141 = vsub.s32 0, %v2140
        %v2142 = vrot.slane %v2137, %v2141
        %v2144 = vmul.f32 %v2136, %v2142
        %v2145 = vld [vmem:[%s11] sm:$0x1]
        %v2147 = vlaneseq
        %v2148 = vshrl.u32 %v2147, 7
        %v2149 = vsub.s32 0, %v2148
        %v2150 = vrot.slane %v2145, %v2149
        %v2152 = vadd.f32 %v2144, %v2150
        %v2153 = vpack.c.bf16 %v2152, %v2152
        %v2154 = vld [vmem:[%s12] sm:$0xf]
        %v2155 = vld [vmem:[%s12 + $0x4] sm:$0xf]
        %v2156 = vld [vmem:[%s12 + $0x8] sm:$0xf]
        %v2157 = vld [vmem:[%s12 + $0xc] sm:$0xf]
        %v2158 = vld [vmem:[%s13] sm:$0x1]
        %v2160 = vlaneseq
        %v2161 = vshrl.u32 %v2160, 7
        %v2162 = vsub.s32 0, %v2161
        %v2163 = vrot.slane %v2158, %v2162
        %v2169 = vunpack.c.l.b16 %v2154
        %v2170 = vunpack.c.l.b16 %v2155
        %v2171 = vunpack.c.l.b16 %v2156
        %v2172 = vunpack.c.l.b16 %v2157
        %v2173 = vpack.c.b16 %v2170, %v2169
        %v2174 = vpack.c.b16 %v2172, %v2171
        %v2178 = vsel %vm677, %v2153, 0
        %2180 = vmatprep.subr.bf16.mxu0 0
        %2181 = vmatpush1.bf16.msra.mxu0 %v2173
        %2182 = vmatprep.subr.bf16.mxu0 0
        %2183 = vmatpush1.bf16.msra.mxu0 %v2174
        %2184 = vmatprep.subr.bf16.mxu0 0
        %2185 = vmatpush1.bf16.msra.mxu0 0
        %2186 = vmatprep.subr.bf16.mxu0 0
        %2187 = vmatpush1.bf16.msra.mxu0 0
        %2188 = vmatprep.subr.bf16.mxu0 0
        %2189 = vmatpush1.bf16.msra.mxu0 0
        %2190 = vmatprep.subr.bf16.mxu0 0
        %2191 = vmatpush1.bf16.msra.mxu0 0
        %2192 = vmatprep.subr.bf16.mxu0 0
        %2193 = vmatpush1.bf16.msra.mxu0 0
        %2194 = vmatprep.subr.bf16.mxu0 0
        %2195 = vmatpush1.bf16.msra.mxu0 0
        %2196 = vmatprep.subr.bf16.mxu0 0
        %2197 = vmatpush1.bf16.msra.mxu0 0
        %2198 = vmatprep.subr.bf16.mxu0 0
        %2199 = vmatpush1.bf16.msra.mxu0 0
        %2200 = vmatprep.subr.bf16.mxu0 0
        %2201 = vmatpush1.bf16.msra.mxu0 0
        %2202 = vmatprep.subr.bf16.mxu0 0
        %2203 = vmatpush1.bf16.msra.mxu0 0
        %2204 = vmatprep.subr.bf16.mxu0 0
        %2205 = vmatpush1.bf16.msra.mxu0 0
        %2206 = vmatprep.subr.bf16.mxu0 0
        %2207 = vmatpush1.bf16.msra.mxu0 0
        %2208 = vmatprep.subr.bf16.mxu0 0
        %2209 = vmatpush1.bf16.msra.mxu0 0
        %2210 = vmatprep.subr.bf16.mxu0 0
        %2211 = vmatpush1.bf16.msra.mxu0 0
        %2212 = vmatprep.mubr.bf16.mxu0 0
        %2213 = vmatmul.mubr.bf16.gmra.mrb[0].mxu0 %v2178
        %v2214 = vpop.f32.mrb[0].mxu0
        %v2215 = vadd.f32 %v2163, %v2214
        %v2216 = vpop.f32.mrb[0].mxu0
        %v2217 = vpop.f32.mrb[0].mxu0
        %v2218 = vpop.f32.mrb[0].mxu0
        %2219 = vdwg.mxu0
        %v2220 = vmul.f32 %v2215, 0.5
        %v2221 = vmul.f32 %v2215, 0.70710677
        %v2222 = verf.f32.pop %v2221
        %v2223 = vadd.f32 %v2222, 1.0
        %v2224 = vmul.f32 %v2220, %v2223
        %v2225 = vpack.c.bf16 %v2224, %v2224
        %v2226 = vld [vmem:[%s14] sm:$0xf]
        %v2227 = vld [vmem:[%s14 + $0x4] sm:$0xf]
        %v2228 = vld [vmem:[%s14 + $0x8] sm:$0xf]
        %v2229 = vld [vmem:[%s14 + $0xc] sm:$0xf]
        %v2230 = vld [vmem:[%s14 + $0x10] sm:$0xf]
        %v2231 = vld [vmem:[%s14 + $0x14] sm:$0xf]
        %v2232 = vld [vmem:[%s14 + $0x18] sm:$0xf]
        %v2233 = vld [vmem:[%s14 + $0x1c] sm:$0xf]
        %v2234 = vld [vmem:[%s14 + $0x20] sm:$0xf]
        %v2235 = vld [vmem:[%s14 + $0x24] sm:$0xf]
        %v2236 = vld [vmem:[%s14 + $0x28] sm:$0xf]
        %v2237 = vld [vmem:[%s14 + $0x2c] sm:$0xf]
        %v2238 = vld [vmem:[%s14 + $0x30] sm:$0xf]
        %v2239 = vld [vmem:[%s14 + $0x34] sm:$0xf]
        %v2240 = vld [vmem:[%s14 + $0x38] sm:$0xf]
        %v2241 = vld [vmem:[%s14 + $0x3c] sm:$0xf]
        %v2242 = vld [vmem:[%s15] sm:$0x1]
        %v2244 = vlaneseq
        %v2245 = vshrl.u32 %v2244, 7
        %v2246 = vsub.s32 0, %v2245
        %v2247 = vrot.slane %v2242, %v2246
        %v2265 = vunpack.c.l.b16 %v2226
        %v2266 = vunpack.c.l.b16 %v2227
        %v2267 = vunpack.c.l.b16 %v2228
        %v2268 = vunpack.c.l.b16 %v2229
        %v2269 = vunpack.c.l.b16 %v2230
        %v2270 = vunpack.c.l.b16 %v2231
        %v2271 = vunpack.c.l.b16 %v2232
        %v2272 = vunpack.c.l.b16 %v2233
        %v2273 = vunpack.c.l.b16 %v2234
        %v2274 = vunpack.c.l.b16 %v2235
        %v2275 = vunpack.c.l.b16 %v2236
        %v2276 = vunpack.c.l.b16 %v2237
        %v2277 = vunpack.c.l.b16 %v2238
        %v2278 = vunpack.c.l.b16 %v2239
        %v2279 = vunpack.c.l.b16 %v2240
        %v2280 = vunpack.c.l.b16 %v2241
        %v2281 = vpack.c.b16 %v2266, %v2265
        %v2282 = vpack.c.b16 %v2268, %v2267
        %v2283 = vpack.c.b16 %v2270, %v2269
        %v2284 = vpack.c.b16 %v2272, %v2271
        %v2285 = vpack.c.b16 %v2274, %v2273
        %v2286 = vpack.c.b16 %v2276, %v2275
        %v2287 = vpack.c.b16 %v2278, %v2277
        %v2288 = vpack.c.b16 %v2280, %v2279
        %2297 = vmatprep.subr.bf16.mxu0 0
        %2298 = vmatpush1.bf16.msra.mxu0 %v2281
        %2299 = vmatprep.subr.bf16.mxu0 0
        %2300 = vmatpush1.bf16.msra.mxu0 %v2282
        %2301 = vmatprep.subr.bf16.mxu0 0
        %2302 = vmatpush1.bf16.msra.mxu0 %v2283
        %2303 = vmatprep.subr.bf16.mxu0 0
        %2304 = vmatpush1.bf16.msra.mxu0 %v2284
        %2305 = vmatprep.subr.bf16.mxu0 0
        %2306 = vmatpush1.bf16.msra.mxu0 %v2285
        %2307 = vmatprep.subr.bf16.mxu0 0
        %2308 = vmatpush1.bf16.msra.mxu0 %v2286
        %2309 = vmatprep.subr.bf16.mxu0 0
        %2310 = vmatpush1.bf16.msra.mxu0 %v2287
        %2311 = vmatprep.subr.bf16.mxu0 0
        %2312 = vmatpush1.bf16.msra.mxu0 %v2288
        %2313 = vmatprep.subr.bf16.mxu0 0
        %2314 = vmatpush1.bf16.msra.mxu0 0
        %2315 = vmatprep.subr.bf16.mxu0 0
        %2316 = vmatpush1.bf16.msra.mxu0 0
        %2317 = vmatprep.subr.bf16.mxu0 0
        %2318 = vmatpush1.bf16.msra.mxu0 0
        %2319 = vmatprep.subr.bf16.mxu0 0
        %2320 = vmatpush1.bf16.msra.mxu0 0
        %2321 = vmatprep.subr.bf16.mxu0 0
        %2322 = vmatpush1.bf16.msra.mxu0 0
        %2323 = vmatprep.subr.bf16.mxu0 0
        %2324 = vmatpush1.bf16.msra.mxu0 0
        %2325 = vmatprep.subr.bf16.mxu0 0
        %2326 = vmatpush1.bf16.msra.mxu0 0
        %2327 = vmatprep.subr.bf16.mxu0 0
        %2328 = vmatpush1.bf16.msra.mxu0 0
        %2329 = vmatprep.mubr.bf16.mxu0 0
        %2330 = vmatmul.mubr.bf16.gmra.mrb[0].mxu0 %v2225
        %v2331 = vpop.f32.mrb[0].mxu0
        %v2332 = vadd.f32 %v2247, %v2331
        %v2333 = vpop.f32.mrb[0].mxu0
        %v2334 = vpop.f32.mrb[0].mxu0
        %v2335 = vpop.f32.mrb[0].mxu0
        %2336 = vdwg.mxu0
        %v2337 = vadd.f32 %v2152, %v2332
        %v2338 = vsel %vm677, %v2337, 0.0
        %2339 = vadd.xlane.f32.xlu0 %v2338
        %v2340 = vpop.xlane.xlu0 %2339
        %v2341 = vmul.f32 %v2340, %v2126
        %v2342 = vsub.f32 %v2337, %v2341
        %v2343 = vmul.f32 %v2342, %v2342
        %v2344 = vsel %vm677, %v2343, 0.0
        %2345 = vadd.xlane.f32.xlu0 %v2344
        %v2346 = vpop.xlane.xlu0 %2345
        %v2347 = vmul.f32 %v2346, %v2126
        %v2348 = vadd.f32 %v2347, 1e-05
        %v2349 = vrsqrt.pop %v2348
        %v2350 = vmul.f32 %v2342, %v2349
        %v2351 = vld [vmem:[%s16] sm:$0x1]
        %v2353 = vlaneseq
        %v2354 = vshrl.u32 %v2353, 7
        %v2355 = vsub.s32 0, %v2354
        %v2356 = vrot.slane %v2351, %v2355
        %v2358 = vmul.f32 %v2350, %v2356
        %v2359 = vld [vmem:[%s17] sm:$0x1]
        %v2361 = vlaneseq
        %v2362 = vshrl.u32 %v2361, 7
        %v2363 = vsub.s32 0, %v2362
        %v2364 = vrot.slane %v2359, %v2363
        %v2366 = vadd.f32 %v2358, %v2364
        %2367 = vst.msk [vmem:[%s637] sm:$0xff] %vm677, %v2366
        %s2368 = sand.u32 %s431, 1
        %s2369 = scalar_lea.sflag [#allocation4], %s2368
        %s2370 = sand.u32 %s431, 1
        %s2371 = smul.addr %s2370, 8
        %s2372 = scalar_lea.vmem [#allocation10], %s2371
        // Predicated region
        $region109: #{tpu_custom_call.1} parent=91 // pred_check
          %p2373 = pneg %p441
        $region110: #{tpu_custom_call.1} parent=91 // pred_check_branch
          %2375 = sbr.rel (%p2373) target = $region112
        $region111: #{tpu_custom_call.1} parent=91 // pred_region
          %s2377 = ssub.s32 128, 128
          %2378 = vsyncadd %s2369, %s2377
          %s2379 = smul.addr %s35, 128
          %s2380 = scalar_lea.hbm %s18, %s2379
          %s2382 = sshll.u32 %s2372, 4
          %s2383 = int_to_ptr.vmem [resolvable:$true] %s2382
          %2385 = dma.vmem_to_hbm [thread:$0]  %s2383, 128, %s2380, %s2369
        $region112: #{tpu_custom_call.1} parent=91 // pred_fallthru
          _
      $region92: #{tpu_custom_call.1} parent=5 // pred_fallthru
        _
      %p2386 = scmp.le.s32.totalorder 2, %s30
      // Predicated region
      $region113: #{tpu_custom_call.1} parent=5 // pred_check
        %p2387 = pneg %p2386
      $region114: #{tpu_custom_call.1} parent=5 // pred_check_branch
        %2389 = sbr.rel (%p2387) target = $region116
      $region115: #{tpu_custom_call.1} parent=5 // pred_region
        %s2390 = ssub.s32 %s30, 2
        // Predicated region
        $region117: #{tpu_custom_call.1} parent=115 // pred_check
          %p2391 = pneg %p447
        $region118: #{tpu_custom_call.1} parent=115 // pred_check_branch
          %2393 = sbr.rel (%p2391) target = $region120
        $region119: #{tpu_custom_call.1} parent=115 // pred_region
          %s2394 = sand.u32 %s432, 1
          %s2395 = scalar_lea.sflag [#allocation4], %s2394
          %s2396 = sand.u32 %s432, 1
          %s2397 = smul.addr %s2396, 8
          %s2398 = scalar_lea.vmem [#allocation10], %s2397
          %2399 = dma.done %s2395, 128
        $region120: #{tpu_custom_call.1} parent=115 // pred_fallthru
          _
      $region116: #{tpu_custom_call.1} parent=5 // pred_fallthru
        _
    $region6: #{tpu_custom_call.1} parent=1 // loop_footer
      %s34 = sadd.s32 1, %s30
    $region7: #{tpu_custom_call.1} parent=1 // loop_footer_branch
      %29 = sbr.rel target = $region3
    $region8: #{tpu_custom_call.1} parent=1 // loop_exit
      _
    %2400 = vsyncpa [#allocation3], 1
    %s2401 = scalar_lea.sflag [#allocation3], 1
    %2402 = vsyncpa %s2401, 1
    %2403 = vsyncpa [#allocation6], 1
    %2404 = vsyncpa [#allocation9], 1
    %2405 = vsyncpa [#allocation4], 1
    %s2406 = scalar_lea.sflag [#allocation4], 1
    %2407 = vsyncpa %s2406, 1

</llo_original>
